<compile_context>
chip_gen: v6e
topology: v6e:2x2x1
jax: 0.10.0
libtpu: 0.0.40
codegen_flags: <defaults>
</compile_context>

<pallas_src>
import functools
import math

import numpy as np
import jax
import jax.numpy as jnp
from jax.experimental import pallas as pl
from jax.experimental.pallas import tpu as pltpu


# ----------------------------------------------------------------------------
# Host pre-pass: per-(layer, qubit) 2x2 gate entries from the rotation angles.
# ----------------------------------------------------------------------------
def _gate_entries(params):
    """(L, nq, 3) angles -> flat f32 table of the 2x2 gates RZ(tz).RY(ty).RX(tx).

    Layout per (layer, qubit): [g00r, g00i, g01r, g01i, g10r, g10i, g11r, g11i].
    This is the only per-layer data the kernel touches; the D^2 layer unitaries
    are never materialized.
    """
    h = params.astype(jnp.float32) * 0.5
    cx, sx = jnp.cos(h[..., 0]), jnp.sin(h[..., 0])
    cy, sy = jnp.cos(h[..., 1]), jnp.sin(h[..., 1])
    cz, sz = jnp.cos(h[..., 2]), jnp.sin(h[..., 2])
    # M = RY @ RX
    m00r, m00i = cy * cx, sy * sx
    m01r, m01i = -sy * cx, -cy * sx
    m10r, m10i = sy * cx, -cy * sx
    m11r, m11i = cy * cx, -sy * sx
    # G = RZ @ M : row 0 *= exp(-i tz/2) = cz - i sz, row 1 *= exp(+i tz/2)
    g00r, g00i = cz * m00r + sz * m00i, cz * m00i - sz * m00r
    g01r, g01i = cz * m01r + sz * m01i, cz * m01i - sz * m01r
    g10r, g10i = cz * m10r - sz * m10i, cz * m10i + sz * m10r
    g11r, g11i = cz * m11r - sz * m11i, cz * m11i + sz * m11r
    table = jnp.stack([g00r, g00i, g01r, g01i, g10r, g10i, g11r, g11i], axis=-1)
    return table.reshape(-1)                      # (L * nq * 8,) float32


# ----------------------------------------------------------------------------
# Pallas kernel: apply rotations + CNOT ring directly to the resident state.
# ----------------------------------------------------------------------------
def _fullquantum_kernel(gates_ref, state_ref, mask_ref, out_ref, *, nq, nl):
    D = 1 << nq
    psi_r = state_ref[...]                        # (Bp, D) real amplitudes
    psi_i = jnp.zeros_like(psi_r)                 # initial state is real

    lane = jax.lax.broadcasted_iota(jnp.int32, psi_r.shape, 1)

    # pltpu.roll is documented to match jnp.roll (elements move towards higher
    # lane indices for positive shift).  Derive the direction once at runtime
    # from a probe so the butterfly below is correct under either rotate
    # convention; the cost is a couple of int compares per call.
    probe = pltpu.roll(lane, 1, axis=1)
    roll_fwd = probe == ((lane + (D - 1)) & (D - 1))

    def xor_partner(v, s, hi):
        """Returns v at lane index (i XOR s): two lane rotates + one select."""
        sel = jnp.logical_xor(hi, roll_fwd)
        return jnp.where(sel,
                         pltpu.roll(v, D - s, axis=1),
                         pltpu.roll(v, s, axis=1))

    # TODO(synk): for large num_layers switch the static unroll below to a
    # lax.fori_loop with dynamic SMEM gate indexing (reads already support it).
    for l in range(nl):
        # --- single-qubit RZ.RY.RX rotation on every wire (wire 0 = MSB) ---
        for q in range(nq):
            s = 1 << (nq - 1 - q)                 # lane stride of wire q
            base = (l * nq + q) * 8
            g00r, g00i = gates_ref[base + 0], gates_ref[base + 1]
            g01r, g01i = gates_ref[base + 2], gates_ref[base + 3]
            g10r, g10i = gates_ref[base + 4], gates_ref[base + 5]
            g11r, g11i = gates_ref[base + 6], gates_ref[base + 7]

            hi = (lane & s) != 0                  # wire-q bit of the basis index
            a_r = jnp.where(hi, g11r, g00r)       # coefficient of psi[i]
            a_i = jnp.where(hi, g11i, g00i)
            b_r = jnp.where(hi, g10r, g01r)       # coefficient of psi[i ^ s]
            b_i = jnp.where(hi, g10i, g01i)

            pr = xor_partner(psi_r, s, hi)
            pi = xor_partner(psi_i, s, hi)
            new_r = a_r * psi_r - a_i * psi_i + b_r * pr - b_i * pi
            new_i = a_r * psi_i + a_i * psi_r + b_r * pi + b_i * pr
            psi_r, psi_i = new_r, new_i

        # --- CNOT ring, applied sequentially: control j -> target (j+1)%nq ---
        for j in range(nq):
            c_s = 1 << (nq - 1 - j)
            t_s = 1 << (nq - 1 - ((j + 1) % nq))
            c_hi = (lane & c_s) != 0
            t_hi = (lane & t_s) != 0
            pr = xor_partner(psi_r, t_s, t_hi)
            pi = xor_partner(psi_i, t_s, t_hi)
            psi_r = jnp.where(c_hi, pr, psi_r)
            psi_i = jnp.where(c_hi, pi, psi_i)

    probs = psi_r * psi_r + psi_i * psi_i         # (Bp, D) measurement probs
    # Segmented sum over basis states -> one small MXU matmul + one dense store.
    out_ref[...] = jnp.dot(probs, mask_ref[...], preferred_element_type=jnp.float32)


# ----------------------------------------------------------------------------
# Wrapper.
# ----------------------------------------------------------------------------
@functools.partial(jax.jit, static_argnums=(2, 3))
def full_quantum_model_forward(state, params, num_qubits, num_classes):
    """Pallas implementation of FullQuantumModel.forward.

    state:  (B, 2**num_qubits) float32 normalized amplitudes (imaginary part 0)
    params: (L, num_qubits, 3) float32 rotation angles
    returns (B,) for num_classes == 2, else (B, num_classes) float32.
    """
    B = state.shape[0]
    nq = num_qubits
    D = 2 ** nq
    L = params.shape[0]

    cq = math.ceil(math.log2(num_classes))
    if num_classes == 2:
        n_out, seg_width = 1, D // 2
    else:
        n_out, seg_width = num_classes, D // (2 ** cq)

    gates = _gate_entries(params)                           # (L*nq*8,) -> SMEM

    # 0/1 segment mask (D, n_out): column c sums the basis states of class c.
    mask_np = np.zeros((D, n_out), dtype=np.float32)
    for c in range(n_out):
        mask_np[c * seg_width:(c + 1) * seg_width, c] = 1.0
    seg_mask = jnp.asarray(mask_np)

    # Pad batch to sublane granularity; padded rows are zero and sliced off.
    Bp = max(8, ((B + 7) // 8) * 8)
    sr = jnp.zeros((Bp, D), jnp.float32).at[:B].set(state.astype(jnp.float32))

    kernel = functools.partial(_fullquantum_kernel, nq=nq, nl=L)

    # Single grid step: state (8 KiB) + mask (<=4 KiB) resident in VMEM, gate
    # scalars in SMEM, no per-layer pipeline or D^2 streams.  VMEM use is tiny
    # on v5e/v6e/v7x; there is nothing left worth sharding across a second
    # TensorCore at these sizes.
    # TODO(synk): shard the batch across cores (parallel row-block grid) if B
    # ever becomes large enough to matter.
    out = pl.pallas_call(
        kernel,
        out_shape=jax.ShapeDtypeStruct((Bp, n_out), jnp.float32),
        grid_spec=pltpu.PrefetchScalarGridSpec(
            num_scalar_prefetch=0,
            grid=(1,),
            in_specs=[
                pl.BlockSpec(memory_space=pltpu.MemorySpace.SMEM),  # gate scalars
                pl.BlockSpec((Bp, D), lambda i: (0, 0)),            # state (real)
                pl.BlockSpec((D, n_out), lambda i: (0, 0)),         # class mask
            ],
            out_specs=pl.BlockSpec((Bp, n_out), lambda i: (0, 0)),
        ),
        compiler_params=pltpu.CompilerParams(
            dimension_semantics=("arbitrary",)),
    )(gates, sr, seg_mask)

    out = out[:B]
    if num_classes == 2:
        return out[:, 0]
    return out


# ----------------------------------------------------------------------------
# Pure-JAX reference (kron-built unitaries) -- used only for validation below.
# ----------------------------------------------------------------------------
def _rot_gate(theta):
    tx, ty, tz = theta[0], theta[1], theta[2]
    cx, sx = jnp.cos(tx / 2), jnp.sin(tx / 2)
    cy, sy = jnp.cos(ty / 2), jnp.sin(ty / 2)
    RX = jnp.array([[cx, -1j * sx], [-1j * sx, cx]], dtype=jnp.complex64)
    RY = jnp.array([[cy, -sy], [sy, cy]], dtype=jnp.complex64)
    RZ = jnp.array([[jnp.exp(-1j * tz / 2), 0.0],
                    [0.0, jnp.exp(1j * tz / 2)]], dtype=jnp.complex64)
    return (RZ @ RY @ RX).astype(jnp.complex64)


def _cnot_ring_perm(num_qubits):
    dim = 2 ** num_qubits
    perm = np.zeros(dim, dtype=np.int32)
    for b in range(dim):
        bits = [(b >> (num_qubits - 1 - j)) & 1 for j in range(num_qubits)]
        for j in range(num_qubits):
            t = (j + 1) % num_qubits
            bits[t] ^= bits[j]
        b2 = 0
        for j in range(num_qubits):
            b2 = (b2 << 1) | bits[j]
        perm[b] = b2
    return perm


def _build_layer_unitaries_ref(params, num_qubits):
    perm = _cnot_ring_perm(num_qubits)
    layers = []
    for l in range(params.shape[0]):
        gates = [_rot_gate(params[l, q]) for q in range(num_qubits)]
        u_rot = functools.reduce(jnp.kron, gates)           # wire 0 = MSB
        u_layer = jnp.zeros_like(u_rot).at[perm].set(u_rot)
        layers.append(u_layer)
    return jnp.stack(layers, axis=0)


def _reference_forward(state, params, num_qubits, num_classes):
    D = 2 ** num_qubits
    u = _build_layer_unitaries_ref(params, num_qubits)
    psi = state.astype(jnp.complex64)
    for l in range(u.shape[0]):
        psi = psi @ u[l].T
    probs_full = jnp.abs(psi) ** 2
    if num_classes == 2:
        return jnp.sum(probs_full[:, : D // 2], axis=1).astype(jnp.float32)
    cq = math.ceil(math.log2(num_classes))
    width = D // (2 ** cq)
    cols = [jnp.sum(probs_full[:, c * width:(c + 1) * width], axis=1)
            for c in range(num_classes)]
    return jnp.stack(cols, axis=1).astype(jnp.float32)


if __name__ == "__main__":
    num_qubits = 8          # state dim 256 = 16x16 image, as in the module docstring
    num_layers = 2
    batch = 2

    key = jax.random.PRNGKey(0)
    k_params, k_state = jax.random.split(key)

    # torch.rand(num_qubits, 3) per layer -> uniform [0, 1)
    params = jax.random.uniform(k_params, (num_layers, num_qubits, 3),
                                dtype=jnp.float32)

    # image data, L2-normalized along dim 1 (as in FullQuantumModel.fit)
    raw = jax.random.normal(k_state, (batch, 2 ** num_qubits), dtype=jnp.float32)
    state = raw / jnp.linalg.norm(raw, axis=1, keepdims=True)

    # ---- binary classification (num_classes == 2) ----
    out_bin = full_quantum_model_forward(state, params, num_qubits, 2)
    out_bin = jax.block_until_ready(out_bin)
    ref_bin = _reference_forward(state, params, num_qubits, 2)
    assert out_bin.shape == (batch,)
    assert jnp.allclose(out_bin, ref_bin, atol=1e-3, rtol=1e-3)

    # ---- multi-class (num_classes == 4 -> 2 classification qubits) ----
    out_mc = full_quantum_model_forward(state, params, num_qubits, 4)
    out_mc = jax.block_until_ready(out_mc)
    ref_mc = _reference_forward(state, params, num_qubits, 4)
    assert out_mc.shape == (batch, 4)
    assert jnp.allclose(out_mc, ref_mc, atol=1e-3, rtol=1e-3)

    # ---- single-layer edge case ----
    out_1l = full_quantum_model_forward(state, params[:1], num_qubits, 2)
    out_1l = jax.block_until_ready(out_1l)
    ref_1l = _reference_forward(state, params[:1], num_qubits, 2)
    assert jnp.allclose(out_1l, ref_1l, atol=1e-3, rtol=1e-3)

    print("KERNEL_OK")
</pallas_src>

<mosaic_0001>
module attributes {stable_mosaic.version = 11 : i64} {
  func.func @_fullquantum_kernel(%arg0: i32, %arg1: memref<128xf32, #tpu.memory_space<smem>>, %arg2: memref<8x256xf32, #tpu.memory_space<vmem>>, %arg3: memref<256x1xf32, #tpu.memory_space<vmem>>, %arg4: memref<8x1xf32, #tpu.memory_space<vmem>>) attributes {dimension_semantics = [#tpu.dimension_semantics<arbitrary>], iteration_bounds = array<i64: 1>, scalar_prefetch = 0 : i64, scratch_operands = 0 : i64, tpu.core_type = #tpu.core_type<tc>, window_params = [{transform_indices = @transform_0, window_bounds = array<i64: 128>}, {pipeline_mode = #tpu.pipeline_mode<synchronous>, transform_indices = @transform_1, window_bounds = array<i64: 8, 256>}, {pipeline_mode = #tpu.pipeline_mode<synchronous>, transform_indices = @transform_2, window_bounds = array<i64: 256, 1>}, {pipeline_mode = #tpu.pipeline_mode<synchronous>, transform_indices = @transform_3, window_bounds = array<i64: 8, 1>}]} {
    %c0 = arith.constant 0 : index
    %c0_0 = arith.constant 0 : index
    %0 = vector.load %arg2[%c0, %c0_0] : memref<8x256xf32, #tpu.memory_space<vmem>>, vector<8x256xf32>
    %cst = arith.constant 0.000000e+00 : f32
    %1 = vector.broadcast %cst : f32 to vector<8x256xf32>
    %2 = tpu.iota {dimensions = array<i32: 1>} : vector<8x256xi32>
    %c1_i32 = arith.constant 1 : i32
    %3 = tpu.dynamic_rotate %2 by %c1_i32 dim 1 : vector<8x256xi32>, i32 -> vector<8x256xi32>
    %c255_i32 = arith.constant 255 : i32
    %4 = vector.broadcast %c255_i32 : i32 to vector<8x256xi32>
    %5 = arith.addi %2, %4 : vector<8x256xi32>
    %c255_i32_1 = arith.constant 255 : i32
    %6 = vector.broadcast %c255_i32_1 : i32 to vector<8x256xi32>
    %7 = arith.andi %5, %6 : vector<8x256xi32>
    %8 = arith.cmpi eq, %3, %7 : vector<8x256xi32>
    %c0_2 = arith.constant 0 : index
    %9 = memref.load %arg1[%c0_2] : memref<128xf32, #tpu.memory_space<smem>>
    %c1 = arith.constant 1 : index
    %10 = memref.load %arg1[%c1] : memref<128xf32, #tpu.memory_space<smem>>
    %c2 = arith.constant 2 : index
    %11 = memref.load %arg1[%c2] : memref<128xf32, #tpu.memory_space<smem>>
    %c3 = arith.constant 3 : index
    %12 = memref.load %arg1[%c3] : memref<128xf32, #tpu.memory_space<smem>>
    %c4 = arith.constant 4 : index
    %13 = memref.load %arg1[%c4] : memref<128xf32, #tpu.memory_space<smem>>
    %c5 = arith.constant 5 : index
    %14 = memref.load %arg1[%c5] : memref<128xf32, #tpu.memory_space<smem>>
    %c6 = arith.constant 6 : index
    %15 = memref.load %arg1[%c6] : memref<128xf32, #tpu.memory_space<smem>>
    %c7 = arith.constant 7 : index
    %16 = memref.load %arg1[%c7] : memref<128xf32, #tpu.memory_space<smem>>
    %c128_i32 = arith.constant 128 : i32
    %17 = vector.broadcast %c128_i32 : i32 to vector<8x256xi32>
    %18 = arith.andi %2, %17 : vector<8x256xi32>
    %c0_i32 = arith.constant 0 : i32
    %19 = vector.broadcast %c0_i32 : i32 to vector<8x256xi32>
    %20 = arith.cmpi ne, %18, %19 : vector<8x256xi32>
    %21 = vector.broadcast %15 : f32 to vector<8x256xf32>
    %22 = vector.broadcast %9 : f32 to vector<8x256xf32>
    %23 = arith.select %20, %21, %22 : vector<8x256xi1>, vector<8x256xf32>
    %24 = vector.broadcast %16 : f32 to vector<8x256xf32>
    %25 = vector.broadcast %10 : f32 to vector<8x256xf32>
    %26 = arith.select %20, %24, %25 : vector<8x256xi1>, vector<8x256xf32>
    %27 = vector.broadcast %13 : f32 to vector<8x256xf32>
    %28 = vector.broadcast %11 : f32 to vector<8x256xf32>
    %29 = arith.select %20, %27, %28 : vector<8x256xi1>, vector<8x256xf32>
    %30 = vector.broadcast %14 : f32 to vector<8x256xf32>
    %31 = vector.broadcast %12 : f32 to vector<8x256xf32>
    %32 = arith.select %20, %30, %31 : vector<8x256xi1>, vector<8x256xf32>
    %33 = arith.xori %20, %8 : vector<8x256xi1>
    %c128_i32_3 = arith.constant 128 : i32
    %34 = tpu.dynamic_rotate %0 by %c128_i32_3 dim 1 : vector<8x256xf32>, i32 -> vector<8x256xf32>
    %c128_i32_4 = arith.constant 128 : i32
    %35 = tpu.dynamic_rotate %0 by %c128_i32_4 dim 1 : vector<8x256xf32>, i32 -> vector<8x256xf32>
    %36 = arith.select %33, %34, %35 : vector<8x256xi1>, vector<8x256xf32>
    %37 = arith.xori %20, %8 : vector<8x256xi1>
    %c128_i32_5 = arith.constant 128 : i32
    %38 = tpu.dynamic_rotate %1 by %c128_i32_5 dim 1 : vector<8x256xf32>, i32 -> vector<8x256xf32>
    %c128_i32_6 = arith.constant 128 : i32
    %39 = tpu.dynamic_rotate %1 by %c128_i32_6 dim 1 : vector<8x256xf32>, i32 -> vector<8x256xf32>
    %40 = arith.select %37, %38, %39 : vector<8x256xi1>, vector<8x256xf32>
    %41 = arith.mulf %23, %0 : vector<8x256xf32>
    %42 = arith.mulf %26, %1 : vector<8x256xf32>
    %43 = arith.subf %41, %42 : vector<8x256xf32>
    %44 = arith.mulf %29, %36 : vector<8x256xf32>
    %45 = arith.addf %43, %44 : vector<8x256xf32>
    %46 = arith.mulf %32, %40 : vector<8x256xf32>
    %47 = arith.subf %45, %46 : vector<8x256xf32>
    %48 = arith.mulf %23, %1 : vector<8x256xf32>
    %49 = arith.mulf %26, %0 : vector<8x256xf32>
    %50 = arith.addf %48, %49 : vector<8x256xf32>
    %51 = arith.mulf %29, %40 : vector<8x256xf32>
    %52 = arith.addf %50, %51 : vector<8x256xf32>
    %53 = arith.mulf %32, %36 : vector<8x256xf32>
    %54 = arith.addf %52, %53 : vector<8x256xf32>
    %c8 = arith.constant 8 : index
    %55 = memref.load %arg1[%c8] : memref<128xf32, #tpu.memory_space<smem>>
    %c9 = arith.constant 9 : index
    %56 = memref.load %arg1[%c9] : memref<128xf32, #tpu.memory_space<smem>>
    %c10 = arith.constant 10 : index
    %57 = memref.load %arg1[%c10] : memref<128xf32, #tpu.memory_space<smem>>
    %c11 = arith.constant 11 : index
    %58 = memref.load %arg1[%c11] : memref<128xf32, #tpu.memory_space<smem>>
    %c12 = arith.constant 12 : index
    %59 = memref.load %arg1[%c12] : memref<128xf32, #tpu.memory_space<smem>>
    %c13 = arith.constant 13 : index
    %60 = memref.load %arg1[%c13] : memref<128xf32, #tpu.memory_space<smem>>
    %c14 = arith.constant 14 : index
    %61 = memref.load %arg1[%c14] : memref<128xf32, #tpu.memory_space<smem>>
    %c15 = arith.constant 15 : index
    %62 = memref.load %arg1[%c15] : memref<128xf32, #tpu.memory_space<smem>>
    %c64_i32 = arith.constant 64 : i32
    %63 = vector.broadcast %c64_i32 : i32 to vector<8x256xi32>
    %64 = arith.andi %2, %63 : vector<8x256xi32>
    %c0_i32_7 = arith.constant 0 : i32
    %65 = vector.broadcast %c0_i32_7 : i32 to vector<8x256xi32>
    %66 = arith.cmpi ne, %64, %65 : vector<8x256xi32>
    %67 = vector.broadcast %61 : f32 to vector<8x256xf32>
    %68 = vector.broadcast %55 : f32 to vector<8x256xf32>
    %69 = arith.select %66, %67, %68 : vector<8x256xi1>, vector<8x256xf32>
    %70 = vector.broadcast %62 : f32 to vector<8x256xf32>
    %71 = vector.broadcast %56 : f32 to vector<8x256xf32>
    %72 = arith.select %66, %70, %71 : vector<8x256xi1>, vector<8x256xf32>
    %73 = vector.broadcast %59 : f32 to vector<8x256xf32>
    %74 = vector.broadcast %57 : f32 to vector<8x256xf32>
    %75 = arith.select %66, %73, %74 : vector<8x256xi1>, vector<8x256xf32>
    %76 = vector.broadcast %60 : f32 to vector<8x256xf32>
    %77 = vector.broadcast %58 : f32 to vector<8x256xf32>
    %78 = arith.select %66, %76, %77 : vector<8x256xi1>, vector<8x256xf32>
    %79 = arith.xori %66, %8 : vector<8x256xi1>
    %c192_i32 = arith.constant 192 : i32
    %80 = tpu.dynamic_rotate %47 by %c192_i32 dim 1 : vector<8x256xf32>, i32 -> vector<8x256xf32>
    %c64_i32_8 = arith.constant 64 : i32
    %81 = tpu.dynamic_rotate %47 by %c64_i32_8 dim 1 : vector<8x256xf32>, i32 -> vector<8x256xf32>
    %82 = arith.select %79, %80, %81 : vector<8x256xi1>, vector<8x256xf32>
    %83 = arith.xori %66, %8 : vector<8x256xi1>
    %c192_i32_9 = arith.constant 192 : i32
    %84 = tpu.dynamic_rotate %54 by %c192_i32_9 dim 1 : vector<8x256xf32>, i32 -> vector<8x256xf32>
    %c64_i32_10 = arith.constant 64 : i32
    %85 = tpu.dynamic_rotate %54 by %c64_i32_10 dim 1 : vector<8x256xf32>, i32 -> vector<8x256xf32>
    %86 = arith.select %83, %84, %85 : vector<8x256xi1>, vector<8x256xf32>
    %87 = arith.mulf %69, %47 : vector<8x256xf32>
    %88 = arith.mulf %72, %54 : vector<8x256xf32>
    %89 = arith.subf %87, %88 : vector<8x256xf32>
    %90 = arith.mulf %75, %82 : vector<8x256xf32>
    %91 = arith.addf %89, %90 : vector<8x256xf32>
    %92 = arith.mulf %78, %86 : vector<8x256xf32>
    %93 = arith.subf %91, %92 : vector<8x256xf32>
    %94 = arith.mulf %69, %54 : vector<8x256xf32>
    %95 = arith.mulf %72, %47 : vector<8x256xf32>
    %96 = arith.addf %94, %95 : vector<8x256xf32>
    %97 = arith.mulf %75, %86 : vector<8x256xf32>
    %98 = arith.addf %96, %97 : vector<8x256xf32>
    %99 = arith.mulf %78, %82 : vector<8x256xf32>
    %100 = arith.addf %98, %99 : vector<8x256xf32>
    %c16 = arith.constant 16 : index
    %101 = memref.load %arg1[%c16] : memref<128xf32, #tpu.memory_space<smem>>
    %c17 = arith.constant 17 : index
    %102 = memref.load %arg1[%c17] : memref<128xf32, #tpu.memory_space<smem>>
    %c18 = arith.constant 18 : index
    %103 = memref.load %arg1[%c18] : memref<128xf32, #tpu.memory_space<smem>>
    %c19 = arith.constant 19 : index
    %104 = memref.load %arg1[%c19] : memref<128xf32, #tpu.memory_space<smem>>
    %c20 = arith.constant 20 : index
    %105 = memref.load %arg1[%c20] : memref<128xf32, #tpu.memory_space<smem>>
    %c21 = arith.constant 21 : index
    %106 = memref.load %arg1[%c21] : memref<128xf32, #tpu.memory_space<smem>>
    %c22 = arith.constant 22 : index
    %107 = memref.load %arg1[%c22] : memref<128xf32, #tpu.memory_space<smem>>
    %c23 = arith.constant 23 : index
    %108 = memref.load %arg1[%c23] : memref<128xf32, #tpu.memory_space<smem>>
    %c32_i32 = arith.constant 32 : i32
    %109 = vector.broadcast %c32_i32 : i32 to vector<8x256xi32>
    %110 = arith.andi %2, %109 : vector<8x256xi32>
    %c0_i32_11 = arith.constant 0 : i32
    %111 = vector.broadcast %c0_i32_11 : i32 to vector<8x256xi32>
    %112 = arith.cmpi ne, %110, %111 : vector<8x256xi32>
    %113 = vector.broadcast %107 : f32 to vector<8x256xf32>
    %114 = vector.broadcast %101 : f32 to vector<8x256xf32>
    %115 = arith.select %112, %113, %114 : vector<8x256xi1>, vector<8x256xf32>
    %116 = vector.broadcast %108 : f32 to vector<8x256xf32>
    %117 = vector.broadcast %102 : f32 to vector<8x256xf32>
    %118 = arith.select %112, %116, %117 : vector<8x256xi1>, vector<8x256xf32>
    %119 = vector.broadcast %105 : f32 to vector<8x256xf32>
    %120 = vector.broadcast %103 : f32 to vector<8x256xf32>
    %121 = arith.select %112, %119, %120 : vector<8x256xi1>, vector<8x256xf32>
    %122 = vector.broadcast %106 : f32 to vector<8x256xf32>
    %123 = vector.broadcast %104 : f32 to vector<8x256xf32>
    %124 = arith.select %112, %122, %123 : vector<8x256xi1>, vector<8x256xf32>
    %125 = arith.xori %112, %8 : vector<8x256xi1>
    %c224_i32 = arith.constant 224 : i32
    %126 = tpu.dynamic_rotate %93 by %c224_i32 dim 1 : vector<8x256xf32>, i32 -> vector<8x256xf32>
    %c32_i32_12 = arith.constant 32 : i32
    %127 = tpu.dynamic_rotate %93 by %c32_i32_12 dim 1 : vector<8x256xf32>, i32 -> vector<8x256xf32>
    %128 = arith.select %125, %126, %127 : vector<8x256xi1>, vector<8x256xf32>
    %129 = arith.xori %112, %8 : vector<8x256xi1>
    %c224_i32_13 = arith.constant 224 : i32
    %130 = tpu.dynamic_rotate %100 by %c224_i32_13 dim 1 : vector<8x256xf32>, i32 -> vector<8x256xf32>
    %c32_i32_14 = arith.constant 32 : i32
    %131 = tpu.dynamic_rotate %100 by %c32_i32_14 dim 1 : vector<8x256xf32>, i32 -> vector<8x256xf32>
    %132 = arith.select %129, %130, %131 : vector<8x256xi1>, vector<8x256xf32>
    %133 = arith.mulf %115, %93 : vector<8x256xf32>
    %134 = arith.mulf %118, %100 : vector<8x256xf32>
    %135 = arith.subf %133, %134 : vector<8x256xf32>
    %136 = arith.mulf %121, %128 : vector<8x256xf32>
    %137 = arith.addf %135, %136 : vector<8x256xf32>
    %138 = arith.mulf %124, %132 : vector<8x256xf32>
    %139 = arith.subf %137, %138 : vector<8x256xf32>
    %140 = arith.mulf %115, %100 : vector<8x256xf32>
    %141 = arith.mulf %118, %93 : vector<8x256xf32>
    %142 = arith.addf %140, %141 : vector<8x256xf32>
    %143 = arith.mulf %121, %132 : vector<8x256xf32>
    %144 = arith.addf %142, %143 : vector<8x256xf32>
    %145 = arith.mulf %124, %128 : vector<8x256xf32>
    %146 = arith.addf %144, %145 : vector<8x256xf32>
    %c24 = arith.constant 24 : index
    %147 = memref.load %arg1[%c24] : memref<128xf32, #tpu.memory_space<smem>>
    %c25 = arith.constant 25 : index
    %148 = memref.load %arg1[%c25] : memref<128xf32, #tpu.memory_space<smem>>
    %c26 = arith.constant 26 : index
    %149 = memref.load %arg1[%c26] : memref<128xf32, #tpu.memory_space<smem>>
    %c27 = arith.constant 27 : index
    %150 = memref.load %arg1[%c27] : memref<128xf32, #tpu.memory_space<smem>>
    %c28 = arith.constant 28 : index
    %151 = memref.load %arg1[%c28] : memref<128xf32, #tpu.memory_space<smem>>
    %c29 = arith.constant 29 : index
    %152 = memref.load %arg1[%c29] : memref<128xf32, #tpu.memory_space<smem>>
    %c30 = arith.constant 30 : index
    %153 = memref.load %arg1[%c30] : memref<128xf32, #tpu.memory_space<smem>>
    %c31 = arith.constant 31 : index
    %154 = memref.load %arg1[%c31] : memref<128xf32, #tpu.memory_space<smem>>
    %c16_i32 = arith.constant 16 : i32
    %155 = vector.broadcast %c16_i32 : i32 to vector<8x256xi32>
    %156 = arith.andi %2, %155 : vector<8x256xi32>
    %c0_i32_15 = arith.constant 0 : i32
    %157 = vector.broadcast %c0_i32_15 : i32 to vector<8x256xi32>
    %158 = arith.cmpi ne, %156, %157 : vector<8x256xi32>
    %159 = vector.broadcast %153 : f32 to vector<8x256xf32>
    %160 = vector.broadcast %147 : f32 to vector<8x256xf32>
    %161 = arith.select %158, %159, %160 : vector<8x256xi1>, vector<8x256xf32>
    %162 = vector.broadcast %154 : f32 to vector<8x256xf32>
    %163 = vector.broadcast %148 : f32 to vector<8x256xf32>
    %164 = arith.select %158, %162, %163 : vector<8x256xi1>, vector<8x256xf32>
    %165 = vector.broadcast %151 : f32 to vector<8x256xf32>
    %166 = vector.broadcast %149 : f32 to vector<8x256xf32>
    %167 = arith.select %158, %165, %166 : vector<8x256xi1>, vector<8x256xf32>
    %168 = vector.broadcast %152 : f32 to vector<8x256xf32>
    %169 = vector.broadcast %150 : f32 to vector<8x256xf32>
    %170 = arith.select %158, %168, %169 : vector<8x256xi1>, vector<8x256xf32>
    %171 = arith.xori %158, %8 : vector<8x256xi1>
    %c240_i32 = arith.constant 240 : i32
    %172 = tpu.dynamic_rotate %139 by %c240_i32 dim 1 : vector<8x256xf32>, i32 -> vector<8x256xf32>
    %c16_i32_16 = arith.constant 16 : i32
    %173 = tpu.dynamic_rotate %139 by %c16_i32_16 dim 1 : vector<8x256xf32>, i32 -> vector<8x256xf32>
    %174 = arith.select %171, %172, %173 : vector<8x256xi1>, vector<8x256xf32>
    %175 = arith.xori %158, %8 : vector<8x256xi1>
    %c240_i32_17 = arith.constant 240 : i32
    %176 = tpu.dynamic_rotate %146 by %c240_i32_17 dim 1 : vector<8x256xf32>, i32 -> vector<8x256xf32>
    %c16_i32_18 = arith.constant 16 : i32
    %177 = tpu.dynamic_rotate %146 by %c16_i32_18 dim 1 : vector<8x256xf32>, i32 -> vector<8x256xf32>
    %178 = arith.select %175, %176, %177 : vector<8x256xi1>, vector<8x256xf32>
    %179 = arith.mulf %161, %139 : vector<8x256xf32>
    %180 = arith.mulf %164, %146 : vector<8x256xf32>
    %181 = arith.subf %179, %180 : vector<8x256xf32>
    %182 = arith.mulf %167, %174 : vector<8x256xf32>
    %183 = arith.addf %181, %182 : vector<8x256xf32>
    %184 = arith.mulf %170, %178 : vector<8x256xf32>
    %185 = arith.subf %183, %184 : vector<8x256xf32>
    %186 = arith.mulf %161, %146 : vector<8x256xf32>
    %187 = arith.mulf %164, %139 : vector<8x256xf32>
    %188 = arith.addf %186, %187 : vector<8x256xf32>
    %189 = arith.mulf %167, %178 : vector<8x256xf32>
    %190 = arith.addf %188, %189 : vector<8x256xf32>
    %191 = arith.mulf %170, %174 : vector<8x256xf32>
    %192 = arith.addf %190, %191 : vector<8x256xf32>
    %c32 = arith.constant 32 : index
    %193 = memref.load %arg1[%c32] : memref<128xf32, #tpu.memory_space<smem>>
    %c33 = arith.constant 33 : index
    %194 = memref.load %arg1[%c33] : memref<128xf32, #tpu.memory_space<smem>>
    %c34 = arith.constant 34 : index
    %195 = memref.load %arg1[%c34] : memref<128xf32, #tpu.memory_space<smem>>
    %c35 = arith.constant 35 : index
    %196 = memref.load %arg1[%c35] : memref<128xf32, #tpu.memory_space<smem>>
    %c36 = arith.constant 36 : index
    %197 = memref.load %arg1[%c36] : memref<128xf32, #tpu.memory_space<smem>>
    %c37 = arith.constant 37 : index
    %198 = memref.load %arg1[%c37] : memref<128xf32, #tpu.memory_space<smem>>
    %c38 = arith.constant 38 : index
    %199 = memref.load %arg1[%c38] : memref<128xf32, #tpu.memory_space<smem>>
    %c39 = arith.constant 39 : index
    %200 = memref.load %arg1[%c39] : memref<128xf32, #tpu.memory_space<smem>>
    %c8_i32 = arith.constant 8 : i32
    %201 = vector.broadcast %c8_i32 : i32 to vector<8x256xi32>
    %202 = arith.andi %2, %201 : vector<8x256xi32>
    %c0_i32_19 = arith.constant 0 : i32
    %203 = vector.broadcast %c0_i32_19 : i32 to vector<8x256xi32>
    %204 = arith.cmpi ne, %202, %203 : vector<8x256xi32>
    %205 = vector.broadcast %199 : f32 to vector<8x256xf32>
    %206 = vector.broadcast %193 : f32 to vector<8x256xf32>
    %207 = arith.select %204, %205, %206 : vector<8x256xi1>, vector<8x256xf32>
    %208 = vector.broadcast %200 : f32 to vector<8x256xf32>
    %209 = vector.broadcast %194 : f32 to vector<8x256xf32>
    %210 = arith.select %204, %208, %209 : vector<8x256xi1>, vector<8x256xf32>
    %211 = vector.broadcast %197 : f32 to vector<8x256xf32>
    %212 = vector.broadcast %195 : f32 to vector<8x256xf32>
    %213 = arith.select %204, %211, %212 : vector<8x256xi1>, vector<8x256xf32>
    %214 = vector.broadcast %198 : f32 to vector<8x256xf32>
    %215 = vector.broadcast %196 : f32 to vector<8x256xf32>
    %216 = arith.select %204, %214, %215 : vector<8x256xi1>, vector<8x256xf32>
    %217 = arith.xori %204, %8 : vector<8x256xi1>
    %c248_i32 = arith.constant 248 : i32
    %218 = tpu.dynamic_rotate %185 by %c248_i32 dim 1 : vector<8x256xf32>, i32 -> vector<8x256xf32>
    %c8_i32_20 = arith.constant 8 : i32
    %219 = tpu.dynamic_rotate %185 by %c8_i32_20 dim 1 : vector<8x256xf32>, i32 -> vector<8x256xf32>
    %220 = arith.select %217, %218, %219 : vector<8x256xi1>, vector<8x256xf32>
    %221 = arith.xori %204, %8 : vector<8x256xi1>
    %c248_i32_21 = arith.constant 248 : i32
    %222 = tpu.dynamic_rotate %192 by %c248_i32_21 dim 1 : vector<8x256xf32>, i32 -> vector<8x256xf32>
    %c8_i32_22 = arith.constant 8 : i32
    %223 = tpu.dynamic_rotate %192 by %c8_i32_22 dim 1 : vector<8x256xf32>, i32 -> vector<8x256xf32>
    %224 = arith.select %221, %222, %223 : vector<8x256xi1>, vector<8x256xf32>
    %225 = arith.mulf %207, %185 : vector<8x256xf32>
    %226 = arith.mulf %210, %192 : vector<8x256xf32>
    %227 = arith.subf %225, %226 : vector<8x256xf32>
    %228 = arith.mulf %213, %220 : vector<8x256xf32>
    %229 = arith.addf %227, %228 : vector<8x256xf32>
    %230 = arith.mulf %216, %224 : vector<8x256xf32>
    %231 = arith.subf %229, %230 : vector<8x256xf32>
    %232 = arith.mulf %207, %192 : vector<8x256xf32>
    %233 = arith.mulf %210, %185 : vector<8x256xf32>
    %234 = arith.addf %232, %233 : vector<8x256xf32>
    %235 = arith.mulf %213, %224 : vector<8x256xf32>
    %236 = arith.addf %234, %235 : vector<8x256xf32>
    %237 = arith.mulf %216, %220 : vector<8x256xf32>
    %238 = arith.addf %236, %237 : vector<8x256xf32>
    %c40 = arith.constant 40 : index
    %239 = memref.load %arg1[%c40] : memref<128xf32, #tpu.memory_space<smem>>
    %c41 = arith.constant 41 : index
    %240 = memref.load %arg1[%c41] : memref<128xf32, #tpu.memory_space<smem>>
    %c42 = arith.constant 42 : index
    %241 = memref.load %arg1[%c42] : memref<128xf32, #tpu.memory_space<smem>>
    %c43 = arith.constant 43 : index
    %242 = memref.load %arg1[%c43] : memref<128xf32, #tpu.memory_space<smem>>
    %c44 = arith.constant 44 : index
    %243 = memref.load %arg1[%c44] : memref<128xf32, #tpu.memory_space<smem>>
    %c45 = arith.constant 45 : index
    %244 = memref.load %arg1[%c45] : memref<128xf32, #tpu.memory_space<smem>>
    %c46 = arith.constant 46 : index
    %245 = memref.load %arg1[%c46] : memref<128xf32, #tpu.memory_space<smem>>
    %c47 = arith.constant 47 : index
    %246 = memref.load %arg1[%c47] : memref<128xf32, #tpu.memory_space<smem>>
    %c4_i32 = arith.constant 4 : i32
    %247 = vector.broadcast %c4_i32 : i32 to vector<8x256xi32>
    %248 = arith.andi %2, %247 : vector<8x256xi32>
    %c0_i32_23 = arith.constant 0 : i32
    %249 = vector.broadcast %c0_i32_23 : i32 to vector<8x256xi32>
    %250 = arith.cmpi ne, %248, %249 : vector<8x256xi32>
    %251 = vector.broadcast %245 : f32 to vector<8x256xf32>
    %252 = vector.broadcast %239 : f32 to vector<8x256xf32>
    %253 = arith.select %250, %251, %252 : vector<8x256xi1>, vector<8x256xf32>
    %254 = vector.broadcast %246 : f32 to vector<8x256xf32>
    %255 = vector.broadcast %240 : f32 to vector<8x256xf32>
    %256 = arith.select %250, %254, %255 : vector<8x256xi1>, vector<8x256xf32>
    %257 = vector.broadcast %243 : f32 to vector<8x256xf32>
    %258 = vector.broadcast %241 : f32 to vector<8x256xf32>
    %259 = arith.select %250, %257, %258 : vector<8x256xi1>, vector<8x256xf32>
    %260 = vector.broadcast %244 : f32 to vector<8x256xf32>
    %261 = vector.broadcast %242 : f32 to vector<8x256xf32>
    %262 = arith.select %250, %260, %261 : vector<8x256xi1>, vector<8x256xf32>
    %263 = arith.xori %250, %8 : vector<8x256xi1>
    %c252_i32 = arith.constant 252 : i32
    %264 = tpu.dynamic_rotate %231 by %c252_i32 dim 1 : vector<8x256xf32>, i32 -> vector<8x256xf32>
    %c4_i32_24 = arith.constant 4 : i32
    %265 = tpu.dynamic_rotate %231 by %c4_i32_24 dim 1 : vector<8x256xf32>, i32 -> vector<8x256xf32>
    %266 = arith.select %263, %264, %265 : vector<8x256xi1>, vector<8x256xf32>
    %267 = arith.xori %250, %8 : vector<8x256xi1>
    %c252_i32_25 = arith.constant 252 : i32
    %268 = tpu.dynamic_rotate %238 by %c252_i32_25 dim 1 : vector<8x256xf32>, i32 -> vector<8x256xf32>
    %c4_i32_26 = arith.constant 4 : i32
    %269 = tpu.dynamic_rotate %238 by %c4_i32_26 dim 1 : vector<8x256xf32>, i32 -> vector<8x256xf32>
    %270 = arith.select %267, %268, %269 : vector<8x256xi1>, vector<8x256xf32>
    %271 = arith.mulf %253, %231 : vector<8x256xf32>
    %272 = arith.mulf %256, %238 : vector<8x256xf32>
    %273 = arith.subf %271, %272 : vector<8x256xf32>
    %274 = arith.mulf %259, %266 : vector<8x256xf32>
    %275 = arith.addf %273, %274 : vector<8x256xf32>
    %276 = arith.mulf %262, %270 : vector<8x256xf32>
    %277 = arith.subf %275, %276 : vector<8x256xf32>
    %278 = arith.mulf %253, %238 : vector<8x256xf32>
    %279 = arith.mulf %256, %231 : vector<8x256xf32>
    %280 = arith.addf %278, %279 : vector<8x256xf32>
    %281 = arith.mulf %259, %270 : vector<8x256xf32>
    %282 = arith.addf %280, %281 : vector<8x256xf32>
    %283 = arith.mulf %262, %266 : vector<8x256xf32>
    %284 = arith.addf %282, %283 : vector<8x256xf32>
    %c48 = arith.constant 48 : index
    %285 = memref.load %arg1[%c48] : memref<128xf32, #tpu.memory_space<smem>>
    %c49 = arith.constant 49 : index
    %286 = memref.load %arg1[%c49] : memref<128xf32, #tpu.memory_space<smem>>
    %c50 = arith.constant 50 : index
    %287 = memref.load %arg1[%c50] : memref<128xf32, #tpu.memory_space<smem>>
    %c51 = arith.constant 51 : index
    %288 = memref.load %arg1[%c51] : memref<128xf32, #tpu.memory_space<smem>>
    %c52 = arith.constant 52 : index
    %289 = memref.load %arg1[%c52] : memref<128xf32, #tpu.memory_space<smem>>
    %c53 = arith.constant 53 : index
    %290 = memref.load %arg1[%c53] : memref<128xf32, #tpu.memory_space<smem>>
    %c54 = arith.constant 54 : index
    %291 = memref.load %arg1[%c54] : memref<128xf32, #tpu.memory_space<smem>>
    %c55 = arith.constant 55 : index
    %292 = memref.load %arg1[%c55] : memref<128xf32, #tpu.memory_space<smem>>
    %c2_i32 = arith.constant 2 : i32
    %293 = vector.broadcast %c2_i32 : i32 to vector<8x256xi32>
    %294 = arith.andi %2, %293 : vector<8x256xi32>
    %c0_i32_27 = arith.constant 0 : i32
    %295 = vector.broadcast %c0_i32_27 : i32 to vector<8x256xi32>
    %296 = arith.cmpi ne, %294, %295 : vector<8x256xi32>
    %297 = vector.broadcast %291 : f32 to vector<8x256xf32>
    %298 = vector.broadcast %285 : f32 to vector<8x256xf32>
    %299 = arith.select %296, %297, %298 : vector<8x256xi1>, vector<8x256xf32>
    %300 = vector.broadcast %292 : f32 to vector<8x256xf32>
    %301 = vector.broadcast %286 : f32 to vector<8x256xf32>
    %302 = arith.select %296, %300, %301 : vector<8x256xi1>, vector<8x256xf32>
    %303 = vector.broadcast %289 : f32 to vector<8x256xf32>
    %304 = vector.broadcast %287 : f32 to vector<8x256xf32>
    %305 = arith.select %296, %303, %304 : vector<8x256xi1>, vector<8x256xf32>
    %306 = vector.broadcast %290 : f32 to vector<8x256xf32>
    %307 = vector.broadcast %288 : f32 to vector<8x256xf32>
    %308 = arith.select %296, %306, %307 : vector<8x256xi1>, vector<8x256xf32>
    %309 = arith.xori %296, %8 : vector<8x256xi1>
    %c254_i32 = arith.constant 254 : i32
    %310 = tpu.dynamic_rotate %277 by %c254_i32 dim 1 : vector<8x256xf32>, i32 -> vector<8x256xf32>
    %c2_i32_28 = arith.constant 2 : i32
    %311 = tpu.dynamic_rotate %277 by %c2_i32_28 dim 1 : vector<8x256xf32>, i32 -> vector<8x256xf32>
    %312 = arith.select %309, %310, %311 : vector<8x256xi1>, vector<8x256xf32>
    %313 = arith.xori %296, %8 : vector<8x256xi1>
    %c254_i32_29 = arith.constant 254 : i32
    %314 = tpu.dynamic_rotate %284 by %c254_i32_29 dim 1 : vector<8x256xf32>, i32 -> vector<8x256xf32>
    %c2_i32_30 = arith.constant 2 : i32
    %315 = tpu.dynamic_rotate %284 by %c2_i32_30 dim 1 : vector<8x256xf32>, i32 -> vector<8x256xf32>
    %316 = arith.select %313, %314, %315 : vector<8x256xi1>, vector<8x256xf32>
    %317 = arith.mulf %299, %277 : vector<8x256xf32>
    %318 = arith.mulf %302, %284 : vector<8x256xf32>
    %319 = arith.subf %317, %318 : vector<8x256xf32>
    %320 = arith.mulf %305, %312 : vector<8x256xf32>
    %321 = arith.addf %319, %320 : vector<8x256xf32>
    %322 = arith.mulf %308, %316 : vector<8x256xf32>
    %323 = arith.subf %321, %322 : vector<8x256xf32>
    %324 = arith.mulf %299, %284 : vector<8x256xf32>
    %325 = arith.mulf %302, %277 : vector<8x256xf32>
    %326 = arith.addf %324, %325 : vector<8x256xf32>
    %327 = arith.mulf %305, %316 : vector<8x256xf32>
    %328 = arith.addf %326, %327 : vector<8x256xf32>
    %329 = arith.mulf %308, %312 : vector<8x256xf32>
    %330 = arith.addf %328, %329 : vector<8x256xf32>
    %c56 = arith.constant 56 : index
    %331 = memref.load %arg1[%c56] : memref<128xf32, #tpu.memory_space<smem>>
    %c57 = arith.constant 57 : index
    %332 = memref.load %arg1[%c57] : memref<128xf32, #tpu.memory_space<smem>>
    %c58 = arith.constant 58 : index
    %333 = memref.load %arg1[%c58] : memref<128xf32, #tpu.memory_space<smem>>
    %c59 = arith.constant 59 : index
    %334 = memref.load %arg1[%c59] : memref<128xf32, #tpu.memory_space<smem>>
    %c60 = arith.constant 60 : index
    %335 = memref.load %arg1[%c60] : memref<128xf32, #tpu.memory_space<smem>>
    %c61 = arith.constant 61 : index
    %336 = memref.load %arg1[%c61] : memref<128xf32, #tpu.memory_space<smem>>
    %c62 = arith.constant 62 : index
    %337 = memref.load %arg1[%c62] : memref<128xf32, #tpu.memory_space<smem>>
    %c63 = arith.constant 63 : index
    %338 = memref.load %arg1[%c63] : memref<128xf32, #tpu.memory_space<smem>>
    %c1_i32_31 = arith.constant 1 : i32
    %339 = vector.broadcast %c1_i32_31 : i32 to vector<8x256xi32>
    %340 = arith.andi %2, %339 : vector<8x256xi32>
    %c0_i32_32 = arith.constant 0 : i32
    %341 = vector.broadcast %c0_i32_32 : i32 to vector<8x256xi32>
    %342 = arith.cmpi ne, %340, %341 : vector<8x256xi32>
    %343 = vector.broadcast %337 : f32 to vector<8x256xf32>
    %344 = vector.broadcast %331 : f32 to vector<8x256xf32>
    %345 = arith.select %342, %343, %344 : vector<8x256xi1>, vector<8x256xf32>
    %346 = vector.broadcast %338 : f32 to vector<8x256xf32>
    %347 = vector.broadcast %332 : f32 to vector<8x256xf32>
    %348 = arith.select %342, %346, %347 : vector<8x256xi1>, vector<8x256xf32>
    %349 = vector.broadcast %335 : f32 to vector<8x256xf32>
    %350 = vector.broadcast %333 : f32 to vector<8x256xf32>
    %351 = arith.select %342, %349, %350 : vector<8x256xi1>, vector<8x256xf32>
    %352 = vector.broadcast %336 : f32 to vector<8x256xf32>
    %353 = vector.broadcast %334 : f32 to vector<8x256xf32>
    %354 = arith.select %342, %352, %353 : vector<8x256xi1>, vector<8x256xf32>
    %355 = arith.xori %342, %8 : vector<8x256xi1>
    %c255_i32_33 = arith.constant 255 : i32
    %356 = tpu.dynamic_rotate %323 by %c255_i32_33 dim 1 : vector<8x256xf32>, i32 -> vector<8x256xf32>
    %c1_i32_34 = arith.constant 1 : i32
    %357 = tpu.dynamic_rotate %323 by %c1_i32_34 dim 1 : vector<8x256xf32>, i32 -> vector<8x256xf32>
    %358 = arith.select %355, %356, %357 : vector<8x256xi1>, vector<8x256xf32>
    %359 = arith.xori %342, %8 : vector<8x256xi1>
    %c255_i32_35 = arith.constant 255 : i32
    %360 = tpu.dynamic_rotate %330 by %c255_i32_35 dim 1 : vector<8x256xf32>, i32 -> vector<8x256xf32>
    %c1_i32_36 = arith.constant 1 : i32
    %361 = tpu.dynamic_rotate %330 by %c1_i32_36 dim 1 : vector<8x256xf32>, i32 -> vector<8x256xf32>
    %362 = arith.select %359, %360, %361 : vector<8x256xi1>, vector<8x256xf32>
    %363 = arith.mulf %345, %323 : vector<8x256xf32>
    %364 = arith.mulf %348, %330 : vector<8x256xf32>
    %365 = arith.subf %363, %364 : vector<8x256xf32>
    %366 = arith.mulf %351, %358 : vector<8x256xf32>
    %367 = arith.addf %365, %366 : vector<8x256xf32>
    %368 = arith.mulf %354, %362 : vector<8x256xf32>
    %369 = arith.subf %367, %368 : vector<8x256xf32>
    %370 = arith.mulf %345, %330 : vector<8x256xf32>
    %371 = arith.mulf %348, %323 : vector<8x256xf32>
    %372 = arith.addf %370, %371 : vector<8x256xf32>
    %373 = arith.mulf %351, %362 : vector<8x256xf32>
    %374 = arith.addf %372, %373 : vector<8x256xf32>
    %375 = arith.mulf %354, %358 : vector<8x256xf32>
    %376 = arith.addf %374, %375 : vector<8x256xf32>
    %c128_i32_37 = arith.constant 128 : i32
    %377 = vector.broadcast %c128_i32_37 : i32 to vector<8x256xi32>
    %378 = arith.andi %2, %377 : vector<8x256xi32>
    %c0_i32_38 = arith.constant 0 : i32
    %379 = vector.broadcast %c0_i32_38 : i32 to vector<8x256xi32>
    %380 = arith.cmpi ne, %378, %379 : vector<8x256xi32>
    %c64_i32_39 = arith.constant 64 : i32
    %381 = vector.broadcast %c64_i32_39 : i32 to vector<8x256xi32>
    %382 = arith.andi %2, %381 : vector<8x256xi32>
    %c0_i32_40 = arith.constant 0 : i32
    %383 = vector.broadcast %c0_i32_40 : i32 to vector<8x256xi32>
    %384 = arith.cmpi ne, %382, %383 : vector<8x256xi32>
    %385 = arith.xori %384, %8 : vector<8x256xi1>
    %c192_i32_41 = arith.constant 192 : i32
    %386 = tpu.dynamic_rotate %369 by %c192_i32_41 dim 1 : vector<8x256xf32>, i32 -> vector<8x256xf32>
    %c64_i32_42 = arith.constant 64 : i32
    %387 = tpu.dynamic_rotate %369 by %c64_i32_42 dim 1 : vector<8x256xf32>, i32 -> vector<8x256xf32>
    %388 = arith.select %385, %386, %387 : vector<8x256xi1>, vector<8x256xf32>
    %389 = arith.xori %384, %8 : vector<8x256xi1>
    %c192_i32_43 = arith.constant 192 : i32
    %390 = tpu.dynamic_rotate %376 by %c192_i32_43 dim 1 : vector<8x256xf32>, i32 -> vector<8x256xf32>
    %c64_i32_44 = arith.constant 64 : i32
    %391 = tpu.dynamic_rotate %376 by %c64_i32_44 dim 1 : vector<8x256xf32>, i32 -> vector<8x256xf32>
    %392 = arith.select %389, %390, %391 : vector<8x256xi1>, vector<8x256xf32>
    %393 = arith.select %380, %388, %369 : vector<8x256xi1>, vector<8x256xf32>
    %394 = arith.select %380, %392, %376 : vector<8x256xi1>, vector<8x256xf32>
    %c64_i32_45 = arith.constant 64 : i32
    %395 = vector.broadcast %c64_i32_45 : i32 to vector<8x256xi32>
    %396 = arith.andi %2, %395 : vector<8x256xi32>
    %c0_i32_46 = arith.constant 0 : i32
    %397 = vector.broadcast %c0_i32_46 : i32 to vector<8x256xi32>
    %398 = arith.cmpi ne, %396, %397 : vector<8x256xi32>
    %c32_i32_47 = arith.constant 32 : i32
    %399 = vector.broadcast %c32_i32_47 : i32 to vector<8x256xi32>
    %400 = arith.andi %2, %399 : vector<8x256xi32>
    %c0_i32_48 = arith.constant 0 : i32
    %401 = vector.broadcast %c0_i32_48 : i32 to vector<8x256xi32>
    %402 = arith.cmpi ne, %400, %401 : vector<8x256xi32>
    %403 = arith.xori %402, %8 : vector<8x256xi1>
    %c224_i32_49 = arith.constant 224 : i32
    %404 = tpu.dynamic_rotate %393 by %c224_i32_49 dim 1 : vector<8x256xf32>, i32 -> vector<8x256xf32>
    %c32_i32_50 = arith.constant 32 : i32
    %405 = tpu.dynamic_rotate %393 by %c32_i32_50 dim 1 : vector<8x256xf32>, i32 -> vector<8x256xf32>
    %406 = arith.select %403, %404, %405 : vector<8x256xi1>, vector<8x256xf32>
    %407 = arith.xori %402, %8 : vector<8x256xi1>
    %c224_i32_51 = arith.constant 224 : i32
    %408 = tpu.dynamic_rotate %394 by %c224_i32_51 dim 1 : vector<8x256xf32>, i32 -> vector<8x256xf32>
    %c32_i32_52 = arith.constant 32 : i32
    %409 = tpu.dynamic_rotate %394 by %c32_i32_52 dim 1 : vector<8x256xf32>, i32 -> vector<8x256xf32>
    %410 = arith.select %407, %408, %409 : vector<8x256xi1>, vector<8x256xf32>
    %411 = arith.select %398, %406, %393 : vector<8x256xi1>, vector<8x256xf32>
    %412 = arith.select %398, %410, %394 : vector<8x256xi1>, vector<8x256xf32>
    %c32_i32_53 = arith.constant 32 : i32
    %413 = vector.broadcast %c32_i32_53 : i32 to vector<8x256xi32>
    %414 = arith.andi %2, %413 : vector<8x256xi32>
    %c0_i32_54 = arith.constant 0 : i32
    %415 = vector.broadcast %c0_i32_54 : i32 to vector<8x256xi32>
    %416 = arith.cmpi ne, %414, %415 : vector<8x256xi32>
    %c16_i32_55 = arith.constant 16 : i32
    %417 = vector.broadcast %c16_i32_55 : i32 to vector<8x256xi32>
    %418 = arith.andi %2, %417 : vector<8x256xi32>
    %c0_i32_56 = arith.constant 0 : i32
    %419 = vector.broadcast %c0_i32_56 : i32 to vector<8x256xi32>
    %420 = arith.cmpi ne, %418, %419 : vector<8x256xi32>
    %421 = arith.xori %420, %8 : vector<8x256xi1>
    %c240_i32_57 = arith.constant 240 : i32
    %422 = tpu.dynamic_rotate %411 by %c240_i32_57 dim 1 : vector<8x256xf32>, i32 -> vector<8x256xf32>
    %c16_i32_58 = arith.constant 16 : i32
    %423 = tpu.dynamic_rotate %411 by %c16_i32_58 dim 1 : vector<8x256xf32>, i32 -> vector<8x256xf32>
    %424 = arith.select %421, %422, %423 : vector<8x256xi1>, vector<8x256xf32>
    %425 = arith.xori %420, %8 : vector<8x256xi1>
    %c240_i32_59 = arith.constant 240 : i32
    %426 = tpu.dynamic_rotate %412 by %c240_i32_59 dim 1 : vector<8x256xf32>, i32 -> vector<8x256xf32>
    %c16_i32_60 = arith.constant 16 : i32
    %427 = tpu.dynamic_rotate %412 by %c16_i32_60 dim 1 : vector<8x256xf32>, i32 -> vector<8x256xf32>
    %428 = arith.select %425, %426, %427 : vector<8x256xi1>, vector<8x256xf32>
    %429 = arith.select %416, %424, %411 : vector<8x256xi1>, vector<8x256xf32>
    %430 = arith.select %416, %428, %412 : vector<8x256xi1>, vector<8x256xf32>
    %c16_i32_61 = arith.constant 16 : i32
    %431 = vector.broadcast %c16_i32_61 : i32 to vector<8x256xi32>
    %432 = arith.andi %2, %431 : vector<8x256xi32>
    %c0_i32_62 = arith.constant 0 : i32
    %433 = vector.broadcast %c0_i32_62 : i32 to vector<8x256xi32>
    %434 = arith.cmpi ne, %432, %433 : vector<8x256xi32>
    %c8_i32_63 = arith.constant 8 : i32
    %435 = vector.broadcast %c8_i32_63 : i32 to vector<8x256xi32>
    %436 = arith.andi %2, %435 : vector<8x256xi32>
    %c0_i32_64 = arith.constant 0 : i32
    %437 = vector.broadcast %c0_i32_64 : i32 to vector<8x256xi32>
    %438 = arith.cmpi ne, %436, %437 : vector<8x256xi32>
    %439 = arith.xori %438, %8 : vector<8x256xi1>
    %c248_i32_65 = arith.constant 248 : i32
    %440 = tpu.dynamic_rotate %429 by %c248_i32_65 dim 1 : vector<8x256xf32>, i32 -> vector<8x256xf32>
    %c8_i32_66 = arith.constant 8 : i32
    %441 = tpu.dynamic_rotate %429 by %c8_i32_66 dim 1 : vector<8x256xf32>, i32 -> vector<8x256xf32>
    %442 = arith.select %439, %440, %441 : vector<8x256xi1>, vector<8x256xf32>
    %443 = arith.xori %438, %8 : vector<8x256xi1>
    %c248_i32_67 = arith.constant 248 : i32
    %444 = tpu.dynamic_rotate %430 by %c248_i32_67 dim 1 : vector<8x256xf32>, i32 -> vector<8x256xf32>
    %c8_i32_68 = arith.constant 8 : i32
    %445 = tpu.dynamic_rotate %430 by %c8_i32_68 dim 1 : vector<8x256xf32>, i32 -> vector<8x256xf32>
    %446 = arith.select %443, %444, %445 : vector<8x256xi1>, vector<8x256xf32>
    %447 = arith.select %434, %442, %429 : vector<8x256xi1>, vector<8x256xf32>
    %448 = arith.select %434, %446, %430 : vector<8x256xi1>, vector<8x256xf32>
    %c8_i32_69 = arith.constant 8 : i32
    %449 = vector.broadcast %c8_i32_69 : i32 to vector<8x256xi32>
    %450 = arith.andi %2, %449 : vector<8x256xi32>
    %c0_i32_70 = arith.constant 0 : i32
    %451 = vector.broadcast %c0_i32_70 : i32 to vector<8x256xi32>
    %452 = arith.cmpi ne, %450, %451 : vector<8x256xi32>
    %c4_i32_71 = arith.constant 4 : i32
    %453 = vector.broadcast %c4_i32_71 : i32 to vector<8x256xi32>
    %454 = arith.andi %2, %453 : vector<8x256xi32>
    %c0_i32_72 = arith.constant 0 : i32
    %455 = vector.broadcast %c0_i32_72 : i32 to vector<8x256xi32>
    %456 = arith.cmpi ne, %454, %455 : vector<8x256xi32>
    %457 = arith.xori %456, %8 : vector<8x256xi1>
    %c252_i32_73 = arith.constant 252 : i32
    %458 = tpu.dynamic_rotate %447 by %c252_i32_73 dim 1 : vector<8x256xf32>, i32 -> vector<8x256xf32>
    %c4_i32_74 = arith.constant 4 : i32
    %459 = tpu.dynamic_rotate %447 by %c4_i32_74 dim 1 : vector<8x256xf32>, i32 -> vector<8x256xf32>
    %460 = arith.select %457, %458, %459 : vector<8x256xi1>, vector<8x256xf32>
    %461 = arith.xori %456, %8 : vector<8x256xi1>
    %c252_i32_75 = arith.constant 252 : i32
    %462 = tpu.dynamic_rotate %448 by %c252_i32_75 dim 1 : vector<8x256xf32>, i32 -> vector<8x256xf32>
    %c4_i32_76 = arith.constant 4 : i32
    %463 = tpu.dynamic_rotate %448 by %c4_i32_76 dim 1 : vector<8x256xf32>, i32 -> vector<8x256xf32>
    %464 = arith.select %461, %462, %463 : vector<8x256xi1>, vector<8x256xf32>
    %465 = arith.select %452, %460, %447 : vector<8x256xi1>, vector<8x256xf32>
    %466 = arith.select %452, %464, %448 : vector<8x256xi1>, vector<8x256xf32>
    %c4_i32_77 = arith.constant 4 : i32
    %467 = vector.broadcast %c4_i32_77 : i32 to vector<8x256xi32>
    %468 = arith.andi %2, %467 : vector<8x256xi32>
    %c0_i32_78 = arith.constant 0 : i32
    %469 = vector.broadcast %c0_i32_78 : i32 to vector<8x256xi32>
    %470 = arith.cmpi ne, %468, %469 : vector<8x256xi32>
    %c2_i32_79 = arith.constant 2 : i32
    %471 = vector.broadcast %c2_i32_79 : i32 to vector<8x256xi32>
    %472 = arith.andi %2, %471 : vector<8x256xi32>
    %c0_i32_80 = arith.constant 0 : i32
    %473 = vector.broadcast %c0_i32_80 : i32 to vector<8x256xi32>
    %474 = arith.cmpi ne, %472, %473 : vector<8x256xi32>
    %475 = arith.xori %474, %8 : vector<8x256xi1>
    %c254_i32_81 = arith.constant 254 : i32
    %476 = tpu.dynamic_rotate %465 by %c254_i32_81 dim 1 : vector<8x256xf32>, i32 -> vector<8x256xf32>
    %c2_i32_82 = arith.constant 2 : i32
    %477 = tpu.dynamic_rotate %465 by %c2_i32_82 dim 1 : vector<8x256xf32>, i32 -> vector<8x256xf32>
    %478 = arith.select %475, %476, %477 : vector<8x256xi1>, vector<8x256xf32>
    %479 = arith.xori %474, %8 : vector<8x256xi1>
    %c254_i32_83 = arith.constant 254 : i32
    %480 = tpu.dynamic_rotate %466 by %c254_i32_83 dim 1 : vector<8x256xf32>, i32 -> vector<8x256xf32>
    %c2_i32_84 = arith.constant 2 : i32
    %481 = tpu.dynamic_rotate %466 by %c2_i32_84 dim 1 : vector<8x256xf32>, i32 -> vector<8x256xf32>
    %482 = arith.select %479, %480, %481 : vector<8x256xi1>, vector<8x256xf32>
    %483 = arith.select %470, %478, %465 : vector<8x256xi1>, vector<8x256xf32>
    %484 = arith.select %470, %482, %466 : vector<8x256xi1>, vector<8x256xf32>
    %c2_i32_85 = arith.constant 2 : i32
    %485 = vector.broadcast %c2_i32_85 : i32 to vector<8x256xi32>
    %486 = arith.andi %2, %485 : vector<8x256xi32>
    %c0_i32_86 = arith.constant 0 : i32
    %487 = vector.broadcast %c0_i32_86 : i32 to vector<8x256xi32>
    %488 = arith.cmpi ne, %486, %487 : vector<8x256xi32>
    %c1_i32_87 = arith.constant 1 : i32
    %489 = vector.broadcast %c1_i32_87 : i32 to vector<8x256xi32>
    %490 = arith.andi %2, %489 : vector<8x256xi32>
    %c0_i32_88 = arith.constant 0 : i32
    %491 = vector.broadcast %c0_i32_88 : i32 to vector<8x256xi32>
    %492 = arith.cmpi ne, %490, %491 : vector<8x256xi32>
    %493 = arith.xori %492, %8 : vector<8x256xi1>
    %c255_i32_89 = arith.constant 255 : i32
    %494 = tpu.dynamic_rotate %483 by %c255_i32_89 dim 1 : vector<8x256xf32>, i32 -> vector<8x256xf32>
    %c1_i32_90 = arith.constant 1 : i32
    %495 = tpu.dynamic_rotate %483 by %c1_i32_90 dim 1 : vector<8x256xf32>, i32 -> vector<8x256xf32>
    %496 = arith.select %493, %494, %495 : vector<8x256xi1>, vector<8x256xf32>
    %497 = arith.xori %492, %8 : vector<8x256xi1>
    %c255_i32_91 = arith.constant 255 : i32
    %498 = tpu.dynamic_rotate %484 by %c255_i32_91 dim 1 : vector<8x256xf32>, i32 -> vector<8x256xf32>
    %c1_i32_92 = arith.constant 1 : i32
    %499 = tpu.dynamic_rotate %484 by %c1_i32_92 dim 1 : vector<8x256xf32>, i32 -> vector<8x256xf32>
    %500 = arith.select %497, %498, %499 : vector<8x256xi1>, vector<8x256xf32>
    %501 = arith.select %488, %496, %483 : vector<8x256xi1>, vector<8x256xf32>
    %502 = arith.select %488, %500, %484 : vector<8x256xi1>, vector<8x256xf32>
    %c1_i32_93 = arith.constant 1 : i32
    %503 = vector.broadcast %c1_i32_93 : i32 to vector<8x256xi32>
    %504 = arith.andi %2, %503 : vector<8x256xi32>
    %c0_i32_94 = arith.constant 0 : i32
    %505 = vector.broadcast %c0_i32_94 : i32 to vector<8x256xi32>
    %506 = arith.cmpi ne, %504, %505 : vector<8x256xi32>
    %c128_i32_95 = arith.constant 128 : i32
    %507 = vector.broadcast %c128_i32_95 : i32 to vector<8x256xi32>
    %508 = arith.andi %2, %507 : vector<8x256xi32>
    %c0_i32_96 = arith.constant 0 : i32
    %509 = vector.broadcast %c0_i32_96 : i32 to vector<8x256xi32>
    %510 = arith.cmpi ne, %508, %509 : vector<8x256xi32>
    %511 = arith.xori %510, %8 : vector<8x256xi1>
    %c128_i32_97 = arith.constant 128 : i32
    %512 = tpu.dynamic_rotate %501 by %c128_i32_97 dim 1 : vector<8x256xf32>, i32 -> vector<8x256xf32>
    %c128_i32_98 = arith.constant 128 : i32
    %513 = tpu.dynamic_rotate %501 by %c128_i32_98 dim 1 : vector<8x256xf32>, i32 -> vector<8x256xf32>
    %514 = arith.select %511, %512, %513 : vector<8x256xi1>, vector<8x256xf32>
    %515 = arith.xori %510, %8 : vector<8x256xi1>
    %c128_i32_99 = arith.constant 128 : i32
    %516 = tpu.dynamic_rotate %502 by %c128_i32_99 dim 1 : vector<8x256xf32>, i32 -> vector<8x256xf32>
    %c128_i32_100 = arith.constant 128 : i32
    %517 = tpu.dynamic_rotate %502 by %c128_i32_100 dim 1 : vector<8x256xf32>, i32 -> vector<8x256xf32>
    %518 = arith.select %515, %516, %517 : vector<8x256xi1>, vector<8x256xf32>
    %519 = arith.select %506, %514, %501 : vector<8x256xi1>, vector<8x256xf32>
    %520 = arith.select %506, %518, %502 : vector<8x256xi1>, vector<8x256xf32>
    %c64 = arith.constant 64 : index
    %521 = memref.load %arg1[%c64] : memref<128xf32, #tpu.memory_space<smem>>
    %c65 = arith.constant 65 : index
    %522 = memref.load %arg1[%c65] : memref<128xf32, #tpu.memory_space<smem>>
    %c66 = arith.constant 66 : index
    %523 = memref.load %arg1[%c66] : memref<128xf32, #tpu.memory_space<smem>>
    %c67 = arith.constant 67 : index
    %524 = memref.load %arg1[%c67] : memref<128xf32, #tpu.memory_space<smem>>
    %c68 = arith.constant 68 : index
    %525 = memref.load %arg1[%c68] : memref<128xf32, #tpu.memory_space<smem>>
    %c69 = arith.constant 69 : index
    %526 = memref.load %arg1[%c69] : memref<128xf32, #tpu.memory_space<smem>>
    %c70 = arith.constant 70 : index
    %527 = memref.load %arg1[%c70] : memref<128xf32, #tpu.memory_space<smem>>
    %c71 = arith.constant 71 : index
    %528 = memref.load %arg1[%c71] : memref<128xf32, #tpu.memory_space<smem>>
    %c128_i32_101 = arith.constant 128 : i32
    %529 = vector.broadcast %c128_i32_101 : i32 to vector<8x256xi32>
    %530 = arith.andi %2, %529 : vector<8x256xi32>
    %c0_i32_102 = arith.constant 0 : i32
    %531 = vector.broadcast %c0_i32_102 : i32 to vector<8x256xi32>
    %532 = arith.cmpi ne, %530, %531 : vector<8x256xi32>
    %533 = vector.broadcast %527 : f32 to vector<8x256xf32>
    %534 = vector.broadcast %521 : f32 to vector<8x256xf32>
    %535 = arith.select %532, %533, %534 : vector<8x256xi1>, vector<8x256xf32>
    %536 = vector.broadcast %528 : f32 to vector<8x256xf32>
    %537 = vector.broadcast %522 : f32 to vector<8x256xf32>
    %538 = arith.select %532, %536, %537 : vector<8x256xi1>, vector<8x256xf32>
    %539 = vector.broadcast %525 : f32 to vector<8x256xf32>
    %540 = vector.broadcast %523 : f32 to vector<8x256xf32>
    %541 = arith.select %532, %539, %540 : vector<8x256xi1>, vector<8x256xf32>
    %542 = vector.broadcast %526 : f32 to vector<8x256xf32>
    %543 = vector.broadcast %524 : f32 to vector<8x256xf32>
    %544 = arith.select %532, %542, %543 : vector<8x256xi1>, vector<8x256xf32>
    %545 = arith.xori %532, %8 : vector<8x256xi1>
    %c128_i32_103 = arith.constant 128 : i32
    %546 = tpu.dynamic_rotate %519 by %c128_i32_103 dim 1 : vector<8x256xf32>, i32 -> vector<8x256xf32>
    %c128_i32_104 = arith.constant 128 : i32
    %547 = tpu.dynamic_rotate %519 by %c128_i32_104 dim 1 : vector<8x256xf32>, i32 -> vector<8x256xf32>
    %548 = arith.select %545, %546, %547 : vector<8x256xi1>, vector<8x256xf32>
    %549 = arith.xori %532, %8 : vector<8x256xi1>
    %c128_i32_105 = arith.constant 128 : i32
    %550 = tpu.dynamic_rotate %520 by %c128_i32_105 dim 1 : vector<8x256xf32>, i32 -> vector<8x256xf32>
    %c128_i32_106 = arith.constant 128 : i32
    %551 = tpu.dynamic_rotate %520 by %c128_i32_106 dim 1 : vector<8x256xf32>, i32 -> vector<8x256xf32>
    %552 = arith.select %549, %550, %551 : vector<8x256xi1>, vector<8x256xf32>
    %553 = arith.mulf %535, %519 : vector<8x256xf32>
    %554 = arith.mulf %538, %520 : vector<8x256xf32>
    %555 = arith.subf %553, %554 : vector<8x256xf32>
    %556 = arith.mulf %541, %548 : vector<8x256xf32>
    %557 = arith.addf %555, %556 : vector<8x256xf32>
    %558 = arith.mulf %544, %552 : vector<8x256xf32>
    %559 = arith.subf %557, %558 : vector<8x256xf32>
    %560 = arith.mulf %535, %520 : vector<8x256xf32>
    %561 = arith.mulf %538, %519 : vector<8x256xf32>
    %562 = arith.addf %560, %561 : vector<8x256xf32>
    %563 = arith.mulf %541, %552 : vector<8x256xf32>
    %564 = arith.addf %562, %563 : vector<8x256xf32>
    %565 = arith.mulf %544, %548 : vector<8x256xf32>
    %566 = arith.addf %564, %565 : vector<8x256xf32>
    %c72 = arith.constant 72 : index
    %567 = memref.load %arg1[%c72] : memref<128xf32, #tpu.memory_space<smem>>
    %c73 = arith.constant 73 : index
    %568 = memref.load %arg1[%c73] : memref<128xf32, #tpu.memory_space<smem>>
    %c74 = arith.constant 74 : index
    %569 = memref.load %arg1[%c74] : memref<128xf32, #tpu.memory_space<smem>>
    %c75 = arith.constant 75 : index
    %570 = memref.load %arg1[%c75] : memref<128xf32, #tpu.memory_space<smem>>
    %c76 = arith.constant 76 : index
    %571 = memref.load %arg1[%c76] : memref<128xf32, #tpu.memory_space<smem>>
    %c77 = arith.constant 77 : index
    %572 = memref.load %arg1[%c77] : memref<128xf32, #tpu.memory_space<smem>>
    %c78 = arith.constant 78 : index
    %573 = memref.load %arg1[%c78] : memref<128xf32, #tpu.memory_space<smem>>
    %c79 = arith.constant 79 : index
    %574 = memref.load %arg1[%c79] : memref<128xf32, #tpu.memory_space<smem>>
    %c64_i32_107 = arith.constant 64 : i32
    %575 = vector.broadcast %c64_i32_107 : i32 to vector<8x256xi32>
    %576 = arith.andi %2, %575 : vector<8x256xi32>
    %c0_i32_108 = arith.constant 0 : i32
    %577 = vector.broadcast %c0_i32_108 : i32 to vector<8x256xi32>
    %578 = arith.cmpi ne, %576, %577 : vector<8x256xi32>
    %579 = vector.broadcast %573 : f32 to vector<8x256xf32>
    %580 = vector.broadcast %567 : f32 to vector<8x256xf32>
    %581 = arith.select %578, %579, %580 : vector<8x256xi1>, vector<8x256xf32>
    %582 = vector.broadcast %574 : f32 to vector<8x256xf32>
    %583 = vector.broadcast %568 : f32 to vector<8x256xf32>
    %584 = arith.select %578, %582, %583 : vector<8x256xi1>, vector<8x256xf32>
    %585 = vector.broadcast %571 : f32 to vector<8x256xf32>
    %586 = vector.broadcast %569 : f32 to vector<8x256xf32>
    %587 = arith.select %578, %585, %586 : vector<8x256xi1>, vector<8x256xf32>
    %588 = vector.broadcast %572 : f32 to vector<8x256xf32>
    %589 = vector.broadcast %570 : f32 to vector<8x256xf32>
    %590 = arith.select %578, %588, %589 : vector<8x256xi1>, vector<8x256xf32>
    %591 = arith.xori %578, %8 : vector<8x256xi1>
    %c192_i32_109 = arith.constant 192 : i32
    %592 = tpu.dynamic_rotate %559 by %c192_i32_109 dim 1 : vector<8x256xf32>, i32 -> vector<8x256xf32>
    %c64_i32_110 = arith.constant 64 : i32
    %593 = tpu.dynamic_rotate %559 by %c64_i32_110 dim 1 : vector<8x256xf32>, i32 -> vector<8x256xf32>
    %594 = arith.select %591, %592, %593 : vector<8x256xi1>, vector<8x256xf32>
    %595 = arith.xori %578, %8 : vector<8x256xi1>
    %c192_i32_111 = arith.constant 192 : i32
    %596 = tpu.dynamic_rotate %566 by %c192_i32_111 dim 1 : vector<8x256xf32>, i32 -> vector<8x256xf32>
    %c64_i32_112 = arith.constant 64 : i32
    %597 = tpu.dynamic_rotate %566 by %c64_i32_112 dim 1 : vector<8x256xf32>, i32 -> vector<8x256xf32>
    %598 = arith.select %595, %596, %597 : vector<8x256xi1>, vector<8x256xf32>
    %599 = arith.mulf %581, %559 : vector<8x256xf32>
    %600 = arith.mulf %584, %566 : vector<8x256xf32>
    %601 = arith.subf %599, %600 : vector<8x256xf32>
    %602 = arith.mulf %587, %594 : vector<8x256xf32>
    %603 = arith.addf %601, %602 : vector<8x256xf32>
    %604 = arith.mulf %590, %598 : vector<8x256xf32>
    %605 = arith.subf %603, %604 : vector<8x256xf32>
    %606 = arith.mulf %581, %566 : vector<8x256xf32>
    %607 = arith.mulf %584, %559 : vector<8x256xf32>
    %608 = arith.addf %606, %607 : vector<8x256xf32>
    %609 = arith.mulf %587, %598 : vector<8x256xf32>
    %610 = arith.addf %608, %609 : vector<8x256xf32>
    %611 = arith.mulf %590, %594 : vector<8x256xf32>
    %612 = arith.addf %610, %611 : vector<8x256xf32>
    %c80 = arith.constant 80 : index
    %613 = memref.load %arg1[%c80] : memref<128xf32, #tpu.memory_space<smem>>
    %c81 = arith.constant 81 : index
    %614 = memref.load %arg1[%c81] : memref<128xf32, #tpu.memory_space<smem>>
    %c82 = arith.constant 82 : index
    %615 = memref.load %arg1[%c82] : memref<128xf32, #tpu.memory_space<smem>>
    %c83 = arith.constant 83 : index
    %616 = memref.load %arg1[%c83] : memref<128xf32, #tpu.memory_space<smem>>
    %c84 = arith.constant 84 : index
    %617 = memref.load %arg1[%c84] : memref<128xf32, #tpu.memory_space<smem>>
    %c85 = arith.constant 85 : index
    %618 = memref.load %arg1[%c85] : memref<128xf32, #tpu.memory_space<smem>>
    %c86 = arith.constant 86 : index
    %619 = memref.load %arg1[%c86] : memref<128xf32, #tpu.memory_space<smem>>
    %c87 = arith.constant 87 : index
    %620 = memref.load %arg1[%c87] : memref<128xf32, #tpu.memory_space<smem>>
    %c32_i32_113 = arith.constant 32 : i32
    %621 = vector.broadcast %c32_i32_113 : i32 to vector<8x256xi32>
    %622 = arith.andi %2, %621 : vector<8x256xi32>
    %c0_i32_114 = arith.constant 0 : i32
    %623 = vector.broadcast %c0_i32_114 : i32 to vector<8x256xi32>
    %624 = arith.cmpi ne, %622, %623 : vector<8x256xi32>
    %625 = vector.broadcast %619 : f32 to vector<8x256xf32>
    %626 = vector.broadcast %613 : f32 to vector<8x256xf32>
    %627 = arith.select %624, %625, %626 : vector<8x256xi1>, vector<8x256xf32>
    %628 = vector.broadcast %620 : f32 to vector<8x256xf32>
    %629 = vector.broadcast %614 : f32 to vector<8x256xf32>
    %630 = arith.select %624, %628, %629 : vector<8x256xi1>, vector<8x256xf32>
    %631 = vector.broadcast %617 : f32 to vector<8x256xf32>
    %632 = vector.broadcast %615 : f32 to vector<8x256xf32>
    %633 = arith.select %624, %631, %632 : vector<8x256xi1>, vector<8x256xf32>
    %634 = vector.broadcast %618 : f32 to vector<8x256xf32>
    %635 = vector.broadcast %616 : f32 to vector<8x256xf32>
    %636 = arith.select %624, %634, %635 : vector<8x256xi1>, vector<8x256xf32>
    %637 = arith.xori %624, %8 : vector<8x256xi1>
    %c224_i32_115 = arith.constant 224 : i32
    %638 = tpu.dynamic_rotate %605 by %c224_i32_115 dim 1 : vector<8x256xf32>, i32 -> vector<8x256xf32>
    %c32_i32_116 = arith.constant 32 : i32
    %639 = tpu.dynamic_rotate %605 by %c32_i32_116 dim 1 : vector<8x256xf32>, i32 -> vector<8x256xf32>
    %640 = arith.select %637, %638, %639 : vector<8x256xi1>, vector<8x256xf32>
    %641 = arith.xori %624, %8 : vector<8x256xi1>
    %c224_i32_117 = arith.constant 224 : i32
    %642 = tpu.dynamic_rotate %612 by %c224_i32_117 dim 1 : vector<8x256xf32>, i32 -> vector<8x256xf32>
    %c32_i32_118 = arith.constant 32 : i32
    %643 = tpu.dynamic_rotate %612 by %c32_i32_118 dim 1 : vector<8x256xf32>, i32 -> vector<8x256xf32>
    %644 = arith.select %641, %642, %643 : vector<8x256xi1>, vector<8x256xf32>
    %645 = arith.mulf %627, %605 : vector<8x256xf32>
    %646 = arith.mulf %630, %612 : vector<8x256xf32>
    %647 = arith.subf %645, %646 : vector<8x256xf32>
    %648 = arith.mulf %633, %640 : vector<8x256xf32>
    %649 = arith.addf %647, %648 : vector<8x256xf32>
    %650 = arith.mulf %636, %644 : vector<8x256xf32>
    %651 = arith.subf %649, %650 : vector<8x256xf32>
    %652 = arith.mulf %627, %612 : vector<8x256xf32>
    %653 = arith.mulf %630, %605 : vector<8x256xf32>
    %654 = arith.addf %652, %653 : vector<8x256xf32>
    %655 = arith.mulf %633, %644 : vector<8x256xf32>
    %656 = arith.addf %654, %655 : vector<8x256xf32>
    %657 = arith.mulf %636, %640 : vector<8x256xf32>
    %658 = arith.addf %656, %657 : vector<8x256xf32>
    %c88 = arith.constant 88 : index
    %659 = memref.load %arg1[%c88] : memref<128xf32, #tpu.memory_space<smem>>
    %c89 = arith.constant 89 : index
    %660 = memref.load %arg1[%c89] : memref<128xf32, #tpu.memory_space<smem>>
    %c90 = arith.constant 90 : index
    %661 = memref.load %arg1[%c90] : memref<128xf32, #tpu.memory_space<smem>>
    %c91 = arith.constant 91 : index
    %662 = memref.load %arg1[%c91] : memref<128xf32, #tpu.memory_space<smem>>
    %c92 = arith.constant 92 : index
    %663 = memref.load %arg1[%c92] : memref<128xf32, #tpu.memory_space<smem>>
    %c93 = arith.constant 93 : index
    %664 = memref.load %arg1[%c93] : memref<128xf32, #tpu.memory_space<smem>>
    %c94 = arith.constant 94 : index
    %665 = memref.load %arg1[%c94] : memref<128xf32, #tpu.memory_space<smem>>
    %c95 = arith.constant 95 : index
    %666 = memref.load %arg1[%c95] : memref<128xf32, #tpu.memory_space<smem>>
    %c16_i32_119 = arith.constant 16 : i32
    %667 = vector.broadcast %c16_i32_119 : i32 to vector<8x256xi32>
    %668 = arith.andi %2, %667 : vector<8x256xi32>
    %c0_i32_120 = arith.constant 0 : i32
    %669 = vector.broadcast %c0_i32_120 : i32 to vector<8x256xi32>
    %670 = arith.cmpi ne, %668, %669 : vector<8x256xi32>
    %671 = vector.broadcast %665 : f32 to vector<8x256xf32>
    %672 = vector.broadcast %659 : f32 to vector<8x256xf32>
    %673 = arith.select %670, %671, %672 : vector<8x256xi1>, vector<8x256xf32>
    %674 = vector.broadcast %666 : f32 to vector<8x256xf32>
    %675 = vector.broadcast %660 : f32 to vector<8x256xf32>
    %676 = arith.select %670, %674, %675 : vector<8x256xi1>, vector<8x256xf32>
    %677 = vector.broadcast %663 : f32 to vector<8x256xf32>
    %678 = vector.broadcast %661 : f32 to vector<8x256xf32>
    %679 = arith.select %670, %677, %678 : vector<8x256xi1>, vector<8x256xf32>
    %680 = vector.broadcast %664 : f32 to vector<8x256xf32>
    %681 = vector.broadcast %662 : f32 to vector<8x256xf32>
    %682 = arith.select %670, %680, %681 : vector<8x256xi1>, vector<8x256xf32>
    %683 = arith.xori %670, %8 : vector<8x256xi1>
    %c240_i32_121 = arith.constant 240 : i32
    %684 = tpu.dynamic_rotate %651 by %c240_i32_121 dim 1 : vector<8x256xf32>, i32 -> vector<8x256xf32>
    %c16_i32_122 = arith.constant 16 : i32
    %685 = tpu.dynamic_rotate %651 by %c16_i32_122 dim 1 : vector<8x256xf32>, i32 -> vector<8x256xf32>
    %686 = arith.select %683, %684, %685 : vector<8x256xi1>, vector<8x256xf32>
    %687 = arith.xori %670, %8 : vector<8x256xi1>
    %c240_i32_123 = arith.constant 240 : i32
    %688 = tpu.dynamic_rotate %658 by %c240_i32_123 dim 1 : vector<8x256xf32>, i32 -> vector<8x256xf32>
    %c16_i32_124 = arith.constant 16 : i32
    %689 = tpu.dynamic_rotate %658 by %c16_i32_124 dim 1 : vector<8x256xf32>, i32 -> vector<8x256xf32>
    %690 = arith.select %687, %688, %689 : vector<8x256xi1>, vector<8x256xf32>
    %691 = arith.mulf %673, %651 : vector<8x256xf32>
    %692 = arith.mulf %676, %658 : vector<8x256xf32>
    %693 = arith.subf %691, %692 : vector<8x256xf32>
    %694 = arith.mulf %679, %686 : vector<8x256xf32>
    %695 = arith.addf %693, %694 : vector<8x256xf32>
    %696 = arith.mulf %682, %690 : vector<8x256xf32>
    %697 = arith.subf %695, %696 : vector<8x256xf32>
    %698 = arith.mulf %673, %658 : vector<8x256xf32>
    %699 = arith.mulf %676, %651 : vector<8x256xf32>
    %700 = arith.addf %698, %699 : vector<8x256xf32>
    %701 = arith.mulf %679, %690 : vector<8x256xf32>
    %702 = arith.addf %700, %701 : vector<8x256xf32>
    %703 = arith.mulf %682, %686 : vector<8x256xf32>
    %704 = arith.addf %702, %703 : vector<8x256xf32>
    %c96 = arith.constant 96 : index
    %705 = memref.load %arg1[%c96] : memref<128xf32, #tpu.memory_space<smem>>
    %c97 = arith.constant 97 : index
    %706 = memref.load %arg1[%c97] : memref<128xf32, #tpu.memory_space<smem>>
    %c98 = arith.constant 98 : index
    %707 = memref.load %arg1[%c98] : memref<128xf32, #tpu.memory_space<smem>>
    %c99 = arith.constant 99 : index
    %708 = memref.load %arg1[%c99] : memref<128xf32, #tpu.memory_space<smem>>
    %c100 = arith.constant 100 : index
    %709 = memref.load %arg1[%c100] : memref<128xf32, #tpu.memory_space<smem>>
    %c101 = arith.constant 101 : index
    %710 = memref.load %arg1[%c101] : memref<128xf32, #tpu.memory_space<smem>>
    %c102 = arith.constant 102 : index
    %711 = memref.load %arg1[%c102] : memref<128xf32, #tpu.memory_space<smem>>
    %c103 = arith.constant 103 : index
    %712 = memref.load %arg1[%c103] : memref<128xf32, #tpu.memory_space<smem>>
    %c8_i32_125 = arith.constant 8 : i32
    %713 = vector.broadcast %c8_i32_125 : i32 to vector<8x256xi32>
    %714 = arith.andi %2, %713 : vector<8x256xi32>
    %c0_i32_126 = arith.constant 0 : i32
    %715 = vector.broadcast %c0_i32_126 : i32 to vector<8x256xi32>
    %716 = arith.cmpi ne, %714, %715 : vector<8x256xi32>
    %717 = vector.broadcast %711 : f32 to vector<8x256xf32>
    %718 = vector.broadcast %705 : f32 to vector<8x256xf32>
    %719 = arith.select %716, %717, %718 : vector<8x256xi1>, vector<8x256xf32>
    %720 = vector.broadcast %712 : f32 to vector<8x256xf32>
    %721 = vector.broadcast %706 : f32 to vector<8x256xf32>
    %722 = arith.select %716, %720, %721 : vector<8x256xi1>, vector<8x256xf32>
    %723 = vector.broadcast %709 : f32 to vector<8x256xf32>
    %724 = vector.broadcast %707 : f32 to vector<8x256xf32>
    %725 = arith.select %716, %723, %724 : vector<8x256xi1>, vector<8x256xf32>
    %726 = vector.broadcast %710 : f32 to vector<8x256xf32>
    %727 = vector.broadcast %708 : f32 to vector<8x256xf32>
    %728 = arith.select %716, %726, %727 : vector<8x256xi1>, vector<8x256xf32>
    %729 = arith.xori %716, %8 : vector<8x256xi1>
    %c248_i32_127 = arith.constant 248 : i32
    %730 = tpu.dynamic_rotate %697 by %c248_i32_127 dim 1 : vector<8x256xf32>, i32 -> vector<8x256xf32>
    %c8_i32_128 = arith.constant 8 : i32
    %731 = tpu.dynamic_rotate %697 by %c8_i32_128 dim 1 : vector<8x256xf32>, i32 -> vector<8x256xf32>
    %732 = arith.select %729, %730, %731 : vector<8x256xi1>, vector<8x256xf32>
    %733 = arith.xori %716, %8 : vector<8x256xi1>
    %c248_i32_129 = arith.constant 248 : i32
    %734 = tpu.dynamic_rotate %704 by %c248_i32_129 dim 1 : vector<8x256xf32>, i32 -> vector<8x256xf32>
    %c8_i32_130 = arith.constant 8 : i32
    %735 = tpu.dynamic_rotate %704 by %c8_i32_130 dim 1 : vector<8x256xf32>, i32 -> vector<8x256xf32>
    %736 = arith.select %733, %734, %735 : vector<8x256xi1>, vector<8x256xf32>
    %737 = arith.mulf %719, %697 : vector<8x256xf32>
    %738 = arith.mulf %722, %704 : vector<8x256xf32>
    %739 = arith.subf %737, %738 : vector<8x256xf32>
    %740 = arith.mulf %725, %732 : vector<8x256xf32>
    %741 = arith.addf %739, %740 : vector<8x256xf32>
    %742 = arith.mulf %728, %736 : vector<8x256xf32>
    %743 = arith.subf %741, %742 : vector<8x256xf32>
    %744 = arith.mulf %719, %704 : vector<8x256xf32>
    %745 = arith.mulf %722, %697 : vector<8x256xf32>
    %746 = arith.addf %744, %745 : vector<8x256xf32>
    %747 = arith.mulf %725, %736 : vector<8x256xf32>
    %748 = arith.addf %746, %747 : vector<8x256xf32>
    %749 = arith.mulf %728, %732 : vector<8x256xf32>
    %750 = arith.addf %748, %749 : vector<8x256xf32>
    %c104 = arith.constant 104 : index
    %751 = memref.load %arg1[%c104] : memref<128xf32, #tpu.memory_space<smem>>
    %c105 = arith.constant 105 : index
    %752 = memref.load %arg1[%c105] : memref<128xf32, #tpu.memory_space<smem>>
    %c106 = arith.constant 106 : index
    %753 = memref.load %arg1[%c106] : memref<128xf32, #tpu.memory_space<smem>>
    %c107 = arith.constant 107 : index
    %754 = memref.load %arg1[%c107] : memref<128xf32, #tpu.memory_space<smem>>
    %c108 = arith.constant 108 : index
    %755 = memref.load %arg1[%c108] : memref<128xf32, #tpu.memory_space<smem>>
    %c109 = arith.constant 109 : index
    %756 = memref.load %arg1[%c109] : memref<128xf32, #tpu.memory_space<smem>>
    %c110 = arith.constant 110 : index
    %757 = memref.load %arg1[%c110] : memref<128xf32, #tpu.memory_space<smem>>
    %c111 = arith.constant 111 : index
    %758 = memref.load %arg1[%c111] : memref<128xf32, #tpu.memory_space<smem>>
    %c4_i32_131 = arith.constant 4 : i32
    %759 = vector.broadcast %c4_i32_131 : i32 to vector<8x256xi32>
    %760 = arith.andi %2, %759 : vector<8x256xi32>
    %c0_i32_132 = arith.constant 0 : i32
    %761 = vector.broadcast %c0_i32_132 : i32 to vector<8x256xi32>
    %762 = arith.cmpi ne, %760, %761 : vector<8x256xi32>
    %763 = vector.broadcast %757 : f32 to vector<8x256xf32>
    %764 = vector.broadcast %751 : f32 to vector<8x256xf32>
    %765 = arith.select %762, %763, %764 : vector<8x256xi1>, vector<8x256xf32>
    %766 = vector.broadcast %758 : f32 to vector<8x256xf32>
    %767 = vector.broadcast %752 : f32 to vector<8x256xf32>
    %768 = arith.select %762, %766, %767 : vector<8x256xi1>, vector<8x256xf32>
    %769 = vector.broadcast %755 : f32 to vector<8x256xf32>
    %770 = vector.broadcast %753 : f32 to vector<8x256xf32>
    %771 = arith.select %762, %769, %770 : vector<8x256xi1>, vector<8x256xf32>
    %772 = vector.broadcast %756 : f32 to vector<8x256xf32>
    %773 = vector.broadcast %754 : f32 to vector<8x256xf32>
    %774 = arith.select %762, %772, %773 : vector<8x256xi1>, vector<8x256xf32>
    %775 = arith.xori %762, %8 : vector<8x256xi1>
    %c252_i32_133 = arith.constant 252 : i32
    %776 = tpu.dynamic_rotate %743 by %c252_i32_133 dim 1 : vector<8x256xf32>, i32 -> vector<8x256xf32>
    %c4_i32_134 = arith.constant 4 : i32
    %777 = tpu.dynamic_rotate %743 by %c4_i32_134 dim 1 : vector<8x256xf32>, i32 -> vector<8x256xf32>
    %778 = arith.select %775, %776, %777 : vector<8x256xi1>, vector<8x256xf32>
    %779 = arith.xori %762, %8 : vector<8x256xi1>
    %c252_i32_135 = arith.constant 252 : i32
    %780 = tpu.dynamic_rotate %750 by %c252_i32_135 dim 1 : vector<8x256xf32>, i32 -> vector<8x256xf32>
    %c4_i32_136 = arith.constant 4 : i32
    %781 = tpu.dynamic_rotate %750 by %c4_i32_136 dim 1 : vector<8x256xf32>, i32 -> vector<8x256xf32>
    %782 = arith.select %779, %780, %781 : vector<8x256xi1>, vector<8x256xf32>
    %783 = arith.mulf %765, %743 : vector<8x256xf32>
    %784 = arith.mulf %768, %750 : vector<8x256xf32>
    %785 = arith.subf %783, %784 : vector<8x256xf32>
    %786 = arith.mulf %771, %778 : vector<8x256xf32>
    %787 = arith.addf %785, %786 : vector<8x256xf32>
    %788 = arith.mulf %774, %782 : vector<8x256xf32>
    %789 = arith.subf %787, %788 : vector<8x256xf32>
    %790 = arith.mulf %765, %750 : vector<8x256xf32>
    %791 = arith.mulf %768, %743 : vector<8x256xf32>
    %792 = arith.addf %790, %791 : vector<8x256xf32>
    %793 = arith.mulf %771, %782 : vector<8x256xf32>
    %794 = arith.addf %792, %793 : vector<8x256xf32>
    %795 = arith.mulf %774, %778 : vector<8x256xf32>
    %796 = arith.addf %794, %795 : vector<8x256xf32>
    %c112 = arith.constant 112 : index
    %797 = memref.load %arg1[%c112] : memref<128xf32, #tpu.memory_space<smem>>
    %c113 = arith.constant 113 : index
    %798 = memref.load %arg1[%c113] : memref<128xf32, #tpu.memory_space<smem>>
    %c114 = arith.constant 114 : index
    %799 = memref.load %arg1[%c114] : memref<128xf32, #tpu.memory_space<smem>>
    %c115 = arith.constant 115 : index
    %800 = memref.load %arg1[%c115] : memref<128xf32, #tpu.memory_space<smem>>
    %c116 = arith.constant 116 : index
    %801 = memref.load %arg1[%c116] : memref<128xf32, #tpu.memory_space<smem>>
    %c117 = arith.constant 117 : index
    %802 = memref.load %arg1[%c117] : memref<128xf32, #tpu.memory_space<smem>>
    %c118 = arith.constant 118 : index
    %803 = memref.load %arg1[%c118] : memref<128xf32, #tpu.memory_space<smem>>
    %c119 = arith.constant 119 : index
    %804 = memref.load %arg1[%c119] : memref<128xf32, #tpu.memory_space<smem>>
    %c2_i32_137 = arith.constant 2 : i32
    %805 = vector.broadcast %c2_i32_137 : i32 to vector<8x256xi32>
    %806 = arith.andi %2, %805 : vector<8x256xi32>
    %c0_i32_138 = arith.constant 0 : i32
    %807 = vector.broadcast %c0_i32_138 : i32 to vector<8x256xi32>
    %808 = arith.cmpi ne, %806, %807 : vector<8x256xi32>
    %809 = vector.broadcast %803 : f32 to vector<8x256xf32>
    %810 = vector.broadcast %797 : f32 to vector<8x256xf32>
    %811 = arith.select %808, %809, %810 : vector<8x256xi1>, vector<8x256xf32>
    %812 = vector.broadcast %804 : f32 to vector<8x256xf32>
    %813 = vector.broadcast %798 : f32 to vector<8x256xf32>
    %814 = arith.select %808, %812, %813 : vector<8x256xi1>, vector<8x256xf32>
    %815 = vector.broadcast %801 : f32 to vector<8x256xf32>
    %816 = vector.broadcast %799 : f32 to vector<8x256xf32>
    %817 = arith.select %808, %815, %816 : vector<8x256xi1>, vector<8x256xf32>
    %818 = vector.broadcast %802 : f32 to vector<8x256xf32>
    %819 = vector.broadcast %800 : f32 to vector<8x256xf32>
    %820 = arith.select %808, %818, %819 : vector<8x256xi1>, vector<8x256xf32>
    %821 = arith.xori %808, %8 : vector<8x256xi1>
    %c254_i32_139 = arith.constant 254 : i32
    %822 = tpu.dynamic_rotate %789 by %c254_i32_139 dim 1 : vector<8x256xf32>, i32 -> vector<8x256xf32>
    %c2_i32_140 = arith.constant 2 : i32
    %823 = tpu.dynamic_rotate %789 by %c2_i32_140 dim 1 : vector<8x256xf32>, i32 -> vector<8x256xf32>
    %824 = arith.select %821, %822, %823 : vector<8x256xi1>, vector<8x256xf32>
    %825 = arith.xori %808, %8 : vector<8x256xi1>
    %c254_i32_141 = arith.constant 254 : i32
    %826 = tpu.dynamic_rotate %796 by %c254_i32_141 dim 1 : vector<8x256xf32>, i32 -> vector<8x256xf32>
    %c2_i32_142 = arith.constant 2 : i32
    %827 = tpu.dynamic_rotate %796 by %c2_i32_142 dim 1 : vector<8x256xf32>, i32 -> vector<8x256xf32>
    %828 = arith.select %825, %826, %827 : vector<8x256xi1>, vector<8x256xf32>
    %829 = arith.mulf %811, %789 : vector<8x256xf32>
    %830 = arith.mulf %814, %796 : vector<8x256xf32>
    %831 = arith.subf %829, %830 : vector<8x256xf32>
    %832 = arith.mulf %817, %824 : vector<8x256xf32>
    %833 = arith.addf %831, %832 : vector<8x256xf32>
    %834 = arith.mulf %820, %828 : vector<8x256xf32>
    %835 = arith.subf %833, %834 : vector<8x256xf32>
    %836 = arith.mulf %811, %796 : vector<8x256xf32>
    %837 = arith.mulf %814, %789 : vector<8x256xf32>
    %838 = arith.addf %836, %837 : vector<8x256xf32>
    %839 = arith.mulf %817, %828 : vector<8x256xf32>
    %840 = arith.addf %838, %839 : vector<8x256xf32>
    %841 = arith.mulf %820, %824 : vector<8x256xf32>
    %842 = arith.addf %840, %841 : vector<8x256xf32>
    %c120 = arith.constant 120 : index
    %843 = memref.load %arg1[%c120] : memref<128xf32, #tpu.memory_space<smem>>
    %c121 = arith.constant 121 : index
    %844 = memref.load %arg1[%c121] : memref<128xf32, #tpu.memory_space<smem>>
    %c122 = arith.constant 122 : index
    %845 = memref.load %arg1[%c122] : memref<128xf32, #tpu.memory_space<smem>>
    %c123 = arith.constant 123 : index
    %846 = memref.load %arg1[%c123] : memref<128xf32, #tpu.memory_space<smem>>
    %c124 = arith.constant 124 : index
    %847 = memref.load %arg1[%c124] : memref<128xf32, #tpu.memory_space<smem>>
    %c125 = arith.constant 125 : index
    %848 = memref.load %arg1[%c125] : memref<128xf32, #tpu.memory_space<smem>>
    %c126 = arith.constant 126 : index
    %849 = memref.load %arg1[%c126] : memref<128xf32, #tpu.memory_space<smem>>
    %c127 = arith.constant 127 : index
    %850 = memref.load %arg1[%c127] : memref<128xf32, #tpu.memory_space<smem>>
    %c1_i32_143 = arith.constant 1 : i32
    %851 = vector.broadcast %c1_i32_143 : i32 to vector<8x256xi32>
    %852 = arith.andi %2, %851 : vector<8x256xi32>
    %c0_i32_144 = arith.constant 0 : i32
    %853 = vector.broadcast %c0_i32_144 : i32 to vector<8x256xi32>
    %854 = arith.cmpi ne, %852, %853 : vector<8x256xi32>
    %855 = vector.broadcast %849 : f32 to vector<8x256xf32>
    %856 = vector.broadcast %843 : f32 to vector<8x256xf32>
    %857 = arith.select %854, %855, %856 : vector<8x256xi1>, vector<8x256xf32>
    %858 = vector.broadcast %850 : f32 to vector<8x256xf32>
    %859 = vector.broadcast %844 : f32 to vector<8x256xf32>
    %860 = arith.select %854, %858, %859 : vector<8x256xi1>, vector<8x256xf32>
    %861 = vector.broadcast %847 : f32 to vector<8x256xf32>
    %862 = vector.broadcast %845 : f32 to vector<8x256xf32>
    %863 = arith.select %854, %861, %862 : vector<8x256xi1>, vector<8x256xf32>
    %864 = vector.broadcast %848 : f32 to vector<8x256xf32>
    %865 = vector.broadcast %846 : f32 to vector<8x256xf32>
    %866 = arith.select %854, %864, %865 : vector<8x256xi1>, vector<8x256xf32>
    %867 = arith.xori %854, %8 : vector<8x256xi1>
    %c255_i32_145 = arith.constant 255 : i32
    %868 = tpu.dynamic_rotate %835 by %c255_i32_145 dim 1 : vector<8x256xf32>, i32 -> vector<8x256xf32>
    %c1_i32_146 = arith.constant 1 : i32
    %869 = tpu.dynamic_rotate %835 by %c1_i32_146 dim 1 : vector<8x256xf32>, i32 -> vector<8x256xf32>
    %870 = arith.select %867, %868, %869 : vector<8x256xi1>, vector<8x256xf32>
    %871 = arith.xori %854, %8 : vector<8x256xi1>
    %c255_i32_147 = arith.constant 255 : i32
    %872 = tpu.dynamic_rotate %842 by %c255_i32_147 dim 1 : vector<8x256xf32>, i32 -> vector<8x256xf32>
    %c1_i32_148 = arith.constant 1 : i32
    %873 = tpu.dynamic_rotate %842 by %c1_i32_148 dim 1 : vector<8x256xf32>, i32 -> vector<8x256xf32>
    %874 = arith.select %871, %872, %873 : vector<8x256xi1>, vector<8x256xf32>
    %875 = arith.mulf %857, %835 : vector<8x256xf32>
    %876 = arith.mulf %860, %842 : vector<8x256xf32>
    %877 = arith.subf %875, %876 : vector<8x256xf32>
    %878 = arith.mulf %863, %870 : vector<8x256xf32>
    %879 = arith.addf %877, %878 : vector<8x256xf32>
    %880 = arith.mulf %866, %874 : vector<8x256xf32>
    %881 = arith.subf %879, %880 : vector<8x256xf32>
    %882 = arith.mulf %857, %842 : vector<8x256xf32>
    %883 = arith.mulf %860, %835 : vector<8x256xf32>
    %884 = arith.addf %882, %883 : vector<8x256xf32>
    %885 = arith.mulf %863, %874 : vector<8x256xf32>
    %886 = arith.addf %884, %885 : vector<8x256xf32>
    %887 = arith.mulf %866, %870 : vector<8x256xf32>
    %888 = arith.addf %886, %887 : vector<8x256xf32>
    %c128_i32_149 = arith.constant 128 : i32
    %889 = vector.broadcast %c128_i32_149 : i32 to vector<8x256xi32>
    %890 = arith.andi %2, %889 : vector<8x256xi32>
    %c0_i32_150 = arith.constant 0 : i32
    %891 = vector.broadcast %c0_i32_150 : i32 to vector<8x256xi32>
    %892 = arith.cmpi ne, %890, %891 : vector<8x256xi32>
    %c64_i32_151 = arith.constant 64 : i32
    %893 = vector.broadcast %c64_i32_151 : i32 to vector<8x256xi32>
    %894 = arith.andi %2, %893 : vector<8x256xi32>
    %c0_i32_152 = arith.constant 0 : i32
    %895 = vector.broadcast %c0_i32_152 : i32 to vector<8x256xi32>
    %896 = arith.cmpi ne, %894, %895 : vector<8x256xi32>
    %897 = arith.xori %896, %8 : vector<8x256xi1>
    %c192_i32_153 = arith.constant 192 : i32
    %898 = tpu.dynamic_rotate %881 by %c192_i32_153 dim 1 : vector<8x256xf32>, i32 -> vector<8x256xf32>
    %c64_i32_154 = arith.constant 64 : i32
    %899 = tpu.dynamic_rotate %881 by %c64_i32_154 dim 1 : vector<8x256xf32>, i32 -> vector<8x256xf32>
    %900 = arith.select %897, %898, %899 : vector<8x256xi1>, vector<8x256xf32>
    %901 = arith.xori %896, %8 : vector<8x256xi1>
    %c192_i32_155 = arith.constant 192 : i32
    %902 = tpu.dynamic_rotate %888 by %c192_i32_155 dim 1 : vector<8x256xf32>, i32 -> vector<8x256xf32>
    %c64_i32_156 = arith.constant 64 : i32
    %903 = tpu.dynamic_rotate %888 by %c64_i32_156 dim 1 : vector<8x256xf32>, i32 -> vector<8x256xf32>
    %904 = arith.select %901, %902, %903 : vector<8x256xi1>, vector<8x256xf32>
    %905 = arith.select %892, %900, %881 : vector<8x256xi1>, vector<8x256xf32>
    %906 = arith.select %892, %904, %888 : vector<8x256xi1>, vector<8x256xf32>
    %c64_i32_157 = arith.constant 64 : i32
    %907 = vector.broadcast %c64_i32_157 : i32 to vector<8x256xi32>
    %908 = arith.andi %2, %907 : vector<8x256xi32>
    %c0_i32_158 = arith.constant 0 : i32
    %909 = vector.broadcast %c0_i32_158 : i32 to vector<8x256xi32>
    %910 = arith.cmpi ne, %908, %909 : vector<8x256xi32>
    %c32_i32_159 = arith.constant 32 : i32
    %911 = vector.broadcast %c32_i32_159 : i32 to vector<8x256xi32>
    %912 = arith.andi %2, %911 : vector<8x256xi32>
    %c0_i32_160 = arith.constant 0 : i32
    %913 = vector.broadcast %c0_i32_160 : i32 to vector<8x256xi32>
    %914 = arith.cmpi ne, %912, %913 : vector<8x256xi32>
    %915 = arith.xori %914, %8 : vector<8x256xi1>
    %c224_i32_161 = arith.constant 224 : i32
    %916 = tpu.dynamic_rotate %905 by %c224_i32_161 dim 1 : vector<8x256xf32>, i32 -> vector<8x256xf32>
    %c32_i32_162 = arith.constant 32 : i32
    %917 = tpu.dynamic_rotate %905 by %c32_i32_162 dim 1 : vector<8x256xf32>, i32 -> vector<8x256xf32>
    %918 = arith.select %915, %916, %917 : vector<8x256xi1>, vector<8x256xf32>
    %919 = arith.xori %914, %8 : vector<8x256xi1>
    %c224_i32_163 = arith.constant 224 : i32
    %920 = tpu.dynamic_rotate %906 by %c224_i32_163 dim 1 : vector<8x256xf32>, i32 -> vector<8x256xf32>
    %c32_i32_164 = arith.constant 32 : i32
    %921 = tpu.dynamic_rotate %906 by %c32_i32_164 dim 1 : vector<8x256xf32>, i32 -> vector<8x256xf32>
    %922 = arith.select %919, %920, %921 : vector<8x256xi1>, vector<8x256xf32>
    %923 = arith.select %910, %918, %905 : vector<8x256xi1>, vector<8x256xf32>
    %924 = arith.select %910, %922, %906 : vector<8x256xi1>, vector<8x256xf32>
    %c32_i32_165 = arith.constant 32 : i32
    %925 = vector.broadcast %c32_i32_165 : i32 to vector<8x256xi32>
    %926 = arith.andi %2, %925 : vector<8x256xi32>
    %c0_i32_166 = arith.constant 0 : i32
    %927 = vector.broadcast %c0_i32_166 : i32 to vector<8x256xi32>
    %928 = arith.cmpi ne, %926, %927 : vector<8x256xi32>
    %c16_i32_167 = arith.constant 16 : i32
    %929 = vector.broadcast %c16_i32_167 : i32 to vector<8x256xi32>
    %930 = arith.andi %2, %929 : vector<8x256xi32>
    %c0_i32_168 = arith.constant 0 : i32
    %931 = vector.broadcast %c0_i32_168 : i32 to vector<8x256xi32>
    %932 = arith.cmpi ne, %930, %931 : vector<8x256xi32>
    %933 = arith.xori %932, %8 : vector<8x256xi1>
    %c240_i32_169 = arith.constant 240 : i32
    %934 = tpu.dynamic_rotate %923 by %c240_i32_169 dim 1 : vector<8x256xf32>, i32 -> vector<8x256xf32>
    %c16_i32_170 = arith.constant 16 : i32
    %935 = tpu.dynamic_rotate %923 by %c16_i32_170 dim 1 : vector<8x256xf32>, i32 -> vector<8x256xf32>
    %936 = arith.select %933, %934, %935 : vector<8x256xi1>, vector<8x256xf32>
    %937 = arith.xori %932, %8 : vector<8x256xi1>
    %c240_i32_171 = arith.constant 240 : i32
    %938 = tpu.dynamic_rotate %924 by %c240_i32_171 dim 1 : vector<8x256xf32>, i32 -> vector<8x256xf32>
    %c16_i32_172 = arith.constant 16 : i32
    %939 = tpu.dynamic_rotate %924 by %c16_i32_172 dim 1 : vector<8x256xf32>, i32 -> vector<8x256xf32>
    %940 = arith.select %937, %938, %939 : vector<8x256xi1>, vector<8x256xf32>
    %941 = arith.select %928, %936, %923 : vector<8x256xi1>, vector<8x256xf32>
    %942 = arith.select %928, %940, %924 : vector<8x256xi1>, vector<8x256xf32>
    %c16_i32_173 = arith.constant 16 : i32
    %943 = vector.broadcast %c16_i32_173 : i32 to vector<8x256xi32>
    %944 = arith.andi %2, %943 : vector<8x256xi32>
    %c0_i32_174 = arith.constant 0 : i32
    %945 = vector.broadcast %c0_i32_174 : i32 to vector<8x256xi32>
    %946 = arith.cmpi ne, %944, %945 : vector<8x256xi32>
    %c8_i32_175 = arith.constant 8 : i32
    %947 = vector.broadcast %c8_i32_175 : i32 to vector<8x256xi32>
    %948 = arith.andi %2, %947 : vector<8x256xi32>
    %c0_i32_176 = arith.constant 0 : i32
    %949 = vector.broadcast %c0_i32_176 : i32 to vector<8x256xi32>
    %950 = arith.cmpi ne, %948, %949 : vector<8x256xi32>
    %951 = arith.xori %950, %8 : vector<8x256xi1>
    %c248_i32_177 = arith.constant 248 : i32
    %952 = tpu.dynamic_rotate %941 by %c248_i32_177 dim 1 : vector<8x256xf32>, i32 -> vector<8x256xf32>
    %c8_i32_178 = arith.constant 8 : i32
    %953 = tpu.dynamic_rotate %941 by %c8_i32_178 dim 1 : vector<8x256xf32>, i32 -> vector<8x256xf32>
    %954 = arith.select %951, %952, %953 : vector<8x256xi1>, vector<8x256xf32>
    %955 = arith.xori %950, %8 : vector<8x256xi1>
    %c248_i32_179 = arith.constant 248 : i32
    %956 = tpu.dynamic_rotate %942 by %c248_i32_179 dim 1 : vector<8x256xf32>, i32 -> vector<8x256xf32>
    %c8_i32_180 = arith.constant 8 : i32
    %957 = tpu.dynamic_rotate %942 by %c8_i32_180 dim 1 : vector<8x256xf32>, i32 -> vector<8x256xf32>
    %958 = arith.select %955, %956, %957 : vector<8x256xi1>, vector<8x256xf32>
    %959 = arith.select %946, %954, %941 : vector<8x256xi1>, vector<8x256xf32>
    %960 = arith.select %946, %958, %942 : vector<8x256xi1>, vector<8x256xf32>
    %c8_i32_181 = arith.constant 8 : i32
    %961 = vector.broadcast %c8_i32_181 : i32 to vector<8x256xi32>
    %962 = arith.andi %2, %961 : vector<8x256xi32>
    %c0_i32_182 = arith.constant 0 : i32
    %963 = vector.broadcast %c0_i32_182 : i32 to vector<8x256xi32>
    %964 = arith.cmpi ne, %962, %963 : vector<8x256xi32>
    %c4_i32_183 = arith.constant 4 : i32
    %965 = vector.broadcast %c4_i32_183 : i32 to vector<8x256xi32>
    %966 = arith.andi %2, %965 : vector<8x256xi32>
    %c0_i32_184 = arith.constant 0 : i32
    %967 = vector.broadcast %c0_i32_184 : i32 to vector<8x256xi32>
    %968 = arith.cmpi ne, %966, %967 : vector<8x256xi32>
    %969 = arith.xori %968, %8 : vector<8x256xi1>
    %c252_i32_185 = arith.constant 252 : i32
    %970 = tpu.dynamic_rotate %959 by %c252_i32_185 dim 1 : vector<8x256xf32>, i32 -> vector<8x256xf32>
    %c4_i32_186 = arith.constant 4 : i32
    %971 = tpu.dynamic_rotate %959 by %c4_i32_186 dim 1 : vector<8x256xf32>, i32 -> vector<8x256xf32>
    %972 = arith.select %969, %970, %971 : vector<8x256xi1>, vector<8x256xf32>
    %973 = arith.xori %968, %8 : vector<8x256xi1>
    %c252_i32_187 = arith.constant 252 : i32
    %974 = tpu.dynamic_rotate %960 by %c252_i32_187 dim 1 : vector<8x256xf32>, i32 -> vector<8x256xf32>
    %c4_i32_188 = arith.constant 4 : i32
    %975 = tpu.dynamic_rotate %960 by %c4_i32_188 dim 1 : vector<8x256xf32>, i32 -> vector<8x256xf32>
    %976 = arith.select %973, %974, %975 : vector<8x256xi1>, vector<8x256xf32>
    %977 = arith.select %964, %972, %959 : vector<8x256xi1>, vector<8x256xf32>
    %978 = arith.select %964, %976, %960 : vector<8x256xi1>, vector<8x256xf32>
    %c4_i32_189 = arith.constant 4 : i32
    %979 = vector.broadcast %c4_i32_189 : i32 to vector<8x256xi32>
    %980 = arith.andi %2, %979 : vector<8x256xi32>
    %c0_i32_190 = arith.constant 0 : i32
    %981 = vector.broadcast %c0_i32_190 : i32 to vector<8x256xi32>
    %982 = arith.cmpi ne, %980, %981 : vector<8x256xi32>
    %c2_i32_191 = arith.constant 2 : i32
    %983 = vector.broadcast %c2_i32_191 : i32 to vector<8x256xi32>
    %984 = arith.andi %2, %983 : vector<8x256xi32>
    %c0_i32_192 = arith.constant 0 : i32
    %985 = vector.broadcast %c0_i32_192 : i32 to vector<8x256xi32>
    %986 = arith.cmpi ne, %984, %985 : vector<8x256xi32>
    %987 = arith.xori %986, %8 : vector<8x256xi1>
    %c254_i32_193 = arith.constant 254 : i32
    %988 = tpu.dynamic_rotate %977 by %c254_i32_193 dim 1 : vector<8x256xf32>, i32 -> vector<8x256xf32>
    %c2_i32_194 = arith.constant 2 : i32
    %989 = tpu.dynamic_rotate %977 by %c2_i32_194 dim 1 : vector<8x256xf32>, i32 -> vector<8x256xf32>
    %990 = arith.select %987, %988, %989 : vector<8x256xi1>, vector<8x256xf32>
    %991 = arith.xori %986, %8 : vector<8x256xi1>
    %c254_i32_195 = arith.constant 254 : i32
    %992 = tpu.dynamic_rotate %978 by %c254_i32_195 dim 1 : vector<8x256xf32>, i32 -> vector<8x256xf32>
    %c2_i32_196 = arith.constant 2 : i32
    %993 = tpu.dynamic_rotate %978 by %c2_i32_196 dim 1 : vector<8x256xf32>, i32 -> vector<8x256xf32>
    %994 = arith.select %991, %992, %993 : vector<8x256xi1>, vector<8x256xf32>
    %995 = arith.select %982, %990, %977 : vector<8x256xi1>, vector<8x256xf32>
    %996 = arith.select %982, %994, %978 : vector<8x256xi1>, vector<8x256xf32>
    %c2_i32_197 = arith.constant 2 : i32
    %997 = vector.broadcast %c2_i32_197 : i32 to vector<8x256xi32>
    %998 = arith.andi %2, %997 : vector<8x256xi32>
    %c0_i32_198 = arith.constant 0 : i32
    %999 = vector.broadcast %c0_i32_198 : i32 to vector<8x256xi32>
    %1000 = arith.cmpi ne, %998, %999 : vector<8x256xi32>
    %c1_i32_199 = arith.constant 1 : i32
    %1001 = vector.broadcast %c1_i32_199 : i32 to vector<8x256xi32>
    %1002 = arith.andi %2, %1001 : vector<8x256xi32>
    %c0_i32_200 = arith.constant 0 : i32
    %1003 = vector.broadcast %c0_i32_200 : i32 to vector<8x256xi32>
    %1004 = arith.cmpi ne, %1002, %1003 : vector<8x256xi32>
    %1005 = arith.xori %1004, %8 : vector<8x256xi1>
    %c255_i32_201 = arith.constant 255 : i32
    %1006 = tpu.dynamic_rotate %995 by %c255_i32_201 dim 1 : vector<8x256xf32>, i32 -> vector<8x256xf32>
    %c1_i32_202 = arith.constant 1 : i32
    %1007 = tpu.dynamic_rotate %995 by %c1_i32_202 dim 1 : vector<8x256xf32>, i32 -> vector<8x256xf32>
    %1008 = arith.select %1005, %1006, %1007 : vector<8x256xi1>, vector<8x256xf32>
    %1009 = arith.xori %1004, %8 : vector<8x256xi1>
    %c255_i32_203 = arith.constant 255 : i32
    %1010 = tpu.dynamic_rotate %996 by %c255_i32_203 dim 1 : vector<8x256xf32>, i32 -> vector<8x256xf32>
    %c1_i32_204 = arith.constant 1 : i32
    %1011 = tpu.dynamic_rotate %996 by %c1_i32_204 dim 1 : vector<8x256xf32>, i32 -> vector<8x256xf32>
    %1012 = arith.select %1009, %1010, %1011 : vector<8x256xi1>, vector<8x256xf32>
    %1013 = arith.select %1000, %1008, %995 : vector<8x256xi1>, vector<8x256xf32>
    %1014 = arith.select %1000, %1012, %996 : vector<8x256xi1>, vector<8x256xf32>
    %c1_i32_205 = arith.constant 1 : i32
    %1015 = vector.broadcast %c1_i32_205 : i32 to vector<8x256xi32>
    %1016 = arith.andi %2, %1015 : vector<8x256xi32>
    %c0_i32_206 = arith.constant 0 : i32
    %1017 = vector.broadcast %c0_i32_206 : i32 to vector<8x256xi32>
    %1018 = arith.cmpi ne, %1016, %1017 : vector<8x256xi32>
    %c128_i32_207 = arith.constant 128 : i32
    %1019 = vector.broadcast %c128_i32_207 : i32 to vector<8x256xi32>
    %1020 = arith.andi %2, %1019 : vector<8x256xi32>
    %c0_i32_208 = arith.constant 0 : i32
    %1021 = vector.broadcast %c0_i32_208 : i32 to vector<8x256xi32>
    %1022 = arith.cmpi ne, %1020, %1021 : vector<8x256xi32>
    %1023 = arith.xori %1022, %8 : vector<8x256xi1>
    %c128_i32_209 = arith.constant 128 : i32
    %1024 = tpu.dynamic_rotate %1013 by %c128_i32_209 dim 1 : vector<8x256xf32>, i32 -> vector<8x256xf32>
    %c128_i32_210 = arith.constant 128 : i32
    %1025 = tpu.dynamic_rotate %1013 by %c128_i32_210 dim 1 : vector<8x256xf32>, i32 -> vector<8x256xf32>
    %1026 = arith.select %1023, %1024, %1025 : vector<8x256xi1>, vector<8x256xf32>
    %1027 = arith.xori %1022, %8 : vector<8x256xi1>
    %c128_i32_211 = arith.constant 128 : i32
    %1028 = tpu.dynamic_rotate %1014 by %c128_i32_211 dim 1 : vector<8x256xf32>, i32 -> vector<8x256xf32>
    %c128_i32_212 = arith.constant 128 : i32
    %1029 = tpu.dynamic_rotate %1014 by %c128_i32_212 dim 1 : vector<8x256xf32>, i32 -> vector<8x256xf32>
    %1030 = arith.select %1027, %1028, %1029 : vector<8x256xi1>, vector<8x256xf32>
    %1031 = arith.select %1018, %1026, %1013 : vector<8x256xi1>, vector<8x256xf32>
    %1032 = arith.select %1018, %1030, %1014 : vector<8x256xi1>, vector<8x256xf32>
    %1033 = arith.mulf %1031, %1031 : vector<8x256xf32>
    %1034 = arith.mulf %1032, %1032 : vector<8x256xf32>
    %1035 = arith.addf %1033, %1034 : vector<8x256xf32>
    %c0_213 = arith.constant 0 : index
    %c0_214 = arith.constant 0 : index
    %1036 = vector.load %arg3[%c0_213, %c0_214] : memref<256x1xf32, #tpu.memory_space<vmem>>, vector<256x1xf32>
    %cst_215 = arith.constant dense<0.000000e+00> : vector<8x1xf32>
    %1037 = tpu.matmul %1035, %1036, %cst_215 {dimension_numbers = #tpu.dot_dimension_numbers<[1], [0], [0], [1], [0, 0, 1, 1], [], []>} : vector<8x256xf32>, vector<256x1xf32>, vector<8x1xf32> -> vector<8x1xf32>
    %c0_216 = arith.constant 0 : index
    %c0_217 = arith.constant 0 : index
    %1038 = vector.load %arg4[%c0_216, %c0_217] : memref<8x1xf32, #tpu.memory_space<vmem>>, vector<8x1xf32>
    tpu.vector_store %arg4[%c0_216, %c0_217], %1037 {strides = array<i32>} : memref<8x1xf32, #tpu.memory_space<vmem>>, vector<8x1xf32>,
    return
  }
  func.func @transform_0(%arg0: i32) -> i32 {
    %c0_i32 = arith.constant 0 : i32
    %c0_i32_0 = arith.constant 0 : i32
    return %c0_i32 : i32
  }
  func.func @transform_1(%arg0: i32) -> (i32, i32) {
    %c0_i32 = arith.constant 0 : i32
    %c0_i32_0 = arith.constant 0 : i32
    %c0_i32_1 = arith.constant 0 : i32
    return %c0_i32, %c0_i32_0 : i32, i32
  }
  func.func @transform_2(%arg0: i32) -> (i32, i32) {
    %c0_i32 = arith.constant 0 : i32
    %c0_i32_0 = arith.constant 0 : i32
    %c0_i32_1 = arith.constant 0 : i32
    return %c0_i32, %c0_i32_0 : i32, i32
  }
  func.func @transform_3(%arg0: i32) -> (i32, i32) {
    %c0_i32 = arith.constant 0 : i32
    %c0_i32_0 = arith.constant 0 : i32
    %c0_i32_1 = arith.constant 0 : i32
    return %c0_i32, %c0_i32_0 : i32, i32
  }
}

</mosaic_0001>

<llo_original>
// kernel: full_quantum_model_forward.1
$region0: #{full_quantum_model_forward.1}
  #allocation0 [shape = 'u32[]', space=smem, size = 0x4, offset = 0x4, fixed_abs, tag = 'smem constant byte address 0x4 - core index']
  #allocation1 [shape = 'u32[144,128]{1,0:T(1,128)}', space=vmem, size = 0x12000, scoped, tag = 'internal scratch']
  %s0 = inlined_call_operand.vmem [shape: f32[128], index: 0, kind: input, shape index: {}]
  %s1 = inlined_call_operand.vmem [shape: f32[8,256], index: 1, kind: input, shape index: {}]
  %s2 = inlined_call_operand.hbm [shape: f32[256,1], index: 2, kind: input, shape index: {}]
  %s3 = inlined_call_operand.vmem [shape: f32[8,1], index: 3, kind: output, shape index: {}]
  %s4 = sld [smem:[#allocation0]]
  $region30: #{full_quantum_model_forward.1} parent=0
    _
  %s6 = ssub.s32 1, %s4
  %s7 = scalar_select 0, %s6, %s4
  $region1: #{full_quantum_model_forward.1} parent=0
    #allocation2 [shape = 'u8[512]{0}', space=smem, size = 0x200, scoped, tag = 'input window, operand 0, single buffered']
    #allocation3 [shape = 's32[1]{0}', space=sflag, size = 0x4, scoped, tag = 'scoped memory for full_quantum_model_forward.1']
    #allocation4 [shape = 's32[1]{0}', space=sflag, size = 0x4, scoped, tag = 'scoped memory for full_quantum_model_forward.1']
    #allocation5 [shape = 'u8[131072]{0}', space=vmem, size = 0x20000, scoped, tag = 'input window, operand 2, single buffered']
    %8 = vsyncpa [#allocation4], 0
    %9 = vsyncpa [#allocation3], 0
    // Predicated region
    $region2: #{full_quantum_model_forward.1} parent=1 // pred_check
      _
    $region3: #{full_quantum_model_forward.1} parent=1 // pred_check_branch
      %11 = sbr.rel (0) target = $region5
    $region4: #{full_quantum_model_forward.1} parent=1 // pred_region
      %s13 = ssub.s32 16, 16
      %14 = vsyncadd [#allocation4], %s13
      %s16 = sshll.u32 %s0, 4
      %s17 = int_to_ptr.vmem [resolvable:$true] %s16
      %19 = dma.vmem_to_smem %s17, 16, [#allocation2], [#allocation4]
    $region5: #{full_quantum_model_forward.1} parent=1 // pred_fallthru
      _
    // Predicated region
    $region6: #{full_quantum_model_forward.1} parent=1 // pred_check
      _
    $region7: #{full_quantum_model_forward.1} parent=1 // pred_check_branch
      %21 = sbr.rel (0) target = $region9
    $region8: #{full_quantum_model_forward.1} parent=1 // pred_region
      _
    $region9: #{full_quantum_model_forward.1} parent=1 // pred_fallthru
      _
    // Predicated region
    $region10: #{full_quantum_model_forward.1} parent=1 // pred_check
      _
    $region11: #{full_quantum_model_forward.1} parent=1 // pred_check_branch
      %23 = sbr.rel (0) target = $region13
    $region12: #{full_quantum_model_forward.1} parent=1 // pred_region
      %s25 = ssub.s32 4096, 4096
      %26 = vsyncadd [#allocation3], %s25
      %s27 = sshll.u32 [#allocation5], 4
      %s28 = int_to_ptr.vmem [resolvable:$true] %s27
      %33 = dma.hbm_to_vmem [thread:$0]  %s2, 4096, %s28, [#allocation3], 128, 128, 8
    $region13: #{full_quantum_model_forward.1} parent=1 // pred_fallthru
      _
    // Predicated region
    $region14: #{full_quantum_model_forward.1} parent=1 // pred_check
      _
    $region15: #{full_quantum_model_forward.1} parent=1 // pred_check_branch
      %35 = sbr.rel (0) target = $region17
    $region16: #{full_quantum_model_forward.1} parent=1 // pred_region
      %36 = dma.done [#allocation4], 16
    $region17: #{full_quantum_model_forward.1} parent=1 // pred_fallthru
      _
    // Predicated region
    $region18: #{full_quantum_model_forward.1} parent=1 // pred_check
      _
    $region19: #{full_quantum_model_forward.1} parent=1 // pred_check_branch
      %38 = sbr.rel (0) target = $region21
    $region20: #{full_quantum_model_forward.1} parent=1 // pred_region
      %39 = dma.done [#allocation3], 4096
    $region21: #{full_quantum_model_forward.1} parent=1 // pred_fallthru
      _
    %40 = sfence
    %v41 = vld [vmem:[%s1] sm:$0xff]
    %v42 = vld [vmem:[%s1 + $0x8] sm:$0xff]
    %v43 = vlaneseq
    %v44 = vand.u32 %v43, 127
    %v45 = vadd.s32 %v44, 128
    %46 = vrot.lane.b32.xlu0 %v44, 1
    %v47 = vpop.permute.xlu0 %46
    %48 = vrot.lane.b32.xlu0 %v45, 1
    %v49 = vpop.permute.xlu0 %48
    %vm50 = vcmp.lt.s32.totalorder %v44, 1
    %v51 = vsel %vm50, %v47, %v49
    %v52 = vsel %vm50, %v49, %v47
    %v53 = vadd.s32 %v44, 255
    %v54 = vadd.s32 %v45, 255
    %v55 = vand.u32 %v53, 255
    %v56 = vand.u32 %v54, 255
    %vm57 = vcmp.eq.s32.totalorder %v52, %v55
    %vm58 = vcmp.eq.s32.totalorder %v51, %v56
    %s59 = sld [smem:[#allocation2]]
    %s60 = sld [smem:[#allocation2 + $0x1]]
    %s61 = sld [smem:[#allocation2 + $0x2]]
    %s62 = sld [smem:[#allocation2 + $0x3]]
    %s63 = sld [smem:[#allocation2 + $0x4]]
    %s64 = sld [smem:[#allocation2 + $0x5]]
    %s65 = sld [smem:[#allocation2 + $0x6]]
    %s66 = sld [smem:[#allocation2 + $0x7]]
    %v67 = vand.u32 %v44, 128
    %v68 = vand.u32 %v45, 128
    %vm69 = vcmp.ne.s32.totalorder %v67, 0
    %vm70 = vcmp.ne.s32.totalorder %v68, 0
    %v71 = vstv %s65
    %v72 = vstv %s59
    %v73 = vsel %vm69, %v71, %v72
    %v74 = vsel %vm70, %v71, %v72
    %v75 = vstv %s66
    %v76 = vstv %s60
    %v77 = vsel %vm69, %v75, %v76
    %v78 = vsel %vm70, %v75, %v76
    %v79 = vstv %s63
    %v80 = vstv %s61
    %v81 = vsel %vm69, %v79, %v80
    %v82 = vsel %vm70, %v79, %v80
    %v83 = vstv %s64
    %v84 = vstv %s62
    %v85 = vsel %vm69, %v83, %v84
    %v86 = vsel %vm70, %v83, %v84
    %v87 = vmul.f32 %v73, %v41
    %v88 = vmul.f32 %v74, %v42
    %v89 = vmul.f32 %v77, 0.0
    %v90 = vmul.f32 %v78, 0.0
    %v91 = vsub.f32 %v87, %v89
    %v92 = vsub.f32 %v88, %v90
    %v93 = vmul.f32 %v81, %v42
    %v94 = vmul.f32 %v82, %v41
    %v95 = vadd.f32 %v91, %v93
    %v96 = vadd.f32 %v92, %v94
    %v97 = vmul.f32 %v85, 0.0
    %v98 = vmul.f32 %v86, 0.0
    %v99 = vsub.f32 %v95, %v97
    %v100 = vsub.f32 %v96, %v98
    %v101 = vmul.f32 %v73, 0.0
    %v102 = vmul.f32 %v74, 0.0
    %v103 = vmul.f32 %v77, %v41
    %v104 = vmul.f32 %v78, %v42
    %v105 = vadd.f32 %v101, %v103
    %v106 = vadd.f32 %v102, %v104
    %v107 = vmul.f32 %v81, 0.0
    %v108 = vmul.f32 %v82, 0.0
    %v109 = vadd.f32 %v105, %v107
    %v110 = vadd.f32 %v106, %v108
    %v111 = vmul.f32 %v85, %v42
    %v112 = vmul.f32 %v86, %v41
    %v113 = vadd.f32 %v109, %v111
    %v114 = vadd.f32 %v110, %v112
    %s115 = sld [smem:[#allocation2 + $0x8]]
    %s116 = sld [smem:[#allocation2 + $0x9]]
    %s117 = sld [smem:[#allocation2 + $0xa]]
    %s118 = sld [smem:[#allocation2 + $0xb]]
    %s119 = sld [smem:[#allocation2 + $0xc]]
    %s120 = sld [smem:[#allocation2 + $0xd]]
    %s121 = sld [smem:[#allocation2 + $0xe]]
    %s122 = sld [smem:[#allocation2 + $0xf]]
    %v123 = vand.u32 %v44, 64
    %v124 = vand.u32 %v45, 64
    %vm125 = vcmp.ne.s32.totalorder %v123, 0
    %vm126 = vcmp.ne.s32.totalorder %v124, 0
    %v127 = vstv %s121
    %v128 = vstv %s115
    %v129 = vsel %vm125, %v127, %v128
    %v130 = vsel %vm126, %v127, %v128
    %v131 = vstv %s122
    %v132 = vstv %s116
    %v133 = vsel %vm125, %v131, %v132
    %v134 = vsel %vm126, %v131, %v132
    %v135 = vstv %s119
    %v136 = vstv %s117
    %v137 = vsel %vm125, %v135, %v136
    %v138 = vsel %vm126, %v135, %v136
    %v139 = vstv %s120
    %v140 = vstv %s118
    %v141 = vsel %vm125, %v139, %v140
    %v142 = vsel %vm126, %v139, %v140
    %vm143 = vmxor %vm125, %vm57
    %vm144 = vmxor %vm126, %vm58
    %145 = vrot.lane.b32.xlu0 %v99, 64
    %v146 = vpop.permute.xlu0 %145
    %147 = vrot.lane.b32.xlu0 %v100, 64
    %v148 = vpop.permute.xlu0 %147
    %vm149 = vcmp.lt.s32.totalorder %v44, 64
    %v150 = vsel %vm149, %v146, %v148
    %v151 = vsel %vm149, %v148, %v146
    %v152 = vsel %vm143, %v150, %v151
    %v153 = vsel %vm144, %v151, %v150
    %154 = vrot.lane.b32.xlu0 %v113, 64
    %v155 = vpop.permute.xlu0 %154
    %156 = vrot.lane.b32.xlu0 %v114, 64
    %v157 = vpop.permute.xlu0 %156
    %v158 = vsel %vm149, %v155, %v157
    %v159 = vsel %vm149, %v157, %v155
    %v160 = vsel %vm143, %v158, %v159
    %v161 = vsel %vm144, %v159, %v158
    %v162 = vmul.f32 %v129, %v99
    %v163 = vmul.f32 %v130, %v100
    %v164 = vmul.f32 %v133, %v113
    %v165 = vmul.f32 %v134, %v114
    %v166 = vsub.f32 %v162, %v164
    %v167 = vsub.f32 %v163, %v165
    %v168 = vmul.f32 %v137, %v152
    %v169 = vmul.f32 %v138, %v153
    %v170 = vadd.f32 %v166, %v168
    %v171 = vadd.f32 %v167, %v169
    %v172 = vmul.f32 %v141, %v160
    %v173 = vmul.f32 %v142, %v161
    %v174 = vsub.f32 %v170, %v172
    %v175 = vsub.f32 %v171, %v173
    %v176 = vmul.f32 %v129, %v113
    %v177 = vmul.f32 %v130, %v114
    %v178 = vmul.f32 %v133, %v99
    %v179 = vmul.f32 %v134, %v100
    %v180 = vadd.f32 %v176, %v178
    %v181 = vadd.f32 %v177, %v179
    %v182 = vmul.f32 %v137, %v160
    %v183 = vmul.f32 %v138, %v161
    %v184 = vadd.f32 %v180, %v182
    %v185 = vadd.f32 %v181, %v183
    %v186 = vmul.f32 %v141, %v152
    %v187 = vmul.f32 %v142, %v153
    %v188 = vadd.f32 %v184, %v186
    %v189 = vadd.f32 %v185, %v187
    %s190 = sld [smem:[#allocation2 + $0x10]]
    %s191 = sld [smem:[#allocation2 + $0x11]]
    %s192 = sld [smem:[#allocation2 + $0x12]]
    %s193 = sld [smem:[#allocation2 + $0x13]]
    %s194 = sld [smem:[#allocation2 + $0x14]]
    %s195 = sld [smem:[#allocation2 + $0x15]]
    %s196 = sld [smem:[#allocation2 + $0x16]]
    %s197 = sld [smem:[#allocation2 + $0x17]]
    %v198 = vand.u32 %v44, 32
    %v199 = vand.u32 %v45, 32
    %vm200 = vcmp.ne.s32.totalorder %v198, 0
    %vm201 = vcmp.ne.s32.totalorder %v199, 0
    %v202 = vstv %s196
    %v203 = vstv %s190
    %v204 = vsel %vm200, %v202, %v203
    %v205 = vsel %vm201, %v202, %v203
    %v206 = vstv %s197
    %v207 = vstv %s191
    %v208 = vsel %vm200, %v206, %v207
    %v209 = vsel %vm201, %v206, %v207
    %v210 = vstv %s194
    %v211 = vstv %s192
    %v212 = vsel %vm200, %v210, %v211
    %v213 = vsel %vm201, %v210, %v211
    %v214 = vstv %s195
    %v215 = vstv %s193
    %v216 = vsel %vm200, %v214, %v215
    %v217 = vsel %vm201, %v214, %v215
    %vm218 = vmxor %vm200, %vm57
    %vm219 = vmxor %vm201, %vm58
    %220 = vrot.lane.b32.xlu0 %v174, 96
    %v221 = vpop.permute.xlu0 %220
    %222 = vrot.lane.b32.xlu0 %v175, 96
    %v223 = vpop.permute.xlu0 %222
    %vm224 = vcmp.lt.s32.totalorder %v44, 96
    %v225 = vsel %vm224, %v221, %v223
    %v226 = vsel %vm224, %v223, %v221
    %227 = vrot.lane.b32.xlu0 %v174, 32
    %v228 = vpop.permute.xlu0 %227
    %229 = vrot.lane.b32.xlu0 %v175, 32
    %v230 = vpop.permute.xlu0 %229
    %vm231 = vcmp.lt.s32.totalorder %v44, 32
    %v232 = vsel %vm231, %v228, %v230
    %v233 = vsel %vm231, %v230, %v228
    %v234 = vsel %vm218, %v225, %v233
    %v235 = vsel %vm219, %v226, %v232
    %236 = vrot.lane.b32.xlu0 %v188, 96
    %v237 = vpop.permute.xlu0 %236
    %238 = vrot.lane.b32.xlu0 %v189, 96
    %v239 = vpop.permute.xlu0 %238
    %v240 = vsel %vm224, %v237, %v239
    %v241 = vsel %vm224, %v239, %v237
    %242 = vrot.lane.b32.xlu0 %v188, 32
    %v243 = vpop.permute.xlu0 %242
    %244 = vrot.lane.b32.xlu0 %v189, 32
    %v245 = vpop.permute.xlu0 %244
    %v246 = vsel %vm231, %v243, %v245
    %v247 = vsel %vm231, %v245, %v243
    %v248 = vsel %vm218, %v240, %v247
    %v249 = vsel %vm219, %v241, %v246
    %v250 = vmul.f32 %v204, %v174
    %v251 = vmul.f32 %v205, %v175
    %v252 = vmul.f32 %v208, %v188
    %v253 = vmul.f32 %v209, %v189
    %v254 = vsub.f32 %v250, %v252
    %v255 = vsub.f32 %v251, %v253
    %v256 = vmul.f32 %v212, %v234
    %v257 = vmul.f32 %v213, %v235
    %v258 = vadd.f32 %v254, %v256
    %v259 = vadd.f32 %v255, %v257
    %v260 = vmul.f32 %v216, %v248
    %v261 = vmul.f32 %v217, %v249
    %v262 = vsub.f32 %v258, %v260
    %v263 = vsub.f32 %v259, %v261
    %v264 = vmul.f32 %v204, %v188
    %v265 = vmul.f32 %v205, %v189
    %v266 = vmul.f32 %v208, %v174
    %v267 = vmul.f32 %v209, %v175
    %v268 = vadd.f32 %v264, %v266
    %v269 = vadd.f32 %v265, %v267
    %v270 = vmul.f32 %v212, %v248
    %v271 = vmul.f32 %v213, %v249
    %v272 = vadd.f32 %v268, %v270
    %v273 = vadd.f32 %v269, %v271
    %v274 = vmul.f32 %v216, %v234
    %v275 = vmul.f32 %v217, %v235
    %v276 = vadd.f32 %v272, %v274
    %v277 = vadd.f32 %v273, %v275
    %s278 = sld [smem:[#allocation2 + $0x18]]
    %s279 = sld [smem:[#allocation2 + $0x19]]
    %s280 = sld [smem:[#allocation2 + $0x1a]]
    %s281 = sld [smem:[#allocation2 + $0x1b]]
    %s282 = sld [smem:[#allocation2 + $0x1c]]
    %s283 = sld [smem:[#allocation2 + $0x1d]]
    %s284 = sld [smem:[#allocation2 + $0x1e]]
    %s285 = sld [smem:[#allocation2 + $0x1f]]
    %v286 = vand.u32 %v44, 16
    %v287 = vand.u32 %v45, 16
    %vm288 = vcmp.ne.s32.totalorder %v286, 0
    %vm289 = vcmp.ne.s32.totalorder %v287, 0
    %v290 = vstv %s284
    %v291 = vstv %s278
    %v292 = vsel %vm288, %v290, %v291
    %v293 = vsel %vm289, %v290, %v291
    %v294 = vstv %s285
    %v295 = vstv %s279
    %v296 = vsel %vm288, %v294, %v295
    %v297 = vsel %vm289, %v294, %v295
    %v298 = vstv %s282
    %v299 = vstv %s280
    %v300 = vsel %vm288, %v298, %v299
    %v301 = vsel %vm289, %v298, %v299
    %v302 = vstv %s283
    %v303 = vstv %s281
    %v304 = vsel %vm288, %v302, %v303
    %v305 = vsel %vm289, %v302, %v303
    %vm306 = vmxor %vm288, %vm57
    %vm307 = vmxor %vm289, %vm58
    %308 = vrot.lane.b32.xlu0 %v262, 112
    %v309 = vpop.permute.xlu0 %308
    %310 = vrot.lane.b32.xlu0 %v263, 112
    %v311 = vpop.permute.xlu0 %310
    %vm312 = vcmp.lt.s32.totalorder %v44, 112
    %v313 = vsel %vm312, %v309, %v311
    %v314 = vsel %vm312, %v311, %v309
    %315 = vrot.lane.b32.xlu0 %v262, 16
    %v316 = vpop.permute.xlu0 %315
    %317 = vrot.lane.b32.xlu0 %v263, 16
    %v318 = vpop.permute.xlu0 %317
    %vm319 = vcmp.lt.s32.totalorder %v44, 16
    %v320 = vsel %vm319, %v316, %v318
    %v321 = vsel %vm319, %v318, %v316
    %v322 = vsel %vm306, %v313, %v321
    %v323 = vsel %vm307, %v314, %v320
    %324 = vrot.lane.b32.xlu0 %v276, 112
    %v325 = vpop.permute.xlu0 %324
    %326 = vrot.lane.b32.xlu0 %v277, 112
    %v327 = vpop.permute.xlu0 %326
    %v328 = vsel %vm312, %v325, %v327
    %v329 = vsel %vm312, %v327, %v325
    %330 = vrot.lane.b32.xlu0 %v276, 16
    %v331 = vpop.permute.xlu0 %330
    %332 = vrot.lane.b32.xlu0 %v277, 16
    %v333 = vpop.permute.xlu0 %332
    %v334 = vsel %vm319, %v331, %v333
    %v335 = vsel %vm319, %v333, %v331
    %v336 = vsel %vm306, %v328, %v335
    %v337 = vsel %vm307, %v329, %v334
    %v338 = vmul.f32 %v292, %v262
    %v339 = vmul.f32 %v293, %v263
    %v340 = vmul.f32 %v296, %v276
    %v341 = vmul.f32 %v297, %v277
    %v342 = vsub.f32 %v338, %v340
    %v343 = vsub.f32 %v339, %v341
    %v344 = vmul.f32 %v300, %v322
    %v345 = vmul.f32 %v301, %v323
    %v346 = vadd.f32 %v342, %v344
    %v347 = vadd.f32 %v343, %v345
    %v348 = vmul.f32 %v304, %v336
    %v349 = vmul.f32 %v305, %v337
    %v350 = vsub.f32 %v346, %v348
    %v351 = vsub.f32 %v347, %v349
    %v352 = vmul.f32 %v292, %v276
    %v353 = vmul.f32 %v293, %v277
    %v354 = vmul.f32 %v296, %v262
    %v355 = vmul.f32 %v297, %v263
    %v356 = vadd.f32 %v352, %v354
    %v357 = vadd.f32 %v353, %v355
    %v358 = vmul.f32 %v300, %v336
    %v359 = vmul.f32 %v301, %v337
    %v360 = vadd.f32 %v356, %v358
    %v361 = vadd.f32 %v357, %v359
    %v362 = vmul.f32 %v304, %v322
    %v363 = vmul.f32 %v305, %v323
    %v364 = vadd.f32 %v360, %v362
    %v365 = vadd.f32 %v361, %v363
    %s366 = sld [smem:[#allocation2 + $0x20]]
    %s367 = sld [smem:[#allocation2 + $0x21]]
    %s368 = sld [smem:[#allocation2 + $0x22]]
    %s369 = sld [smem:[#allocation2 + $0x23]]
    %s370 = sld [smem:[#allocation2 + $0x24]]
    %s371 = sld [smem:[#allocation2 + $0x25]]
    %s372 = sld [smem:[#allocation2 + $0x26]]
    %s373 = sld [smem:[#allocation2 + $0x27]]
    %v374 = vand.u32 %v44, 8
    %v375 = vand.u32 %v45, 8
    %vm376 = vcmp.ne.s32.totalorder %v374, 0
    %vm377 = vcmp.ne.s32.totalorder %v375, 0
    %v378 = vstv %s372
    %v379 = vstv %s366
    %v380 = vsel %vm376, %v378, %v379
    %v381 = vsel %vm377, %v378, %v379
    %v382 = vstv %s373
    %v383 = vstv %s367
    %v384 = vsel %vm376, %v382, %v383
    %v385 = vsel %vm377, %v382, %v383
    %v386 = vstv %s370
    %v387 = vstv %s368
    %v388 = vsel %vm376, %v386, %v387
    %v389 = vsel %vm377, %v386, %v387
    %v390 = vstv %s371
    %v391 = vstv %s369
    %v392 = vsel %vm376, %v390, %v391
    %v393 = vsel %vm377, %v390, %v391
    %vm394 = vmxor %vm376, %vm57
    %vm395 = vmxor %vm377, %vm58
    %396 = vrot.lane.b32.xlu0 %v350, 120
    %v397 = vpop.permute.xlu0 %396
    %398 = vrot.lane.b32.xlu0 %v351, 120
    %v399 = vpop.permute.xlu0 %398
    %vm400 = vcmp.lt.s32.totalorder %v44, 120
    %v401 = vsel %vm400, %v397, %v399
    %v402 = vsel %vm400, %v399, %v397
    %403 = vrot.lane.b32.xlu0 %v350, 8
    %v404 = vpop.permute.xlu0 %403
    %405 = vrot.lane.b32.xlu0 %v351, 8
    %v406 = vpop.permute.xlu0 %405
    %vm407 = vcmp.lt.s32.totalorder %v44, 8
    %v408 = vsel %vm407, %v404, %v406
    %v409 = vsel %vm407, %v406, %v404
    %v410 = vsel %vm394, %v401, %v409
    %v411 = vsel %vm395, %v402, %v408
    %412 = vrot.lane.b32.xlu0 %v364, 120
    %v413 = vpop.permute.xlu0 %412
    %414 = vrot.lane.b32.xlu0 %v365, 120
    %v415 = vpop.permute.xlu0 %414
    %v416 = vsel %vm400, %v413, %v415
    %v417 = vsel %vm400, %v415, %v413
    %418 = vrot.lane.b32.xlu0 %v364, 8
    %v419 = vpop.permute.xlu0 %418
    %420 = vrot.lane.b32.xlu0 %v365, 8
    %v421 = vpop.permute.xlu0 %420
    %v422 = vsel %vm407, %v419, %v421
    %v423 = vsel %vm407, %v421, %v419
    %v424 = vsel %vm394, %v416, %v423
    %v425 = vsel %vm395, %v417, %v422
    %v426 = vmul.f32 %v380, %v350
    %v427 = vmul.f32 %v381, %v351
    %v428 = vmul.f32 %v384, %v364
    %v429 = vmul.f32 %v385, %v365
    %v430 = vsub.f32 %v426, %v428
    %v431 = vsub.f32 %v427, %v429
    %v432 = vmul.f32 %v388, %v410
    %v433 = vmul.f32 %v389, %v411
    %v434 = vadd.f32 %v430, %v432
    %v435 = vadd.f32 %v431, %v433
    %v436 = vmul.f32 %v392, %v424
    %v437 = vmul.f32 %v393, %v425
    %v438 = vsub.f32 %v434, %v436
    %v439 = vsub.f32 %v435, %v437
    %v440 = vmul.f32 %v380, %v364
    %v441 = vmul.f32 %v381, %v365
    %v442 = vmul.f32 %v384, %v350
    %v443 = vmul.f32 %v385, %v351
    %v444 = vadd.f32 %v440, %v442
    %v445 = vadd.f32 %v441, %v443
    %v446 = vmul.f32 %v388, %v424
    %v447 = vmul.f32 %v389, %v425
    %v448 = vadd.f32 %v444, %v446
    %v449 = vadd.f32 %v445, %v447
    %v450 = vmul.f32 %v392, %v410
    %v451 = vmul.f32 %v393, %v411
    %v452 = vadd.f32 %v448, %v450
    %v453 = vadd.f32 %v449, %v451
    %s454 = sld [smem:[#allocation2 + $0x28]]
    %s455 = sld [smem:[#allocation2 + $0x29]]
    %s456 = sld [smem:[#allocation2 + $0x2a]]
    %s457 = sld [smem:[#allocation2 + $0x2b]]
    %s458 = sld [smem:[#allocation2 + $0x2c]]
    %s459 = sld [smem:[#allocation2 + $0x2d]]
    %s460 = sld [smem:[#allocation2 + $0x2e]]
    %s461 = sld [smem:[#allocation2 + $0x2f]]
    %v462 = vand.u32 %v44, 4
    %v463 = vand.u32 %v45, 4
    %vm464 = vcmp.ne.s32.totalorder %v462, 0
    %vm465 = vcmp.ne.s32.totalorder %v463, 0
    %v466 = vstv %s460
    %v467 = vstv %s454
    %v468 = vsel %vm464, %v466, %v467
    %v469 = vsel %vm465, %v466, %v467
    %v470 = vstv %s461
    %v471 = vstv %s455
    %v472 = vsel %vm464, %v470, %v471
    %v473 = vsel %vm465, %v470, %v471
    %v474 = vstv %s458
    %v475 = vstv %s456
    %v476 = vsel %vm464, %v474, %v475
    %v477 = vsel %vm465, %v474, %v475
    %v478 = vstv %s459
    %v479 = vstv %s457
    %v480 = vsel %vm464, %v478, %v479
    %v481 = vsel %vm465, %v478, %v479
    %vm482 = vmxor %vm464, %vm57
    %vm483 = vmxor %vm465, %vm58
    %484 = vrot.lane.b32.xlu0 %v438, 124
    %v485 = vpop.permute.xlu0 %484
    %486 = vrot.lane.b32.xlu0 %v439, 124
    %v487 = vpop.permute.xlu0 %486
    %vm488 = vcmp.lt.s32.totalorder %v44, 124
    %v489 = vsel %vm488, %v485, %v487
    %v490 = vsel %vm488, %v487, %v485
    %491 = vrot.lane.b32.xlu0 %v438, 4
    %v492 = vpop.permute.xlu0 %491
    %493 = vrot.lane.b32.xlu0 %v439, 4
    %v494 = vpop.permute.xlu0 %493
    %vm495 = vcmp.lt.s32.totalorder %v44, 4
    %v496 = vsel %vm495, %v492, %v494
    %v497 = vsel %vm495, %v494, %v492
    %v498 = vsel %vm482, %v489, %v497
    %v499 = vsel %vm483, %v490, %v496
    %500 = vrot.lane.b32.xlu0 %v452, 124
    %v501 = vpop.permute.xlu0 %500
    %502 = vrot.lane.b32.xlu0 %v453, 124
    %v503 = vpop.permute.xlu0 %502
    %v504 = vsel %vm488, %v501, %v503
    %v505 = vsel %vm488, %v503, %v501
    %506 = vrot.lane.b32.xlu0 %v452, 4
    %v507 = vpop.permute.xlu0 %506
    %508 = vrot.lane.b32.xlu0 %v453, 4
    %v509 = vpop.permute.xlu0 %508
    %v510 = vsel %vm495, %v507, %v509
    %v511 = vsel %vm495, %v509, %v507
    %v512 = vsel %vm482, %v504, %v511
    %v513 = vsel %vm483, %v505, %v510
    %v514 = vmul.f32 %v468, %v438
    %v515 = vmul.f32 %v469, %v439
    %v516 = vmul.f32 %v472, %v452
    %v517 = vmul.f32 %v473, %v453
    %v518 = vsub.f32 %v514, %v516
    %v519 = vsub.f32 %v515, %v517
    %v520 = vmul.f32 %v476, %v498
    %v521 = vmul.f32 %v477, %v499
    %v522 = vadd.f32 %v518, %v520
    %v523 = vadd.f32 %v519, %v521
    %v524 = vmul.f32 %v480, %v512
    %v525 = vmul.f32 %v481, %v513
    %v526 = vsub.f32 %v522, %v524
    %v527 = vsub.f32 %v523, %v525
    %v528 = vmul.f32 %v468, %v452
    %v529 = vmul.f32 %v469, %v453
    %v530 = vmul.f32 %v472, %v438
    %v531 = vmul.f32 %v473, %v439
    %v532 = vadd.f32 %v528, %v530
    %v533 = vadd.f32 %v529, %v531
    %v534 = vmul.f32 %v476, %v512
    %v535 = vmul.f32 %v477, %v513
    %v536 = vadd.f32 %v532, %v534
    %v537 = vadd.f32 %v533, %v535
    %v538 = vmul.f32 %v480, %v498
    %v539 = vmul.f32 %v481, %v499
    %v540 = vadd.f32 %v536, %v538
    %v541 = vadd.f32 %v537, %v539
    %s542 = sld [smem:[#allocation2 + $0x30]]
    %s543 = sld [smem:[#allocation2 + $0x31]]
    %s544 = sld [smem:[#allocation2 + $0x32]]
    %s545 = sld [smem:[#allocation2 + $0x33]]
    %s546 = sld [smem:[#allocation2 + $0x34]]
    %s547 = sld [smem:[#allocation2 + $0x35]]
    %s548 = sld [smem:[#allocation2 + $0x36]]
    %s549 = sld [smem:[#allocation2 + $0x37]]
    %v550 = vand.u32 %v44, 2
    %v551 = vand.u32 %v45, 2
    %vm552 = vcmp.ne.s32.totalorder %v550, 0
    %vm553 = vcmp.ne.s32.totalorder %v551, 0
    %v554 = vstv %s548
    %v555 = vstv %s542
    %v556 = vsel %vm552, %v554, %v555
    %v557 = vsel %vm553, %v554, %v555
    %v558 = vstv %s549
    %v559 = vstv %s543
    %v560 = vsel %vm552, %v558, %v559
    %v561 = vsel %vm553, %v558, %v559
    %v562 = vstv %s546
    %v563 = vstv %s544
    %v564 = vsel %vm552, %v562, %v563
    %v565 = vsel %vm553, %v562, %v563
    %v566 = vstv %s547
    %v567 = vstv %s545
    %v568 = vsel %vm552, %v566, %v567
    %v569 = vsel %vm553, %v566, %v567
    %vm570 = vmxor %vm552, %vm57
    %vm571 = vmxor %vm553, %vm58
    %572 = vrot.lane.b32.xlu0 %v526, 126
    %v573 = vpop.permute.xlu0 %572
    %574 = vrot.lane.b32.xlu0 %v527, 126
    %v575 = vpop.permute.xlu0 %574
    %vm576 = vcmp.lt.s32.totalorder %v44, 126
    %v577 = vsel %vm576, %v573, %v575
    %v578 = vsel %vm576, %v575, %v573
    %579 = vrot.lane.b32.xlu0 %v526, 2
    %v580 = vpop.permute.xlu0 %579
    %581 = vrot.lane.b32.xlu0 %v527, 2
    %v582 = vpop.permute.xlu0 %581
    %vm583 = vcmp.lt.s32.totalorder %v44, 2
    %v584 = vsel %vm583, %v580, %v582
    %v585 = vsel %vm583, %v582, %v580
    %v586 = vsel %vm570, %v577, %v585
    %v587 = vsel %vm571, %v578, %v584
    %588 = vrot.lane.b32.xlu0 %v540, 126
    %v589 = vpop.permute.xlu0 %588
    %590 = vrot.lane.b32.xlu0 %v541, 126
    %v591 = vpop.permute.xlu0 %590
    %v592 = vsel %vm576, %v589, %v591
    %v593 = vsel %vm576, %v591, %v589
    %594 = vrot.lane.b32.xlu0 %v540, 2
    %v595 = vpop.permute.xlu0 %594
    %596 = vrot.lane.b32.xlu0 %v541, 2
    %v597 = vpop.permute.xlu0 %596
    %v598 = vsel %vm583, %v595, %v597
    %v599 = vsel %vm583, %v597, %v595
    %v600 = vsel %vm570, %v592, %v599
    %v601 = vsel %vm571, %v593, %v598
    %v602 = vmul.f32 %v556, %v526
    %v603 = vmul.f32 %v557, %v527
    %v604 = vmul.f32 %v560, %v540
    %v605 = vmul.f32 %v561, %v541
    %v606 = vsub.f32 %v602, %v604
    %v607 = vsub.f32 %v603, %v605
    %v608 = vmul.f32 %v564, %v586
    %v609 = vmul.f32 %v565, %v587
    %v610 = vadd.f32 %v606, %v608
    %v611 = vadd.f32 %v607, %v609
    %v612 = vmul.f32 %v568, %v600
    %v613 = vmul.f32 %v569, %v601
    %v614 = vsub.f32 %v610, %v612
    %v615 = vsub.f32 %v611, %v613
    %v616 = vmul.f32 %v556, %v540
    %v617 = vmul.f32 %v557, %v541
    %v618 = vmul.f32 %v560, %v526
    %v619 = vmul.f32 %v561, %v527
    %v620 = vadd.f32 %v616, %v618
    %v621 = vadd.f32 %v617, %v619
    %v622 = vmul.f32 %v564, %v600
    %v623 = vmul.f32 %v565, %v601
    %v624 = vadd.f32 %v620, %v622
    %v625 = vadd.f32 %v621, %v623
    %v626 = vmul.f32 %v568, %v586
    %v627 = vmul.f32 %v569, %v587
    %v628 = vadd.f32 %v624, %v626
    %v629 = vadd.f32 %v625, %v627
    %s630 = sld [smem:[#allocation2 + $0x38]]
    %s631 = sld [smem:[#allocation2 + $0x39]]
    %s632 = sld [smem:[#allocation2 + $0x3a]]
    %s633 = sld [smem:[#allocation2 + $0x3b]]
    %s634 = sld [smem:[#allocation2 + $0x3c]]
    %s635 = sld [smem:[#allocation2 + $0x3d]]
    %s636 = sld [smem:[#allocation2 + $0x3e]]
    %s637 = sld [smem:[#allocation2 + $0x3f]]
    %v638 = vand.u32 %v44, 1
    %v639 = vand.u32 %v45, 1
    %vm640 = vcmp.ne.s32.totalorder %v638, 0
    %vm641 = vcmp.ne.s32.totalorder %v639, 0
    %v642 = vstv %s636
    %v643 = vstv %s630
    %v644 = vsel %vm640, %v642, %v643
    %v645 = vsel %vm641, %v642, %v643
    %v646 = vstv %s637
    %v647 = vstv %s631
    %v648 = vsel %vm640, %v646, %v647
    %v649 = vsel %vm641, %v646, %v647
    %v650 = vstv %s634
    %v651 = vstv %s632
    %v652 = vsel %vm640, %v650, %v651
    %v653 = vsel %vm641, %v650, %v651
    %v654 = vstv %s635
    %v655 = vstv %s633
    %v656 = vsel %vm640, %v654, %v655
    %v657 = vsel %vm641, %v654, %v655
    %vm658 = vmxor %vm640, %vm57
    %vm659 = vmxor %vm641, %vm58
    %660 = vrot.lane.b32.xlu0 %v614, 127
    %v661 = vpop.permute.xlu0 %660
    %662 = vrot.lane.b32.xlu0 %v615, 127
    %v663 = vpop.permute.xlu0 %662
    %vm664 = vcmp.lt.s32.totalorder %v44, 127
    %v665 = vsel %vm664, %v661, %v663
    %v666 = vsel %vm664, %v663, %v661
    %667 = vrot.lane.b32.xlu0 %v614, 1
    %v668 = vpop.permute.xlu0 %667
    %669 = vrot.lane.b32.xlu0 %v615, 1
    %v670 = vpop.permute.xlu0 %669
    %v671 = vsel %vm50, %v668, %v670
    %v672 = vsel %vm50, %v670, %v668
    %v673 = vsel %vm658, %v665, %v672
    %v674 = vsel %vm659, %v666, %v671
    %675 = vrot.lane.b32.xlu0 %v628, 127
    %v676 = vpop.permute.xlu0 %675
    %677 = vrot.lane.b32.xlu0 %v629, 127
    %v678 = vpop.permute.xlu0 %677
    %v679 = vsel %vm664, %v676, %v678
    %v680 = vsel %vm664, %v678, %v676
    %681 = vrot.lane.b32.xlu0 %v628, 1
    %v682 = vpop.permute.xlu0 %681
    %683 = vrot.lane.b32.xlu0 %v629, 1
    %v684 = vpop.permute.xlu0 %683
    %v685 = vsel %vm50, %v682, %v684
    %v686 = vsel %vm50, %v684, %v682
    %v687 = vsel %vm658, %v679, %v686
    %v688 = vsel %vm659, %v680, %v685
    %v689 = vmul.f32 %v644, %v614
    %v690 = vmul.f32 %v645, %v615
    %v691 = vmul.f32 %v648, %v628
    %v692 = vmul.f32 %v649, %v629
    %v693 = vsub.f32 %v689, %v691
    %v694 = vsub.f32 %v690, %v692
    %v695 = vmul.f32 %v652, %v673
    %v696 = vmul.f32 %v653, %v674
    %v697 = vadd.f32 %v693, %v695
    %v698 = vadd.f32 %v694, %v696
    %v699 = vmul.f32 %v656, %v687
    %v700 = vmul.f32 %v657, %v688
    %v701 = vsub.f32 %v697, %v699
    %v702 = vsub.f32 %v698, %v700
    %v703 = vmul.f32 %v644, %v628
    %v704 = vmul.f32 %v645, %v629
    %v705 = vmul.f32 %v648, %v614
    %v706 = vmul.f32 %v649, %v615
    %v707 = vadd.f32 %v703, %v705
    %v708 = vadd.f32 %v704, %v706
    %v709 = vmul.f32 %v652, %v687
    %v710 = vmul.f32 %v653, %v688
    %v711 = vadd.f32 %v707, %v709
    %v712 = vadd.f32 %v708, %v710
    %v713 = vmul.f32 %v656, %v673
    %v714 = vmul.f32 %v657, %v674
    %v715 = vadd.f32 %v711, %v713
    %v716 = vadd.f32 %v712, %v714
    %717 = vrot.lane.b32.xlu0 %v701, 64
    %v718 = vpop.permute.xlu0 %717
    %719 = vrot.lane.b32.xlu0 %v702, 64
    %v720 = vpop.permute.xlu0 %719
    %v721 = vsel %vm149, %v718, %v720
    %v722 = vsel %vm149, %v720, %v718
    %v723 = vsel %vm143, %v721, %v722
    %v724 = vsel %vm144, %v722, %v721
    %725 = vrot.lane.b32.xlu0 %v715, 64
    %v726 = vpop.permute.xlu0 %725
    %727 = vrot.lane.b32.xlu0 %v716, 64
    %v728 = vpop.permute.xlu0 %727
    %v729 = vsel %vm149, %v726, %v728
    %v730 = vsel %vm149, %v728, %v726
    %v731 = vsel %vm143, %v729, %v730
    %v732 = vsel %vm144, %v730, %v729
    %v733 = vsel %vm69, %v723, %v701
    %v734 = vsel %vm70, %v724, %v702
    %v735 = vsel %vm69, %v731, %v715
    %v736 = vsel %vm70, %v732, %v716
    %737 = vrot.lane.b32.xlu0 %v733, 96
    %v738 = vpop.permute.xlu0 %737
    %739 = vrot.lane.b32.xlu0 %v734, 96
    %v740 = vpop.permute.xlu0 %739
    %v741 = vsel %vm224, %v738, %v740
    %v742 = vsel %vm224, %v740, %v738
    %743 = vrot.lane.b32.xlu0 %v733, 32
    %v744 = vpop.permute.xlu0 %743
    %745 = vrot.lane.b32.xlu0 %v734, 32
    %v746 = vpop.permute.xlu0 %745
    %v747 = vsel %vm231, %v744, %v746
    %v748 = vsel %vm231, %v746, %v744
    %v749 = vsel %vm218, %v741, %v748
    %v750 = vsel %vm219, %v742, %v747
    %751 = vrot.lane.b32.xlu0 %v735, 96
    %v752 = vpop.permute.xlu0 %751
    %753 = vrot.lane.b32.xlu0 %v736, 96
    %v754 = vpop.permute.xlu0 %753
    %v755 = vsel %vm224, %v752, %v754
    %v756 = vsel %vm224, %v754, %v752
    %757 = vrot.lane.b32.xlu0 %v735, 32
    %v758 = vpop.permute.xlu0 %757
    %759 = vrot.lane.b32.xlu0 %v736, 32
    %v760 = vpop.permute.xlu0 %759
    %v761 = vsel %vm231, %v758, %v760
    %v762 = vsel %vm231, %v760, %v758
    %v763 = vsel %vm218, %v755, %v762
    %v764 = vsel %vm219, %v756, %v761
    %v765 = vsel %vm125, %v749, %v733
    %v766 = vsel %vm126, %v750, %v734
    %v767 = vsel %vm125, %v763, %v735
    %v768 = vsel %vm126, %v764, %v736
    %769 = vrot.lane.b32.xlu0 %v765, 112
    %v770 = vpop.permute.xlu0 %769
    %771 = vrot.lane.b32.xlu0 %v766, 112
    %v772 = vpop.permute.xlu0 %771
    %v773 = vsel %vm312, %v770, %v772
    %v774 = vsel %vm312, %v772, %v770
    %775 = vrot.lane.b32.xlu0 %v765, 16
    %v776 = vpop.permute.xlu0 %775
    %777 = vrot.lane.b32.xlu0 %v766, 16
    %v778 = vpop.permute.xlu0 %777
    %v779 = vsel %vm319, %v776, %v778
    %v780 = vsel %vm319, %v778, %v776
    %v781 = vsel %vm306, %v773, %v780
    %v782 = vsel %vm307, %v774, %v779
    %783 = vrot.lane.b32.xlu0 %v767, 112
    %v784 = vpop.permute.xlu0 %783
    %785 = vrot.lane.b32.xlu0 %v768, 112
    %v786 = vpop.permute.xlu0 %785
    %v787 = vsel %vm312, %v784, %v786
    %v788 = vsel %vm312, %v786, %v784
    %789 = vrot.lane.b32.xlu0 %v767, 16
    %v790 = vpop.permute.xlu0 %789
    %791 = vrot.lane.b32.xlu0 %v768, 16
    %v792 = vpop.permute.xlu0 %791
    %v793 = vsel %vm319, %v790, %v792
    %v794 = vsel %vm319, %v792, %v790
    %v795 = vsel %vm306, %v787, %v794
    %v796 = vsel %vm307, %v788, %v793
    %v797 = vsel %vm200, %v781, %v765
    %v798 = vsel %vm201, %v782, %v766
    %v799 = vsel %vm200, %v795, %v767
    %v800 = vsel %vm201, %v796, %v768
    %801 = vrot.lane.b32.xlu0 %v797, 120
    %v802 = vpop.permute.xlu0 %801
    %803 = vrot.lane.b32.xlu0 %v798, 120
    %v804 = vpop.permute.xlu0 %803
    %v805 = vsel %vm400, %v802, %v804
    %v806 = vsel %vm400, %v804, %v802
    %807 = vrot.lane.b32.xlu0 %v797, 8
    %v808 = vpop.permute.xlu0 %807
    %809 = vrot.lane.b32.xlu0 %v798, 8
    %v810 = vpop.permute.xlu0 %809
    %v811 = vsel %vm407, %v808, %v810
    %v812 = vsel %vm407, %v810, %v808
    %v813 = vsel %vm394, %v805, %v812
    %v814 = vsel %vm395, %v806, %v811
    %815 = vrot.lane.b32.xlu0 %v799, 120
    %v816 = vpop.permute.xlu0 %815
    %817 = vrot.lane.b32.xlu0 %v800, 120
    %v818 = vpop.permute.xlu0 %817
    %v819 = vsel %vm400, %v816, %v818
    %v820 = vsel %vm400, %v818, %v816
    %821 = vrot.lane.b32.xlu0 %v799, 8
    %v822 = vpop.permute.xlu0 %821
    %823 = vrot.lane.b32.xlu0 %v800, 8
    %v824 = vpop.permute.xlu0 %823
    %v825 = vsel %vm407, %v822, %v824
    %v826 = vsel %vm407, %v824, %v822
    %v827 = vsel %vm394, %v819, %v826
    %v828 = vsel %vm395, %v820, %v825
    %v829 = vsel %vm288, %v813, %v797
    %v830 = vsel %vm289, %v814, %v798
    %v831 = vsel %vm288, %v827, %v799
    %v832 = vsel %vm289, %v828, %v800
    %833 = vrot.lane.b32.xlu0 %v829, 124
    %v834 = vpop.permute.xlu0 %833
    %835 = vrot.lane.b32.xlu0 %v830, 124
    %v836 = vpop.permute.xlu0 %835
    %v837 = vsel %vm488, %v834, %v836
    %v838 = vsel %vm488, %v836, %v834
    %839 = vrot.lane.b32.xlu0 %v829, 4
    %v840 = vpop.permute.xlu0 %839
    %841 = vrot.lane.b32.xlu0 %v830, 4
    %v842 = vpop.permute.xlu0 %841
    %v843 = vsel %vm495, %v840, %v842
    %v844 = vsel %vm495, %v842, %v840
    %v845 = vsel %vm482, %v837, %v844
    %v846 = vsel %vm483, %v838, %v843
    %847 = vrot.lane.b32.xlu0 %v831, 124
    %v848 = vpop.permute.xlu0 %847
    %849 = vrot.lane.b32.xlu0 %v832, 124
    %v850 = vpop.permute.xlu0 %849
    %v851 = vsel %vm488, %v848, %v850
    %v852 = vsel %vm488, %v850, %v848
    %853 = vrot.lane.b32.xlu0 %v831, 4
    %v854 = vpop.permute.xlu0 %853
    %855 = vrot.lane.b32.xlu0 %v832, 4
    %v856 = vpop.permute.xlu0 %855
    %v857 = vsel %vm495, %v854, %v856
    %v858 = vsel %vm495, %v856, %v854
    %v859 = vsel %vm482, %v851, %v858
    %v860 = vsel %vm483, %v852, %v857
    %v861 = vsel %vm376, %v845, %v829
    %v862 = vsel %vm377, %v846, %v830
    %v863 = vsel %vm376, %v859, %v831
    %v864 = vsel %vm377, %v860, %v832
    %865 = vrot.lane.b32.xlu0 %v861, 126
    %v866 = vpop.permute.xlu0 %865
    %867 = vrot.lane.b32.xlu0 %v862, 126
    %v868 = vpop.permute.xlu0 %867
    %v869 = vsel %vm576, %v866, %v868
    %v870 = vsel %vm576, %v868, %v866
    %871 = vrot.lane.b32.xlu0 %v861, 2
    %v872 = vpop.permute.xlu0 %871
    %873 = vrot.lane.b32.xlu0 %v862, 2
    %v874 = vpop.permute.xlu0 %873
    %v875 = vsel %vm583, %v872, %v874
    %v876 = vsel %vm583, %v874, %v872
    %v877 = vsel %vm570, %v869, %v876
    %v878 = vsel %vm571, %v870, %v875
    %879 = vrot.lane.b32.xlu0 %v863, 126
    %v880 = vpop.permute.xlu0 %879
    %881 = vrot.lane.b32.xlu0 %v864, 126
    %v882 = vpop.permute.xlu0 %881
    %v883 = vsel %vm576, %v880, %v882
    %v884 = vsel %vm576, %v882, %v880
    %885 = vrot.lane.b32.xlu0 %v863, 2
    %v886 = vpop.permute.xlu0 %885
    %887 = vrot.lane.b32.xlu0 %v864, 2
    %v888 = vpop.permute.xlu0 %887
    %v889 = vsel %vm583, %v886, %v888
    %v890 = vsel %vm583, %v888, %v886
    %v891 = vsel %vm570, %v883, %v890
    %v892 = vsel %vm571, %v884, %v889
    %v893 = vsel %vm464, %v877, %v861
    %v894 = vsel %vm465, %v878, %v862
    %v895 = vsel %vm464, %v891, %v863
    %v896 = vsel %vm465, %v892, %v864
    %897 = vrot.lane.b32.xlu0 %v893, 127
    %v898 = vpop.permute.xlu0 %897
    %899 = vrot.lane.b32.xlu0 %v894, 127
    %v900 = vpop.permute.xlu0 %899
    %v901 = vsel %vm664, %v898, %v900
    %v902 = vsel %vm664, %v900, %v898
    %903 = vrot.lane.b32.xlu0 %v893, 1
    %v904 = vpop.permute.xlu0 %903
    %905 = vrot.lane.b32.xlu0 %v894, 1
    %v906 = vpop.permute.xlu0 %905
    %v907 = vsel %vm50, %v904, %v906
    %v908 = vsel %vm50, %v906, %v904
    %v909 = vsel %vm658, %v901, %v908
    %v910 = vsel %vm659, %v902, %v907
    %911 = vrot.lane.b32.xlu0 %v895, 127
    %v912 = vpop.permute.xlu0 %911
    %913 = vrot.lane.b32.xlu0 %v896, 127
    %v914 = vpop.permute.xlu0 %913
    %v915 = vsel %vm664, %v912, %v914
    %v916 = vsel %vm664, %v914, %v912
    %917 = vrot.lane.b32.xlu0 %v895, 1
    %v918 = vpop.permute.xlu0 %917
    %919 = vrot.lane.b32.xlu0 %v896, 1
    %v920 = vpop.permute.xlu0 %919
    %v921 = vsel %vm50, %v918, %v920
    %v922 = vsel %vm50, %v920, %v918
    %v923 = vsel %vm658, %v915, %v922
    %v924 = vsel %vm659, %v916, %v921
    %v925 = vsel %vm552, %v909, %v893
    %v926 = vsel %vm553, %v910, %v894
    %v927 = vsel %vm552, %v923, %v895
    %v928 = vsel %vm553, %v924, %v896
    %v929 = vsel %vm640, %v926, %v925
    %v930 = vsel %vm641, %v925, %v926
    %v931 = vsel %vm640, %v928, %v927
    %v932 = vsel %vm641, %v927, %v928
    %s933 = sld [smem:[#allocation2 + $0x40]]
    %s934 = sld [smem:[#allocation2 + $0x41]]
    %s935 = sld [smem:[#allocation2 + $0x42]]
    %s936 = sld [smem:[#allocation2 + $0x43]]
    %s937 = sld [smem:[#allocation2 + $0x44]]
    %s938 = sld [smem:[#allocation2 + $0x45]]
    %s939 = sld [smem:[#allocation2 + $0x46]]
    %s940 = sld [smem:[#allocation2 + $0x47]]
    %v941 = vstv %s939
    %v942 = vstv %s933
    %v943 = vsel %vm69, %v941, %v942
    %v944 = vsel %vm70, %v941, %v942
    %v945 = vstv %s940
    %v946 = vstv %s934
    %v947 = vsel %vm69, %v945, %v946
    %v948 = vsel %vm70, %v945, %v946
    %v949 = vstv %s937
    %v950 = vstv %s935
    %v951 = vsel %vm69, %v949, %v950
    %v952 = vsel %vm70, %v949, %v950
    %v953 = vstv %s938
    %v954 = vstv %s936
    %v955 = vsel %vm69, %v953, %v954
    %v956 = vsel %vm70, %v953, %v954
    %v957 = vmul.f32 %v943, %v929
    %v958 = vmul.f32 %v944, %v930
    %v959 = vmul.f32 %v947, %v931
    %v960 = vmul.f32 %v948, %v932
    %v961 = vsub.f32 %v957, %v959
    %v962 = vsub.f32 %v958, %v960
    %v963 = vmul.f32 %v951, %v930
    %v964 = vmul.f32 %v952, %v929
    %v965 = vadd.f32 %v961, %v963
    %v966 = vadd.f32 %v962, %v964
    %v967 = vmul.f32 %v955, %v932
    %v968 = vmul.f32 %v956, %v931
    %v969 = vsub.f32 %v965, %v967
    %v970 = vsub.f32 %v966, %v968
    %v971 = vmul.f32 %v943, %v931
    %v972 = vmul.f32 %v944, %v932
    %v973 = vmul.f32 %v947, %v929
    %v974 = vmul.f32 %v948, %v930
    %v975 = vadd.f32 %v971, %v973
    %v976 = vadd.f32 %v972, %v974
    %v977 = vmul.f32 %v951, %v932
    %v978 = vmul.f32 %v952, %v931
    %v979 = vadd.f32 %v975, %v977
    %v980 = vadd.f32 %v976, %v978
    %v981 = vmul.f32 %v955, %v930
    %v982 = vmul.f32 %v956, %v929
    %v983 = vadd.f32 %v979, %v981
    %v984 = vadd.f32 %v980, %v982
    %s985 = sld [smem:[#allocation2 + $0x48]]
    %s986 = sld [smem:[#allocation2 + $0x49]]
    %s987 = sld [smem:[#allocation2 + $0x4a]]
    %s988 = sld [smem:[#allocation2 + $0x4b]]
    %s989 = sld [smem:[#allocation2 + $0x4c]]
    %s990 = sld [smem:[#allocation2 + $0x4d]]
    %s991 = sld [smem:[#allocation2 + $0x4e]]
    %s992 = sld [smem:[#allocation2 + $0x4f]]
    %v993 = vstv %s991
    %v994 = vstv %s985
    %v995 = vsel %vm125, %v993, %v994
    %v996 = vsel %vm126, %v993, %v994
    %v997 = vstv %s992
    %v998 = vstv %s986
    %v999 = vsel %vm125, %v997, %v998
    %v1000 = vsel %vm126, %v997, %v998
    %v1001 = vstv %s989
    %v1002 = vstv %s987
    %v1003 = vsel %vm125, %v1001, %v1002
    %v1004 = vsel %vm126, %v1001, %v1002
    %v1005 = vstv %s990
    %v1006 = vstv %s988
    %v1007 = vsel %vm125, %v1005, %v1006
    %v1008 = vsel %vm126, %v1005, %v1006
    %1009 = vrot.lane.b32.xlu0 %v969, 64
    %v1010 = vpop.permute.xlu0 %1009
    %1011 = vrot.lane.b32.xlu0 %v970, 64
    %v1012 = vpop.permute.xlu0 %1011
    %v1013 = vsel %vm149, %v1010, %v1012
    %v1014 = vsel %vm149, %v1012, %v1010
    %v1015 = vsel %vm143, %v1013, %v1014
    %v1016 = vsel %vm144, %v1014, %v1013
    %1017 = vrot.lane.b32.xlu0 %v983, 64
    %v1018 = vpop.permute.xlu0 %1017
    %1019 = vrot.lane.b32.xlu0 %v984, 64
    %v1020 = vpop.permute.xlu0 %1019
    %v1021 = vsel %vm149, %v1018, %v1020
    %v1022 = vsel %vm149, %v1020, %v1018
    %v1023 = vsel %vm143, %v1021, %v1022
    %v1024 = vsel %vm144, %v1022, %v1021
    %v1025 = vmul.f32 %v995, %v969
    %v1026 = vmul.f32 %v996, %v970
    %v1027 = vmul.f32 %v999, %v983
    %v1028 = vmul.f32 %v1000, %v984
    %v1029 = vsub.f32 %v1025, %v1027
    %v1030 = vsub.f32 %v1026, %v1028
    %v1031 = vmul.f32 %v1003, %v1015
    %v1032 = vmul.f32 %v1004, %v1016
    %v1033 = vadd.f32 %v1029, %v1031
    %v1034 = vadd.f32 %v1030, %v1032
    %v1035 = vmul.f32 %v1007, %v1023
    %v1036 = vmul.f32 %v1008, %v1024
    %v1037 = vsub.f32 %v1033, %v1035
    %v1038 = vsub.f32 %v1034, %v1036
    %v1039 = vmul.f32 %v995, %v983
    %v1040 = vmul.f32 %v996, %v984
    %v1041 = vmul.f32 %v999, %v969
    %v1042 = vmul.f32 %v1000, %v970
    %v1043 = vadd.f32 %v1039, %v1041
    %v1044 = vadd.f32 %v1040, %v1042
    %v1045 = vmul.f32 %v1003, %v1023
    %v1046 = vmul.f32 %v1004, %v1024
    %v1047 = vadd.f32 %v1043, %v1045
    %v1048 = vadd.f32 %v1044, %v1046
    %v1049 = vmul.f32 %v1007, %v1015
    %v1050 = vmul.f32 %v1008, %v1016
    %v1051 = vadd.f32 %v1047, %v1049
    %v1052 = vadd.f32 %v1048, %v1050
    %s1053 = sld [smem:[#allocation2 + $0x50]]
    %s1054 = sld [smem:[#allocation2 + $0x51]]
    %s1055 = sld [smem:[#allocation2 + $0x52]]
    %s1056 = sld [smem:[#allocation2 + $0x53]]
    %s1057 = sld [smem:[#allocation2 + $0x54]]
    %s1058 = sld [smem:[#allocation2 + $0x55]]
    %s1059 = sld [smem:[#allocation2 + $0x56]]
    %s1060 = sld [smem:[#allocation2 + $0x57]]
    %v1061 = vstv %s1059
    %v1062 = vstv %s1053
    %v1063 = vsel %vm200, %v1061, %v1062
    %v1064 = vsel %vm201, %v1061, %v1062
    %v1065 = vstv %s1060
    %v1066 = vstv %s1054
    %v1067 = vsel %vm200, %v1065, %v1066
    %v1068 = vsel %vm201, %v1065, %v1066
    %v1069 = vstv %s1057
    %v1070 = vstv %s1055
    %v1071 = vsel %vm200, %v1069, %v1070
    %v1072 = vsel %vm201, %v1069, %v1070
    %v1073 = vstv %s1058
    %v1074 = vstv %s1056
    %v1075 = vsel %vm200, %v1073, %v1074
    %v1076 = vsel %vm201, %v1073, %v1074
    %1077 = vrot.lane.b32.xlu0 %v1037, 96
    %v1078 = vpop.permute.xlu0 %1077
    %1079 = vrot.lane.b32.xlu0 %v1038, 96
    %v1080 = vpop.permute.xlu0 %1079
    %v1081 = vsel %vm224, %v1078, %v1080
    %v1082 = vsel %vm224, %v1080, %v1078
    %1083 = vrot.lane.b32.xlu0 %v1037, 32
    %v1084 = vpop.permute.xlu0 %1083
    %1085 = vrot.lane.b32.xlu0 %v1038, 32
    %v1086 = vpop.permute.xlu0 %1085
    %v1087 = vsel %vm231, %v1084, %v1086
    %v1088 = vsel %vm231, %v1086, %v1084
    %v1089 = vsel %vm218, %v1081, %v1088
    %v1090 = vsel %vm219, %v1082, %v1087
    %1091 = vrot.lane.b32.xlu0 %v1051, 96
    %v1092 = vpop.permute.xlu0 %1091
    %1093 = vrot.lane.b32.xlu0 %v1052, 96
    %v1094 = vpop.permute.xlu0 %1093
    %v1095 = vsel %vm224, %v1092, %v1094
    %v1096 = vsel %vm224, %v1094, %v1092
    %1097 = vrot.lane.b32.xlu0 %v1051, 32
    %v1098 = vpop.permute.xlu0 %1097
    %1099 = vrot.lane.b32.xlu0 %v1052, 32
    %v1100 = vpop.permute.xlu0 %1099
    %v1101 = vsel %vm231, %v1098, %v1100
    %v1102 = vsel %vm231, %v1100, %v1098
    %v1103 = vsel %vm218, %v1095, %v1102
    %v1104 = vsel %vm219, %v1096, %v1101
    %v1105 = vmul.f32 %v1063, %v1037
    %v1106 = vmul.f32 %v1064, %v1038
    %v1107 = vmul.f32 %v1067, %v1051
    %v1108 = vmul.f32 %v1068, %v1052
    %v1109 = vsub.f32 %v1105, %v1107
    %v1110 = vsub.f32 %v1106, %v1108
    %v1111 = vmul.f32 %v1071, %v1089
    %v1112 = vmul.f32 %v1072, %v1090
    %v1113 = vadd.f32 %v1109, %v1111
    %v1114 = vadd.f32 %v1110, %v1112
    %v1115 = vmul.f32 %v1075, %v1103
    %v1116 = vmul.f32 %v1076, %v1104
    %v1117 = vsub.f32 %v1113, %v1115
    %v1118 = vsub.f32 %v1114, %v1116
    %v1119 = vmul.f32 %v1063, %v1051
    %v1120 = vmul.f32 %v1064, %v1052
    %v1121 = vmul.f32 %v1067, %v1037
    %v1122 = vmul.f32 %v1068, %v1038
    %v1123 = vadd.f32 %v1119, %v1121
    %v1124 = vadd.f32 %v1120, %v1122
    %v1125 = vmul.f32 %v1071, %v1103
    %v1126 = vmul.f32 %v1072, %v1104
    %v1127 = vadd.f32 %v1123, %v1125
    %v1128 = vadd.f32 %v1124, %v1126
    %v1129 = vmul.f32 %v1075, %v1089
    %v1130 = vmul.f32 %v1076, %v1090
    %v1131 = vadd.f32 %v1127, %v1129
    %v1132 = vadd.f32 %v1128, %v1130
    %s1133 = sld [smem:[#allocation2 + $0x58]]
    %s1134 = sld [smem:[#allocation2 + $0x59]]
    %s1135 = sld [smem:[#allocation2 + $0x5a]]
    %s1136 = sld [smem:[#allocation2 + $0x5b]]
    %s1137 = sld [smem:[#allocation2 + $0x5c]]
    %s1138 = sld [smem:[#allocation2 + $0x5d]]
    %s1139 = sld [smem:[#allocation2 + $0x5e]]
    %s1140 = sld [smem:[#allocation2 + $0x5f]]
    %v1141 = vstv %s1139
    %v1142 = vstv %s1133
    %v1143 = vsel %vm288, %v1141, %v1142
    %v1144 = vsel %vm289, %v1141, %v1142
    %v1145 = vstv %s1140
    %v1146 = vstv %s1134
    %v1147 = vsel %vm288, %v1145, %v1146
    %v1148 = vsel %vm289, %v1145, %v1146
    %v1149 = vstv %s1137
    %v1150 = vstv %s1135
    %v1151 = vsel %vm288, %v1149, %v1150
    %v1152 = vsel %vm289, %v1149, %v1150
    %v1153 = vstv %s1138
    %v1154 = vstv %s1136
    %v1155 = vsel %vm288, %v1153, %v1154
    %v1156 = vsel %vm289, %v1153, %v1154
    %1157 = vrot.lane.b32.xlu0 %v1117, 112
    %v1158 = vpop.permute.xlu0 %1157
    %1159 = vrot.lane.b32.xlu0 %v1118, 112
    %v1160 = vpop.permute.xlu0 %1159
    %v1161 = vsel %vm312, %v1158, %v1160
    %v1162 = vsel %vm312, %v1160, %v1158
    %1163 = vrot.lane.b32.xlu0 %v1117, 16
    %v1164 = vpop.permute.xlu0 %1163
    %1165 = vrot.lane.b32.xlu0 %v1118, 16
    %v1166 = vpop.permute.xlu0 %1165
    %v1167 = vsel %vm319, %v1164, %v1166
    %v1168 = vsel %vm319, %v1166, %v1164
    %v1169 = vsel %vm306, %v1161, %v1168
    %v1170 = vsel %vm307, %v1162, %v1167
    %1171 = vrot.lane.b32.xlu0 %v1131, 112
    %v1172 = vpop.permute.xlu0 %1171
    %1173 = vrot.lane.b32.xlu0 %v1132, 112
    %v1174 = vpop.permute.xlu0 %1173
    %v1175 = vsel %vm312, %v1172, %v1174
    %v1176 = vsel %vm312, %v1174, %v1172
    %1177 = vrot.lane.b32.xlu0 %v1131, 16
    %v1178 = vpop.permute.xlu0 %1177
    %1179 = vrot.lane.b32.xlu0 %v1132, 16
    %v1180 = vpop.permute.xlu0 %1179
    %v1181 = vsel %vm319, %v1178, %v1180
    %v1182 = vsel %vm319, %v1180, %v1178
    %v1183 = vsel %vm306, %v1175, %v1182
    %v1184 = vsel %vm307, %v1176, %v1181
    %v1185 = vmul.f32 %v1143, %v1117
    %v1186 = vmul.f32 %v1144, %v1118
    %v1187 = vmul.f32 %v1147, %v1131
    %v1188 = vmul.f32 %v1148, %v1132
    %v1189 = vsub.f32 %v1185, %v1187
    %v1190 = vsub.f32 %v1186, %v1188
    %v1191 = vmul.f32 %v1151, %v1169
    %v1192 = vmul.f32 %v1152, %v1170
    %v1193 = vadd.f32 %v1189, %v1191
    %v1194 = vadd.f32 %v1190, %v1192
    %v1195 = vmul.f32 %v1155, %v1183
    %v1196 = vmul.f32 %v1156, %v1184
    %v1197 = vsub.f32 %v1193, %v1195
    %v1198 = vsub.f32 %v1194, %v1196
    %v1199 = vmul.f32 %v1143, %v1131
    %v1200 = vmul.f32 %v1144, %v1132
    %v1201 = vmul.f32 %v1147, %v1117
    %v1202 = vmul.f32 %v1148, %v1118
    %v1203 = vadd.f32 %v1199, %v1201
    %v1204 = vadd.f32 %v1200, %v1202
    %v1205 = vmul.f32 %v1151, %v1183
    %v1206 = vmul.f32 %v1152, %v1184
    %v1207 = vadd.f32 %v1203, %v1205
    %v1208 = vadd.f32 %v1204, %v1206
    %v1209 = vmul.f32 %v1155, %v1169
    %v1210 = vmul.f32 %v1156, %v1170
    %v1211 = vadd.f32 %v1207, %v1209
    %v1212 = vadd.f32 %v1208, %v1210
    %s1213 = sld [smem:[#allocation2 + $0x60]]
    %s1214 = sld [smem:[#allocation2 + $0x61]]
    %s1215 = sld [smem:[#allocation2 + $0x62]]
    %s1216 = sld [smem:[#allocation2 + $0x63]]
    %s1217 = sld [smem:[#allocation2 + $0x64]]
    %s1218 = sld [smem:[#allocation2 + $0x65]]
    %s1219 = sld [smem:[#allocation2 + $0x66]]
    %s1220 = sld [smem:[#allocation2 + $0x67]]
    %v1221 = vstv %s1219
    %v1222 = vstv %s1213
    %v1223 = vsel %vm376, %v1221, %v1222
    %v1224 = vsel %vm377, %v1221, %v1222
    %v1225 = vstv %s1220
    %v1226 = vstv %s1214
    %v1227 = vsel %vm376, %v1225, %v1226
    %v1228 = vsel %vm377, %v1225, %v1226
    %v1229 = vstv %s1217
    %v1230 = vstv %s1215
    %v1231 = vsel %vm376, %v1229, %v1230
    %v1232 = vsel %vm377, %v1229, %v1230
    %v1233 = vstv %s1218
    %v1234 = vstv %s1216
    %v1235 = vsel %vm376, %v1233, %v1234
    %v1236 = vsel %vm377, %v1233, %v1234
    %1237 = vrot.lane.b32.xlu0 %v1197, 120
    %v1238 = vpop.permute.xlu0 %1237
    %1239 = vrot.lane.b32.xlu0 %v1198, 120
    %v1240 = vpop.permute.xlu0 %1239
    %v1241 = vsel %vm400, %v1238, %v1240
    %v1242 = vsel %vm400, %v1240, %v1238
    %1243 = vrot.lane.b32.xlu0 %v1197, 8
    %v1244 = vpop.permute.xlu0 %1243
    %1245 = vrot.lane.b32.xlu0 %v1198, 8
    %v1246 = vpop.permute.xlu0 %1245
    %v1247 = vsel %vm407, %v1244, %v1246
    %v1248 = vsel %vm407, %v1246, %v1244
    %v1249 = vsel %vm394, %v1241, %v1248
    %v1250 = vsel %vm395, %v1242, %v1247
    %1251 = vrot.lane.b32.xlu0 %v1211, 120
    %v1252 = vpop.permute.xlu0 %1251
    %1253 = vrot.lane.b32.xlu0 %v1212, 120
    %v1254 = vpop.permute.xlu0 %1253
    %v1255 = vsel %vm400, %v1252, %v1254
    %v1256 = vsel %vm400, %v1254, %v1252
    %1257 = vrot.lane.b32.xlu0 %v1211, 8
    %v1258 = vpop.permute.xlu0 %1257
    %1259 = vrot.lane.b32.xlu0 %v1212, 8
    %v1260 = vpop.permute.xlu0 %1259
    %v1261 = vsel %vm407, %v1258, %v1260
    %v1262 = vsel %vm407, %v1260, %v1258
    %v1263 = vsel %vm394, %v1255, %v1262
    %v1264 = vsel %vm395, %v1256, %v1261
    %v1265 = vmul.f32 %v1223, %v1197
    %v1266 = vmul.f32 %v1224, %v1198
    %v1267 = vmul.f32 %v1227, %v1211
    %v1268 = vmul.f32 %v1228, %v1212
    %v1269 = vsub.f32 %v1265, %v1267
    %v1270 = vsub.f32 %v1266, %v1268
    %v1271 = vmul.f32 %v1231, %v1249
    %v1272 = vmul.f32 %v1232, %v1250
    %v1273 = vadd.f32 %v1269, %v1271
    %v1274 = vadd.f32 %v1270, %v1272
    %v1275 = vmul.f32 %v1235, %v1263
    %v1276 = vmul.f32 %v1236, %v1264
    %v1277 = vsub.f32 %v1273, %v1275
    %v1278 = vsub.f32 %v1274, %v1276
    %v1279 = vmul.f32 %v1223, %v1211
    %v1280 = vmul.f32 %v1224, %v1212
    %v1281 = vmul.f32 %v1227, %v1197
    %v1282 = vmul.f32 %v1228, %v1198
    %v1283 = vadd.f32 %v1279, %v1281
    %v1284 = vadd.f32 %v1280, %v1282
    %v1285 = vmul.f32 %v1231, %v1263
    %v1286 = vmul.f32 %v1232, %v1264
    %v1287 = vadd.f32 %v1283, %v1285
    %v1288 = vadd.f32 %v1284, %v1286
    %v1289 = vmul.f32 %v1235, %v1249
    %v1290 = vmul.f32 %v1236, %v1250
    %v1291 = vadd.f32 %v1287, %v1289
    %v1292 = vadd.f32 %v1288, %v1290
    %s1293 = sld [smem:[#allocation2 + $0x68]]
    %s1294 = sld [smem:[#allocation2 + $0x69]]
    %s1295 = sld [smem:[#allocation2 + $0x6a]]
    %s1296 = sld [smem:[#allocation2 + $0x6b]]
    %s1297 = sld [smem:[#allocation2 + $0x6c]]
    %s1298 = sld [smem:[#allocation2 + $0x6d]]
    %s1299 = sld [smem:[#allocation2 + $0x6e]]
    %s1300 = sld [smem:[#allocation2 + $0x6f]]
    %v1301 = vstv %s1299
    %v1302 = vstv %s1293
    %v1303 = vsel %vm464, %v1301, %v1302
    %v1304 = vsel %vm465, %v1301, %v1302
    %v1305 = vstv %s1300
    %v1306 = vstv %s1294
    %v1307 = vsel %vm464, %v1305, %v1306
    %v1308 = vsel %vm465, %v1305, %v1306
    %v1309 = vstv %s1297
    %v1310 = vstv %s1295
    %v1311 = vsel %vm464, %v1309, %v1310
    %v1312 = vsel %vm465, %v1309, %v1310
    %v1313 = vstv %s1298
    %v1314 = vstv %s1296
    %v1315 = vsel %vm464, %v1313, %v1314
    %v1316 = vsel %vm465, %v1313, %v1314
    %1317 = vrot.lane.b32.xlu0 %v1277, 124
    %v1318 = vpop.permute.xlu0 %1317
    %1319 = vrot.lane.b32.xlu0 %v1278, 124
    %v1320 = vpop.permute.xlu0 %1319
    %v1321 = vsel %vm488, %v1318, %v1320
    %v1322 = vsel %vm488, %v1320, %v1318
    %1323 = vrot.lane.b32.xlu0 %v1277, 4
    %v1324 = vpop.permute.xlu0 %1323
    %1325 = vrot.lane.b32.xlu0 %v1278, 4
    %v1326 = vpop.permute.xlu0 %1325
    %v1327 = vsel %vm495, %v1324, %v1326
    %v1328 = vsel %vm495, %v1326, %v1324
    %v1329 = vsel %vm482, %v1321, %v1328
    %v1330 = vsel %vm483, %v1322, %v1327
    %1331 = vrot.lane.b32.xlu0 %v1291, 124
    %v1332 = vpop.permute.xlu0 %1331
    %1333 = vrot.lane.b32.xlu0 %v1292, 124
    %v1334 = vpop.permute.xlu0 %1333
    %v1335 = vsel %vm488, %v1332, %v1334
    %v1336 = vsel %vm488, %v1334, %v1332
    %1337 = vrot.lane.b32.xlu0 %v1291, 4
    %v1338 = vpop.permute.xlu0 %1337
    %1339 = vrot.lane.b32.xlu0 %v1292, 4
    %v1340 = vpop.permute.xlu0 %1339
    %v1341 = vsel %vm495, %v1338, %v1340
    %v1342 = vsel %vm495, %v1340, %v1338
    %v1343 = vsel %vm482, %v1335, %v1342
    %v1344 = vsel %vm483, %v1336, %v1341
    %v1345 = vmul.f32 %v1303, %v1277
    %v1346 = vmul.f32 %v1304, %v1278
    %v1347 = vmul.f32 %v1307, %v1291
    %v1348 = vmul.f32 %v1308, %v1292
    %v1349 = vsub.f32 %v1345, %v1347
    %v1350 = vsub.f32 %v1346, %v1348
    %v1351 = vmul.f32 %v1311, %v1329
    %v1352 = vmul.f32 %v1312, %v1330
    %v1353 = vadd.f32 %v1349, %v1351
    %v1354 = vadd.f32 %v1350, %v1352
    %v1355 = vmul.f32 %v1315, %v1343
    %v1356 = vmul.f32 %v1316, %v1344
    %v1357 = vsub.f32 %v1353, %v1355
    %v1358 = vsub.f32 %v1354, %v1356
    %v1359 = vmul.f32 %v1303, %v1291
    %v1360 = vmul.f32 %v1304, %v1292
    %v1361 = vmul.f32 %v1307, %v1277
    %v1362 = vmul.f32 %v1308, %v1278
    %v1363 = vadd.f32 %v1359, %v1361
    %v1364 = vadd.f32 %v1360, %v1362
    %v1365 = vmul.f32 %v1311, %v1343
    %v1366 = vmul.f32 %v1312, %v1344
    %v1367 = vadd.f32 %v1363, %v1365
    %v1368 = vadd.f32 %v1364, %v1366
    %v1369 = vmul.f32 %v1315, %v1329
    %v1370 = vmul.f32 %v1316, %v1330
    %v1371 = vadd.f32 %v1367, %v1369
    %v1372 = vadd.f32 %v1368, %v1370
    %s1373 = sld [smem:[#allocation2 + $0x70]]
    %s1374 = sld [smem:[#allocation2 + $0x71]]
    %s1375 = sld [smem:[#allocation2 + $0x72]]
    %s1376 = sld [smem:[#allocation2 + $0x73]]
    %s1377 = sld [smem:[#allocation2 + $0x74]]
    %s1378 = sld [smem:[#allocation2 + $0x75]]
    %s1379 = sld [smem:[#allocation2 + $0x76]]
    %s1380 = sld [smem:[#allocation2 + $0x77]]
    %v1381 = vstv %s1379
    %v1382 = vstv %s1373
    %v1383 = vsel %vm552, %v1381, %v1382
    %v1384 = vsel %vm553, %v1381, %v1382
    %v1385 = vstv %s1380
    %v1386 = vstv %s1374
    %v1387 = vsel %vm552, %v1385, %v1386
    %v1388 = vsel %vm553, %v1385, %v1386
    %v1389 = vstv %s1377
    %v1390 = vstv %s1375
    %v1391 = vsel %vm552, %v1389, %v1390
    %v1392 = vsel %vm553, %v1389, %v1390
    %v1393 = vstv %s1378
    %v1394 = vstv %s1376
    %v1395 = vsel %vm552, %v1393, %v1394
    %v1396 = vsel %vm553, %v1393, %v1394
    %1397 = vrot.lane.b32.xlu0 %v1357, 126
    %v1398 = vpop.permute.xlu0 %1397
    %1399 = vrot.lane.b32.xlu0 %v1358, 126
    %v1400 = vpop.permute.xlu0 %1399
    %v1401 = vsel %vm576, %v1398, %v1400
    %v1402 = vsel %vm576, %v1400, %v1398
    %1403 = vrot.lane.b32.xlu0 %v1357, 2
    %v1404 = vpop.permute.xlu0 %1403
    %1405 = vrot.lane.b32.xlu0 %v1358, 2
    %v1406 = vpop.permute.xlu0 %1405
    %v1407 = vsel %vm583, %v1404, %v1406
    %v1408 = vsel %vm583, %v1406, %v1404
    %v1409 = vsel %vm570, %v1401, %v1408
    %v1410 = vsel %vm571, %v1402, %v1407
    %1411 = vrot.lane.b32.xlu0 %v1371, 126
    %v1412 = vpop.permute.xlu0 %1411
    %1413 = vrot.lane.b32.xlu0 %v1372, 126
    %v1414 = vpop.permute.xlu0 %1413
    %v1415 = vsel %vm576, %v1412, %v1414
    %v1416 = vsel %vm576, %v1414, %v1412
    %1417 = vrot.lane.b32.xlu0 %v1371, 2
    %v1418 = vpop.permute.xlu0 %1417
    %1419 = vrot.lane.b32.xlu0 %v1372, 2
    %v1420 = vpop.permute.xlu0 %1419
    %v1421 = vsel %vm583, %v1418, %v1420
    %v1422 = vsel %vm583, %v1420, %v1418
    %v1423 = vsel %vm570, %v1415, %v1422
    %v1424 = vsel %vm571, %v1416, %v1421
    %v1425 = vmul.f32 %v1383, %v1357
    %v1426 = vmul.f32 %v1384, %v1358
    %v1427 = vmul.f32 %v1387, %v1371
    %v1428 = vmul.f32 %v1388, %v1372
    %v1429 = vsub.f32 %v1425, %v1427
    %v1430 = vsub.f32 %v1426, %v1428
    %v1431 = vmul.f32 %v1391, %v1409
    %v1432 = vmul.f32 %v1392, %v1410
    %v1433 = vadd.f32 %v1429, %v1431
    %v1434 = vadd.f32 %v1430, %v1432
    %v1435 = vmul.f32 %v1395, %v1423
    %v1436 = vmul.f32 %v1396, %v1424
    %v1437 = vsub.f32 %v1433, %v1435
    %v1438 = vsub.f32 %v1434, %v1436
    %v1439 = vmul.f32 %v1383, %v1371
    %v1440 = vmul.f32 %v1384, %v1372
    %v1441 = vmul.f32 %v1387, %v1357
    %v1442 = vmul.f32 %v1388, %v1358
    %v1443 = vadd.f32 %v1439, %v1441
    %v1444 = vadd.f32 %v1440, %v1442
    %v1445 = vmul.f32 %v1391, %v1423
    %v1446 = vmul.f32 %v1392, %v1424
    %v1447 = vadd.f32 %v1443, %v1445
    %v1448 = vadd.f32 %v1444, %v1446
    %v1449 = vmul.f32 %v1395, %v1409
    %v1450 = vmul.f32 %v1396, %v1410
    %v1451 = vadd.f32 %v1447, %v1449
    %v1452 = vadd.f32 %v1448, %v1450
    %s1453 = sld [smem:[#allocation2 + $0x78]]
    %s1454 = sld [smem:[#allocation2 + $0x79]]
    %s1455 = sld [smem:[#allocation2 + $0x7a]]
    %s1456 = sld [smem:[#allocation2 + $0x7b]]
    %s1457 = sld [smem:[#allocation2 + $0x7c]]
    %s1458 = sld [smem:[#allocation2 + $0x7d]]
    %s1459 = sld [smem:[#allocation2 + $0x7e]]
    %s1460 = sld [smem:[#allocation2 + $0x7f]]
    %v1461 = vstv %s1459
    %v1462 = vstv %s1453
    %v1463 = vsel %vm640, %v1461, %v1462
    %v1464 = vsel %vm641, %v1461, %v1462
    %v1465 = vstv %s1460
    %v1466 = vstv %s1454
    %v1467 = vsel %vm640, %v1465, %v1466
    %v1468 = vsel %vm641, %v1465, %v1466
    %v1469 = vstv %s1457
    %v1470 = vstv %s1455
    %v1471 = vsel %vm640, %v1469, %v1470
    %v1472 = vsel %vm641, %v1469, %v1470
    %v1473 = vstv %s1458
    %v1474 = vstv %s1456
    %v1475 = vsel %vm640, %v1473, %v1474
    %v1476 = vsel %vm641, %v1473, %v1474
    %1477 = vrot.lane.b32.xlu0 %v1437, 127
    %v1478 = vpop.permute.xlu0 %1477
    %1479 = vrot.lane.b32.xlu0 %v1438, 127
    %v1480 = vpop.permute.xlu0 %1479
    %v1481 = vsel %vm664, %v1478, %v1480
    %v1482 = vsel %vm664, %v1480, %v1478
    %1483 = vrot.lane.b32.xlu0 %v1437, 1
    %v1484 = vpop.permute.xlu0 %1483
    %1485 = vrot.lane.b32.xlu0 %v1438, 1
    %v1486 = vpop.permute.xlu0 %1485
    %v1487 = vsel %vm50, %v1484, %v1486
    %v1488 = vsel %vm50, %v1486, %v1484
    %v1489 = vsel %vm658, %v1481, %v1488
    %v1490 = vsel %vm659, %v1482, %v1487
    %1491 = vrot.lane.b32.xlu0 %v1451, 127
    %v1492 = vpop.permute.xlu0 %1491
    %1493 = vrot.lane.b32.xlu0 %v1452, 127
    %v1494 = vpop.permute.xlu0 %1493
    %v1495 = vsel %vm664, %v1492, %v1494
    %v1496 = vsel %vm664, %v1494, %v1492
    %1497 = vrot.lane.b32.xlu0 %v1451, 1
    %v1498 = vpop.permute.xlu0 %1497
    %1499 = vrot.lane.b32.xlu0 %v1452, 1
    %v1500 = vpop.permute.xlu0 %1499
    %v1501 = vsel %vm50, %v1498, %v1500
    %v1502 = vsel %vm50, %v1500, %v1498
    %v1503 = vsel %vm658, %v1495, %v1502
    %v1504 = vsel %vm659, %v1496, %v1501
    %v1505 = vmul.f32 %v1463, %v1437
    %v1506 = vmul.f32 %v1464, %v1438
    %v1507 = vmul.f32 %v1467, %v1451
    %v1508 = vmul.f32 %v1468, %v1452
    %v1509 = vsub.f32 %v1505, %v1507
    %v1510 = vsub.f32 %v1506, %v1508
    %v1511 = vmul.f32 %v1471, %v1489
    %v1512 = vmul.f32 %v1472, %v1490
    %v1513 = vadd.f32 %v1509, %v1511
    %v1514 = vadd.f32 %v1510, %v1512
    %v1515 = vmul.f32 %v1475, %v1503
    %v1516 = vmul.f32 %v1476, %v1504
    %v1517 = vsub.f32 %v1513, %v1515
    %v1518 = vsub.f32 %v1514, %v1516
    %v1519 = vmul.f32 %v1463, %v1451
    %v1520 = vmul.f32 %v1464, %v1452
    %v1521 = vmul.f32 %v1467, %v1437
    %v1522 = vmul.f32 %v1468, %v1438
    %v1523 = vadd.f32 %v1519, %v1521
    %v1524 = vadd.f32 %v1520, %v1522
    %v1525 = vmul.f32 %v1471, %v1503
    %v1526 = vmul.f32 %v1472, %v1504
    %v1527 = vadd.f32 %v1523, %v1525
    %v1528 = vadd.f32 %v1524, %v1526
    %v1529 = vmul.f32 %v1475, %v1489
    %v1530 = vmul.f32 %v1476, %v1490
    %v1531 = vadd.f32 %v1527, %v1529
    %v1532 = vadd.f32 %v1528, %v1530
    %1533 = vrot.lane.b32.xlu0 %v1517, 64
    %v1534 = vpop.permute.xlu0 %1533
    %1535 = vrot.lane.b32.xlu0 %v1518, 64
    %v1536 = vpop.permute.xlu0 %1535
    %v1537 = vsel %vm149, %v1534, %v1536
    %v1538 = vsel %vm149, %v1536, %v1534
    %v1539 = vsel %vm143, %v1537, %v1538
    %v1540 = vsel %vm144, %v1538, %v1537
    %1541 = vrot.lane.b32.xlu0 %v1531, 64
    %v1542 = vpop.permute.xlu0 %1541
    %1543 = vrot.lane.b32.xlu0 %v1532, 64
    %v1544 = vpop.permute.xlu0 %1543
    %v1545 = vsel %vm149, %v1542, %v1544
    %v1546 = vsel %vm149, %v1544, %v1542
    %v1547 = vsel %vm143, %v1545, %v1546
    %v1548 = vsel %vm144, %v1546, %v1545
    %v1549 = vsel %vm69, %v1539, %v1517
    %v1550 = vsel %vm70, %v1540, %v1518
    %v1551 = vsel %vm69, %v1547, %v1531
    %v1552 = vsel %vm70, %v1548, %v1532
    %1553 = vrot.lane.b32.xlu0 %v1549, 96
    %v1554 = vpop.permute.xlu0 %1553
    %1555 = vrot.lane.b32.xlu0 %v1550, 96
    %v1556 = vpop.permute.xlu0 %1555
    %v1557 = vsel %vm224, %v1554, %v1556
    %v1558 = vsel %vm224, %v1556, %v1554
    %1559 = vrot.lane.b32.xlu0 %v1549, 32
    %v1560 = vpop.permute.xlu0 %1559
    %1561 = vrot.lane.b32.xlu0 %v1550, 32
    %v1562 = vpop.permute.xlu0 %1561
    %v1563 = vsel %vm231, %v1560, %v1562
    %v1564 = vsel %vm231, %v1562, %v1560
    %v1565 = vsel %vm218, %v1557, %v1564
    %v1566 = vsel %vm219, %v1558, %v1563
    %1567 = vrot.lane.b32.xlu0 %v1551, 96
    %v1568 = vpop.permute.xlu0 %1567
    %1569 = vrot.lane.b32.xlu0 %v1552, 96
    %v1570 = vpop.permute.xlu0 %1569
    %v1571 = vsel %vm224, %v1568, %v1570
    %v1572 = vsel %vm224, %v1570, %v1568
    %1573 = vrot.lane.b32.xlu0 %v1551, 32
    %v1574 = vpop.permute.xlu0 %1573
    %1575 = vrot.lane.b32.xlu0 %v1552, 32
    %v1576 = vpop.permute.xlu0 %1575
    %v1577 = vsel %vm231, %v1574, %v1576
    %v1578 = vsel %vm231, %v1576, %v1574
    %v1579 = vsel %vm218, %v1571, %v1578
    %v1580 = vsel %vm219, %v1572, %v1577
    %v1581 = vsel %vm125, %v1565, %v1549
    %v1582 = vsel %vm126, %v1566, %v1550
    %v1583 = vsel %vm125, %v1579, %v1551
    %v1584 = vsel %vm126, %v1580, %v1552
    %1585 = vrot.lane.b32.xlu0 %v1581, 112
    %v1586 = vpop.permute.xlu0 %1585
    %1587 = vrot.lane.b32.xlu0 %v1582, 112
    %v1588 = vpop.permute.xlu0 %1587
    %v1589 = vsel %vm312, %v1586, %v1588
    %v1590 = vsel %vm312, %v1588, %v1586
    %1591 = vrot.lane.b32.xlu0 %v1581, 16
    %v1592 = vpop.permute.xlu0 %1591
    %1593 = vrot.lane.b32.xlu0 %v1582, 16
    %v1594 = vpop.permute.xlu0 %1593
    %v1595 = vsel %vm319, %v1592, %v1594
    %v1596 = vsel %vm319, %v1594, %v1592
    %v1597 = vsel %vm306, %v1589, %v1596
    %v1598 = vsel %vm307, %v1590, %v1595
    %1599 = vrot.lane.b32.xlu0 %v1583, 112
    %v1600 = vpop.permute.xlu0 %1599
    %1601 = vrot.lane.b32.xlu0 %v1584, 112
    %v1602 = vpop.permute.xlu0 %1601
    %v1603 = vsel %vm312, %v1600, %v1602
    %v1604 = vsel %vm312, %v1602, %v1600
    %1605 = vrot.lane.b32.xlu0 %v1583, 16
    %v1606 = vpop.permute.xlu0 %1605
    %1607 = vrot.lane.b32.xlu0 %v1584, 16
    %v1608 = vpop.permute.xlu0 %1607
    %v1609 = vsel %vm319, %v1606, %v1608
    %v1610 = vsel %vm319, %v1608, %v1606
    %v1611 = vsel %vm306, %v1603, %v1610
    %v1612 = vsel %vm307, %v1604, %v1609
    %v1613 = vsel %vm200, %v1597, %v1581
    %v1614 = vsel %vm201, %v1598, %v1582
    %v1615 = vsel %vm200, %v1611, %v1583
    %v1616 = vsel %vm201, %v1612, %v1584
    %1617 = vrot.lane.b32.xlu0 %v1613, 120
    %v1618 = vpop.permute.xlu0 %1617
    %1619 = vrot.lane.b32.xlu0 %v1614, 120
    %v1620 = vpop.permute.xlu0 %1619
    %v1621 = vsel %vm400, %v1618, %v1620
    %v1622 = vsel %vm400, %v1620, %v1618
    %1623 = vrot.lane.b32.xlu0 %v1613, 8
    %v1624 = vpop.permute.xlu0 %1623
    %1625 = vrot.lane.b32.xlu0 %v1614, 8
    %v1626 = vpop.permute.xlu0 %1625
    %v1627 = vsel %vm407, %v1624, %v1626
    %v1628 = vsel %vm407, %v1626, %v1624
    %v1629 = vsel %vm394, %v1621, %v1628
    %v1630 = vsel %vm395, %v1622, %v1627
    %1631 = vrot.lane.b32.xlu0 %v1615, 120
    %v1632 = vpop.permute.xlu0 %1631
    %1633 = vrot.lane.b32.xlu0 %v1616, 120
    %v1634 = vpop.permute.xlu0 %1633
    %v1635 = vsel %vm400, %v1632, %v1634
    %v1636 = vsel %vm400, %v1634, %v1632
    %1637 = vrot.lane.b32.xlu0 %v1615, 8
    %v1638 = vpop.permute.xlu0 %1637
    %1639 = vrot.lane.b32.xlu0 %v1616, 8
    %v1640 = vpop.permute.xlu0 %1639
    %v1641 = vsel %vm407, %v1638, %v1640
    %v1642 = vsel %vm407, %v1640, %v1638
    %v1643 = vsel %vm394, %v1635, %v1642
    %v1644 = vsel %vm395, %v1636, %v1641
    %v1645 = vsel %vm288, %v1629, %v1613
    %v1646 = vsel %vm289, %v1630, %v1614
    %v1647 = vsel %vm288, %v1643, %v1615
    %v1648 = vsel %vm289, %v1644, %v1616
    %1649 = vrot.lane.b32.xlu0 %v1645, 124
    %v1650 = vpop.permute.xlu0 %1649
    %1651 = vrot.lane.b32.xlu0 %v1646, 124
    %v1652 = vpop.permute.xlu0 %1651
    %v1653 = vsel %vm488, %v1650, %v1652
    %v1654 = vsel %vm488, %v1652, %v1650
    %1655 = vrot.lane.b32.xlu0 %v1645, 4
    %v1656 = vpop.permute.xlu0 %1655
    %1657 = vrot.lane.b32.xlu0 %v1646, 4
    %v1658 = vpop.permute.xlu0 %1657
    %v1659 = vsel %vm495, %v1656, %v1658
    %v1660 = vsel %vm495, %v1658, %v1656
    %v1661 = vsel %vm482, %v1653, %v1660
    %v1662 = vsel %vm483, %v1654, %v1659
    %1663 = vrot.lane.b32.xlu0 %v1647, 124
    %v1664 = vpop.permute.xlu0 %1663
    %1665 = vrot.lane.b32.xlu0 %v1648, 124
    %v1666 = vpop.permute.xlu0 %1665
    %v1667 = vsel %vm488, %v1664, %v1666
    %v1668 = vsel %vm488, %v1666, %v1664
    %1669 = vrot.lane.b32.xlu0 %v1647, 4
    %v1670 = vpop.permute.xlu0 %1669
    %1671 = vrot.lane.b32.xlu0 %v1648, 4
    %v1672 = vpop.permute.xlu0 %1671
    %v1673 = vsel %vm495, %v1670, %v1672
    %v1674 = vsel %vm495, %v1672, %v1670
    %v1675 = vsel %vm482, %v1667, %v1674
    %v1676 = vsel %vm483, %v1668, %v1673
    %v1677 = vsel %vm376, %v1661, %v1645
    %v1678 = vsel %vm377, %v1662, %v1646
    %v1679 = vsel %vm376, %v1675, %v1647
    %v1680 = vsel %vm377, %v1676, %v1648
    %1681 = vrot.lane.b32.xlu0 %v1677, 126
    %v1682 = vpop.permute.xlu0 %1681
    %1683 = vrot.lane.b32.xlu0 %v1678, 126
    %v1684 = vpop.permute.xlu0 %1683
    %v1685 = vsel %vm576, %v1682, %v1684
    %v1686 = vsel %vm576, %v1684, %v1682
    %1687 = vrot.lane.b32.xlu0 %v1677, 2
    %v1688 = vpop.permute.xlu0 %1687
    %1689 = vrot.lane.b32.xlu0 %v1678, 2
    %v1690 = vpop.permute.xlu0 %1689
    %v1691 = vsel %vm583, %v1688, %v1690
    %v1692 = vsel %vm583, %v1690, %v1688
    %v1693 = vsel %vm570, %v1685, %v1692
    %v1694 = vsel %vm571, %v1686, %v1691
    %1695 = vrot.lane.b32.xlu0 %v1679, 126
    %v1696 = vpop.permute.xlu0 %1695
    %1697 = vrot.lane.b32.xlu0 %v1680, 126
    %v1698 = vpop.permute.xlu0 %1697
    %v1699 = vsel %vm576, %v1696, %v1698
    %v1700 = vsel %vm576, %v1698, %v1696
    %1701 = vrot.lane.b32.xlu0 %v1679, 2
    %v1702 = vpop.permute.xlu0 %1701
    %1703 = vrot.lane.b32.xlu0 %v1680, 2
    %v1704 = vpop.permute.xlu0 %1703
    %v1705 = vsel %vm583, %v1702, %v1704
    %v1706 = vsel %vm583, %v1704, %v1702
    %v1707 = vsel %vm570, %v1699, %v1706
    %v1708 = vsel %vm571, %v1700, %v1705
    %v1709 = vsel %vm464, %v1693, %v1677
    %v1710 = vsel %vm465, %v1694, %v1678
    %v1711 = vsel %vm464, %v1707, %v1679
    %v1712 = vsel %vm465, %v1708, %v1680
    %1713 = vrot.lane.b32.xlu0 %v1709, 127
    %v1714 = vpop.permute.xlu0 %1713
    %1715 = vrot.lane.b32.xlu0 %v1710, 127
    %v1716 = vpop.permute.xlu0 %1715
    %v1717 = vsel %vm664, %v1714, %v1716
    %v1718 = vsel %vm664, %v1716, %v1714
    %1719 = vrot.lane.b32.xlu0 %v1709, 1
    %v1720 = vpop.permute.xlu0 %1719
    %1721 = vrot.lane.b32.xlu0 %v1710, 1
    %v1722 = vpop.permute.xlu0 %1721
    %v1723 = vsel %vm50, %v1720, %v1722
    %v1724 = vsel %vm50, %v1722, %v1720
    %v1725 = vsel %vm658, %v1717, %v1724
    %v1726 = vsel %vm659, %v1718, %v1723
    %1727 = vrot.lane.b32.xlu0 %v1711, 127
    %v1728 = vpop.permute.xlu0 %1727
    %1729 = vrot.lane.b32.xlu0 %v1712, 127
    %v1730 = vpop.permute.xlu0 %1729
    %v1731 = vsel %vm664, %v1728, %v1730
    %v1732 = vsel %vm664, %v1730, %v1728
    %1733 = vrot.lane.b32.xlu0 %v1711, 1
    %v1734 = vpop.permute.xlu0 %1733
    %1735 = vrot.lane.b32.xlu0 %v1712, 1
    %v1736 = vpop.permute.xlu0 %1735
    %v1737 = vsel %vm50, %v1734, %v1736
    %v1738 = vsel %vm50, %v1736, %v1734
    %v1739 = vsel %vm658, %v1731, %v1738
    %v1740 = vsel %vm659, %v1732, %v1737
    %v1741 = vsel %vm552, %v1725, %v1709
    %v1742 = vsel %vm553, %v1726, %v1710
    %v1743 = vsel %vm552, %v1739, %v1711
    %v1744 = vsel %vm553, %v1740, %v1712
    %v1745 = vsel %vm640, %v1742, %v1741
    %v1746 = vsel %vm641, %v1741, %v1742
    %v1747 = vsel %vm640, %v1744, %v1743
    %v1748 = vsel %vm641, %v1743, %v1744
    %v1749 = vmul.f32 %v1745, %v1745
    %v1750 = vmul.f32 %v1746, %v1746
    %v1751 = vmul.f32 %v1747, %v1747
    %v1752 = vmul.f32 %v1748, %v1748
    %v1753 = vadd.f32 %v1749, %v1751
    %v1754 = vadd.f32 %v1750, %v1752
    %v1755 = vld [vmem:[#allocation5] sm:$0xff]
    %v1756 = vld [vmem:[#allocation5 + $0x8] sm:$0xff]
    %v1757 = vld [vmem:[#allocation5 + $0x10] sm:$0xff]
    %v1758 = vld [vmem:[#allocation5 + $0x18] sm:$0xff]
    %v1759 = vld [vmem:[#allocation5 + $0x20] sm:$0xff]
    %v1760 = vld [vmem:[#allocation5 + $0x28] sm:$0xff]
    %v1761 = vld [vmem:[#allocation5 + $0x30] sm:$0xff]
    %v1762 = vld [vmem:[#allocation5 + $0x38] sm:$0xff]
    %v1763 = vld [vmem:[#allocation5 + $0x40] sm:$0xff]
    %v1764 = vld [vmem:[#allocation5 + $0x48] sm:$0xff]
    %v1765 = vld [vmem:[#allocation5 + $0x50] sm:$0xff]
    %v1766 = vld [vmem:[#allocation5 + $0x58] sm:$0xff]
    %v1767 = vld [vmem:[#allocation5 + $0x60] sm:$0xff]
    %v1768 = vld [vmem:[#allocation5 + $0x68] sm:$0xff]
    %v1769 = vld [vmem:[#allocation5 + $0x70] sm:$0xff]
    %v1770 = vld [vmem:[#allocation5 + $0x78] sm:$0xff]
    %v1771 = vld [vmem:[#allocation5 + $0x80] sm:$0xff]
    %v1772 = vld [vmem:[#allocation5 + $0x88] sm:$0xff]
    %v1773 = vld [vmem:[#allocation5 + $0x90] sm:$0xff]
    %v1774 = vld [vmem:[#allocation5 + $0x98] sm:$0xff]
    %v1775 = vld [vmem:[#allocation5 + $0xa0] sm:$0xff]
    %v1776 = vld [vmem:[#allocation5 + $0xa8] sm:$0xff]
    %v1777 = vld [vmem:[#allocation5 + $0xb0] sm:$0xff]
    %v1778 = vld [vmem:[#allocation5 + $0xb8] sm:$0xff]
    %v1779 = vld [vmem:[#allocation5 + $0xc0] sm:$0xff]
    %v1780 = vld [vmem:[#allocation5 + $0xc8] sm:$0xff]
    %v1781 = vld [vmem:[#allocation5 + $0xd0] sm:$0xff]
    %v1782 = vld [vmem:[#allocation5 + $0xd8] sm:$0xff]
    %v1783 = vld [vmem:[#allocation5 + $0xe0] sm:$0xff]
    %v1784 = vld [vmem:[#allocation5 + $0xe8] sm:$0xff]
    %v1785 = vld [vmem:[#allocation5 + $0xf0] sm:$0xff]
    %v1786 = vld [vmem:[#allocation5 + $0xf8] sm:$0xff]
    %1787 = vmatprep.subr.mxu0 0.0
    %1788 = vmatpush1.msra.mxu0 %v1770
    %1789 = vmatprep.subr.mxu0 0.0
    %1790 = vmatpush1.msra.mxu0 %v1769
    %1791 = vmatprep.subr.mxu0 0.0
    %1792 = vmatpush1.msra.mxu0 %v1768
    %1793 = vmatprep.subr.mxu0 0.0
    %1794 = vmatpush1.msra.mxu0 %v1767
    %1795 = vmatprep.subr.mxu0 0.0
    %1796 = vmatpush1.msra.mxu0 %v1766
    %1797 = vmatprep.subr.mxu0 0.0
    %1798 = vmatpush1.msra.mxu0 %v1765
    %1799 = vmatprep.subr.mxu0 0.0
    %1800 = vmatpush1.msra.mxu0 %v1764
    %1801 = vmatprep.subr.mxu0 0.0
    %1802 = vmatpush1.msra.mxu0 %v1763
    %1803 = vmatprep.subr.mxu0 0.0
    %1804 = vmatpush1.msra.mxu0 %v1762
    %1805 = vmatprep.subr.mxu0 0.0
    %1806 = vmatpush1.msra.mxu0 %v1761
    %1807 = vmatprep.subr.mxu0 0.0
    %1808 = vmatpush1.msra.mxu0 %v1760
    %1809 = vmatprep.subr.mxu0 0.0
    %1810 = vmatpush1.msra.mxu0 %v1759
    %1811 = vmatprep.subr.mxu0 0.0
    %1812 = vmatpush1.msra.mxu0 %v1758
    %1813 = vmatprep.subr.mxu0 0.0
    %1814 = vmatpush1.msra.mxu0 %v1757
    %1815 = vmatprep.subr.mxu0 0.0
    %1816 = vmatpush1.msra.mxu0 %v1756
    %1817 = vmatprep.subr.mxu0 0.0
    %1818 = vmatpush1.msra.mxu0 %v1755
    %1819 = vmatprep.subr.mxu0 0.0
    %1820 = vmatpush2.msra.mxu0 %v1786
    %1821 = vmatprep.subr.mxu0 0.0
    %1822 = vmatpush2.msra.mxu0 %v1785
    %1823 = vmatprep.subr.mxu0 0.0
    %1824 = vmatpush2.msra.mxu0 %v1784
    %1825 = vmatprep.subr.mxu0 0.0
    %1826 = vmatpush2.msra.mxu0 %v1783
    %1827 = vmatprep.subr.mxu0 0.0
    %1828 = vmatpush2.msra.mxu0 %v1782
    %1829 = vmatprep.subr.mxu0 0.0
    %1830 = vmatpush2.msra.mxu0 %v1781
    %1831 = vmatprep.subr.mxu0 0.0
    %1832 = vmatpush2.msra.mxu0 %v1780
    %1833 = vmatprep.subr.mxu0 0.0
    %1834 = vmatpush2.msra.mxu0 %v1779
    %1835 = vmatprep.subr.mxu0 0.0
    %1836 = vmatpush2.msra.mxu0 %v1778
    %1837 = vmatprep.subr.mxu0 0.0
    %1838 = vmatpush2.msra.mxu0 %v1777
    %1839 = vmatprep.subr.mxu0 0.0
    %1840 = vmatpush2.msra.mxu0 %v1776
    %1841 = vmatprep.subr.mxu0 0.0
    %1842 = vmatpush2.msra.mxu0 %v1775
    %1843 = vmatprep.subr.mxu0 0.0
    %1844 = vmatpush2.msra.mxu0 %v1774
    %1845 = vmatprep.subr.mxu0 0.0
    %1846 = vmatpush2.msra.mxu0 %v1773
    %1847 = vmatprep.subr.mxu0 0.0
    %1848 = vmatpush2.msra.mxu0 %v1772
    %1849 = vmatprep.subr.mxu0 0.0
    %1850 = vmatpush2.msra.mxu0 %v1771
    %1851 = vmatprep.mubr.f32.mxu0 %v1754
    %1852 = vmatmul.mubr.f32.gmra.mxu0 %v1753
    %v1853 = vpop.f32.mrf.mxu0
    %v1854 = vadd.f32 0.0, %v1853
    %v1855 = vpop.f32.mrf.mxu0
    %1856 = vdwg.mxu0
    %vm1857 = vcmask 7168
    %1858 = vst.msk [vmem:[%s3] sm:$0xff] %vm1857, %v1854
    // Predicated region
    $region22: #{full_quantum_model_forward.1} parent=1 // pred_check
      _
    $region23: #{full_quantum_model_forward.1} parent=1 // pred_check_branch
      %1860 = sbr.rel (0) target = $region25
    $region24: #{full_quantum_model_forward.1} parent=1 // pred_region
      _
    $region25: #{full_quantum_model_forward.1} parent=1 // pred_fallthru
      _
    // Predicated region
    $region26: #{full_quantum_model_forward.1} parent=1 // pred_check
      _
    $region27: #{full_quantum_model_forward.1} parent=1 // pred_check_branch
      %1862 = sbr.rel (0) target = $region29
    $region28: #{full_quantum_model_forward.1} parent=1 // pred_region
      _
    $region29: #{full_quantum_model_forward.1} parent=1 // pred_fallthru
      _
    %1863 = vsyncpa [#allocation3], 1
    %1864 = vsyncpa [#allocation4], 1

</llo_original>
